<compile_context>
chip_gen: v5e
topology: v5e:2x2
jax: 0.10.0
libtpu: 0.0.40
codegen_flags: <defaults>
</compile_context>

<pallas_src>
import math
import functools

import jax
import jax.numpy as jnp
import numpy as np
from jax import lax
from jax.experimental import pallas as pl
from jax.experimental.pallas import tpu as pltpu


_PER_TAP_MIN_CIN = 128      # per-tap accumulating matmuls once K=Cin fills the MXU
_FOLD_MAX_HW = 128          # fold batch into lanes when a level's H*W < 128
_TAP_OFFSETS = tuple((ky - 1, kx - 1) for ky in range(3) for kx in range(3))


def _round_up(x, m):
    return ((x + m - 1) // m) * m


# ----------------------------------------------------------------------------
# In-kernel 3x3 / stride 1 / pad 1 conv on a (Cin, L) bf16 activation.
# ----------------------------------------------------------------------------
def _conv3x3(ext_ref, act_bf16, w2d, b2d, *, tap_masks, W, L, base,
             per_tap, relu):
    """ext_ref : (Cin, ext_len) bf16 scratch; interior [base, base+L) rewritten.
    w2d      : (Cout, 9*Cin) bf16, tap t = ky*3+kx in columns [t*Cin,(t+1)*Cin).
    b2d      : (Cout, 1) f32.
    tap_masks: 9 optional (1, L) bool masks (row/col wrap handling).
    Returns (Cout, L) f32."""
    cin = act_bf16.shape[0]
    ext_ref[:, base:base + L] = act_bf16

    def tap(t, dy, dx):
        start = base + dy * W + dx            # static python int, always >= 0
        s = ext_ref[:, start:start + L]       # (Cin, L) bf16, pure lane shift
        m = tap_masks[t]
        if m is not None:
            s = jnp.where(m, s, jnp.zeros((), s.dtype))   # (1,L) mask broadcast
        return s

    if per_tap:
        # 9 accumulating MXU matmuls (K = Cin each); no (9*Cin, L) patch is
        # ever materialised -> no VMEM spike, no extra vector-store pass.
        out = None
        for t, (dy, dx) in enumerate(_TAP_OFFSETS):
            w_t = w2d[:, t * cin:(t + 1) * cin]           # (Cout, Cin)
            contrib = jnp.dot(w_t, tap(t, dy, dx),
                              preferred_element_type=jnp.float32)
            out = contrib if out is None else out + contrib
    else:
        # Tiny Cin: fuse the taps into K so one matmul fills the MXU depth.
        patch = jnp.concatenate(
            [tap(t, dy, dx) for t, (dy, dx) in enumerate(_TAP_OFFSETS)], axis=0)
        out = jnp.dot(w2d, patch, preferred_element_type=jnp.float32)

    out = out + b2d                                        # f32 epilogue
    if relu:
        out = jnp.maximum(out, 0.0)
    return out


# ----------------------------------------------------------------------------
# Fused per-level kernel: both branches, all conv layers, one launch.
# ----------------------------------------------------------------------------
def _retina_head_kernel(x_ref, w_l0_ref, b_l0_ref, w_sub_ref, b_sub_ref,
                        w_cls_ref, b_cls_ref, w_box_ref, b_box_ref,
                        cls_ref, box_ref, ext_ref,
                        *, num_convs, H, W, nf, base, per_tap):
    cin = x_ref.shape[1]
    HW = H * W
    L = nf * HW
    ext_len = ext_ref.shape[1]

    # (1, L) wrap masks (hoisted once; broadcast over the channel sublanes).
    q = lax.broadcasted_iota(jnp.int32, (1, L), 1)
    c = q % W
    col_l = c != 0              # valid lanes for dx = -1 taps
    col_r = c != (W - 1)        # valid lanes for dx = +1 taps
    if nf > 1:                  # images packed on the lane axis -> row masks too
        r = (q % HW) // W
        row_t = r != 0          # valid lanes for dy = -1 taps
        row_b = r != (H - 1)    # valid lanes for dy = +1 taps
    else:
        row_t = row_b = None

    def _mask(dy, dx):
        m = None
        if dx == 1:
            m = col_r
        elif dx == -1:
            m = col_l
        if dy == 1 and row_b is not None:
            m = row_b if m is None else (m & row_b)
        elif dy == -1 and row_t is not None:
            m = row_t if m is None else (m & row_t)
        return m

    tap_masks = [_mask(dy, dx) for (dy, dx) in _TAP_OFFSETS]

    # Spatial zero padding: per-image blocks need only the two border strips
    # zeroed (interior is fully rewritten every layer); batch-folded blocks
    # need no zeroing at all because the row masks cover every boundary read.
    if nf == 1:
        ext_ref[:, :base] = jnp.zeros((cin, base), ext_ref.dtype)
        tail = ext_len - (base + L)
        ext_ref[:, base + L:] = jnp.zeros((cin, tail), ext_ref.dtype)

    conv = functools.partial(_conv3x3, ext_ref, tap_masks=tap_masks,
                             W=W, L=L, base=base, per_tap=per_tap)

    x = x_ref[0, :, :]                        # (Cin, L) bf16, DMA'd once

    # --- layer 0 of BOTH subnets fused: shared taps, one matmul (M = 2*Cin) --
    fused = conv(x, w_l0_ref[...], b_l0_ref[...], relu=True)      # (2Cin, L)
    cls_act = fused[:cin, :].astype(jnp.bfloat16)
    box_act = fused[cin:, :].astype(jnp.bfloat16)

    nr = num_convs - 1
    # --- classification branch ------------------------------------------
    for l in range(nr):
        cls_act = conv(cls_act, w_sub_ref[l, :, :], b_sub_ref[l, :, :],
                       relu=True).astype(jnp.bfloat16)
    cls = conv(cls_act, w_cls_ref[...], b_cls_ref[...], relu=False)
    cls_ref[0, :, :] = cls.astype(cls_ref.dtype)

    # --- box regression branch --------------------------------------------
    for l in range(nr):
        box_act = conv(box_act, w_sub_ref[nr + l, :, :], b_sub_ref[nr + l, :, :],
                       relu=True).astype(jnp.bfloat16)
    box = conv(box_act, w_box_ref[...], b_box_ref[...], relu=False)
    box_ref[0, :, :] = box.astype(box_ref.dtype)


# ----------------------------------------------------------------------------
# Parameter construction (PyTorch layout) + one-time kernel-format prep.
# ----------------------------------------------------------------------------
def init_retinanet_head_params(key, in_channels, num_classes, num_convs,
                               num_anchors, prior_prob):
    def conv_params(k, cin, cout, bias_val=0.0):
        w = 0.01 * jax.random.normal(k, (cout, cin, 3, 3), dtype=jnp.float32)
        b = jnp.full((cout,), bias_val, dtype=jnp.float32)
        return w, b

    keys = jax.random.split(key, 2 * num_convs + 2)
    params = {"cls_subnet": [], "bbox_subnet": []}
    for i in range(num_convs):
        params["cls_subnet"].append(conv_params(keys[i], in_channels, in_channels))
        params["bbox_subnet"].append(
            conv_params(keys[num_convs + i], in_channels, in_channels))
    params["cls_score"] = conv_params(
        keys[2 * num_convs], in_channels, num_anchors * num_classes,
        bias_val=-math.log((1.0 - prior_prob) / prior_prob))
    params["bbox_pred"] = conv_params(keys[2 * num_convs + 1],
                                      in_channels, num_anchors * 4)
    return params


def prepare_params(params, num_convs):
    """One-time conversion (hoisted out of the forward loop).

    Weights: OIHW (Cout,Cin,3,3) -> (Cout, 9*Cin) bf16, tap index in the K dim
    (works for both the fused-K and the per-tap matmul paths).  Layer 0 of both
    branches is stacked into one (2*Cin, 9*Cin) matrix for the shared-tap conv."""
    assert num_convs >= 1  # TODO(synk): num_convs == 0 would bypass the fused layer-0

    def prep_w(w):
        cout, cin = w.shape[0], w.shape[1]
        return (jnp.transpose(w, (0, 2, 3, 1))
                .reshape(cout, 9 * cin).astype(jnp.bfloat16))

    def prep_b(b):
        return b.reshape(-1, 1).astype(jnp.float32)

    cls_layers = params["cls_subnet"]
    box_layers = params["bbox_subnet"]
    cin = cls_layers[0][0].shape[1]

    w_l0 = jnp.concatenate([prep_w(cls_layers[0][0]), prep_w(box_layers[0][0])], 0)
    b_l0 = jnp.concatenate([prep_b(cls_layers[0][1]), prep_b(box_layers[0][1])], 0)

    rest = cls_layers[1:] + box_layers[1:]
    if rest:
        w_sub = jnp.stack([prep_w(w) for (w, _) in rest])
        b_sub = jnp.stack([prep_b(b) for (_, b) in rest])
    else:  # num_convs == 1: dummy, never read inside the kernel
        w_sub = jnp.zeros((1, cin, 9 * cin), jnp.bfloat16)
        b_sub = jnp.zeros((1, cin, 1), jnp.float32)

    w_cls, b_cls = params["cls_score"]
    w_box, b_box = params["bbox_pred"]
    return {
        "num_convs": num_convs,
        "w_l0": w_l0, "b_l0": b_l0,
        "w_sub": w_sub, "b_sub": b_sub,
        "w_cls": prep_w(w_cls), "b_cls": prep_b(b_cls),
        "w_box": prep_w(w_box), "b_box": prep_b(b_box),
    }


# ----------------------------------------------------------------------------
# Forward pass: one pallas_call per FPN level.
# ----------------------------------------------------------------------------
def retinanet_head_level(feat_nchw, prepared, out_dtype=jnp.bfloat16):
    N, Cin, H, W = feat_nchw.shape
    HW = H * W
    num_convs = prepared["num_convs"]
    KA = prepared["w_cls"].shape[0]
    A4 = prepared["w_box"].shape[0]

    # Small levels: fold the batch into the lane axis so every block's last
    # dim is lane-dense (>= 128) -> no masked vst partial stores.
    fold = (HW < _FOLD_MAX_HW) and N > 1
    nf = N if fold else 1
    nblocks = N // nf
    L = nf * HW
    per_tap = Cin >= _PER_TAP_MIN_CIN

    base = max(128, _round_up(W + 1, 128))          # lane-aligned interior
    ext_len = _round_up(base + L + W + 1, 128)

    x = feat_nchw.reshape(N, Cin, HW).astype(jnp.bfloat16)
    if fold:
        # (N, Cin, HW) -> (1, Cin, N*HW), image-major on the lane axis.
        x = x.transpose(1, 0, 2).reshape(1, Cin, L)

    kernel = functools.partial(_retina_head_kernel, num_convs=num_convs,
                               H=H, W=W, nf=nf, base=base, per_tap=per_tap)

    cls_flat, box_flat = pl.pallas_call(
        kernel,
        out_shape=(jax.ShapeDtypeStruct((nblocks, KA, L), out_dtype),
                   jax.ShapeDtypeStruct((nblocks, A4, L), out_dtype)),
        grid_spec=pltpu.PrefetchScalarGridSpec(
            num_scalar_prefetch=0,
            grid=(nblocks,),
            in_specs=[
                pl.BlockSpec((1, Cin, L), lambda n: (n, 0, 0)),
                pl.BlockSpec(prepared["w_l0"].shape, lambda n: (0, 0)),
                pl.BlockSpec(prepared["b_l0"].shape, lambda n: (0, 0)),
                pl.BlockSpec(prepared["w_sub"].shape, lambda n: (0, 0, 0)),
                pl.BlockSpec(prepared["b_sub"].shape, lambda n: (0, 0, 0)),
                pl.BlockSpec(prepared["w_cls"].shape, lambda n: (0, 0)),
                pl.BlockSpec(prepared["b_cls"].shape, lambda n: (0, 0)),
                pl.BlockSpec(prepared["w_box"].shape, lambda n: (0, 0)),
                pl.BlockSpec(prepared["b_box"].shape, lambda n: (0, 0)),
            ],
            out_specs=[
                pl.BlockSpec((1, KA, L), lambda n: (n, 0, 0)),
                pl.BlockSpec((1, A4, L), lambda n: (n, 0, 0)),
            ],
            scratch_shapes=[pltpu.VMEM((Cin, ext_len), jnp.bfloat16)],
        ),
        compiler_params=pltpu.CompilerParams(
            dimension_semantics=("parallel",)),
    )(x, prepared["w_l0"], prepared["b_l0"],
      prepared["w_sub"], prepared["b_sub"],
      prepared["w_cls"], prepared["b_cls"],
      prepared["w_box"], prepared["b_box"])

    if fold:
        cls = cls_flat.reshape(KA, N, HW).transpose(1, 0, 2)
        box = box_flat.reshape(A4, N, HW).transpose(1, 0, 2)
    else:
        cls, box = cls_flat, box_flat
    return cls.reshape(N, KA, H, W), box.reshape(N, A4, H, W)


def retinanet_head_forward(features_nchw, prepared, out_dtype=jnp.bfloat16):
    """features_nchw: list of (N, C, Hi, Wi). Returns (logits, bbox_reg) lists
    with shapes (N, A*K, Hi, Wi) and (N, A*4, Hi, Wi) — same layout as the
    PyTorch RetinaNetHead.forward (dtype configurable, bf16 by default)."""
    logits, bbox_reg = [], []
    for feat in features_nchw:
        lg, bb = retinanet_head_level(feat, prepared, out_dtype)
        logits.append(lg)
        bbox_reg.append(bb)
    return logits, bbox_reg


# ----------------------------------------------------------------------------
# Pure-JAX reference (lax conv, f32) for validation.
# ----------------------------------------------------------------------------
def _ref_conv(x_nchw, w, b, relu):
    y = lax.conv_general_dilated(
        x_nchw, w, window_strides=(1, 1), padding=((1, 1), (1, 1)),
        dimension_numbers=("NCHW", "OIHW", "NCHW"))
    y = y + b[None, :, None, None]
    return jnp.maximum(y, 0.0) if relu else y


def _ref_forward(features_nchw, params):
    logits, bbox_reg = [], []
    for feat in features_nchw:
        h = feat
        for (w, b) in params["cls_subnet"]:
            h = _ref_conv(h, w, b, True)
        logits.append(_ref_conv(h, *params["cls_score"], False))
        h = feat
        for (w, b) in params["bbox_subnet"]:
            h = _ref_conv(h, w, b, True)
        bbox_reg.append(_ref_conv(h, *params["bbox_pred"], False))
    return logits, bbox_reg


if __name__ == "__main__":
    key = jax.random.PRNGKey(0)
    k_params, k_f0, k_f1, k_params2, k_f2 = jax.random.split(key, 5)

    num_classes, num_convs, num_anchors, prior_prob, N = 5, 2, 3, 0.01, 2

    # --- config 1: tiny Cin -> fused-K path; two levels (no-fold + fold) -----
    in_channels = 32
    params = init_retinanet_head_params(
        k_params, in_channels, num_classes, num_convs, num_anchors, prior_prob)
    prepared = prepare_params(params, num_convs)
    features = [
        jax.random.normal(k_f0, (N, in_channels, 16, 16), dtype=jnp.float32),
        jax.random.normal(k_f1, (N, in_channels, 8, 8), dtype=jnp.float32),
    ]
    logits, bbox_reg = retinanet_head_forward(features, prepared)
    jax.block_until_ready((logits, bbox_reg))

    ref_logits, ref_bbox = _ref_forward(features, params)
    for a, b in zip(logits, ref_logits):
        np.testing.assert_allclose(np.asarray(a.astype(jnp.float32)),
                                   np.asarray(b), rtol=2e-2, atol=2e-2)
    for a, b in zip(bbox_reg, ref_bbox):
        np.testing.assert_allclose(np.asarray(a.astype(jnp.float32)),
                                   np.asarray(b), rtol=2e-2, atol=2e-2)
    assert [tuple(t.shape) for t in logits] == [
        (N, num_anchors * num_classes, 16, 16),
        (N, num_anchors * num_classes, 8, 8)]
    assert [tuple(t.shape) for t in bbox_reg] == [
        (N, num_anchors * 4, 16, 16),
        (N, num_anchors * 4, 8, 8)]

    # --- config 2: Cin >= 128 -> per-tap accumulating-matmul path ------------
    in_channels2 = 128
    params2 = init_retinanet_head_params(
        k_params2, in_channels2, num_classes, num_convs, num_anchors, prior_prob)
    prepared2 = prepare_params(params2, num_convs)
    features2 = [jax.random.normal(k_f2, (N, in_channels2, 8, 8),
                                   dtype=jnp.float32)]
    logits2, bbox_reg2 = retinanet_head_forward(features2, prepared2)
    jax.block_until_ready((logits2, bbox_reg2))

    ref_logits2, ref_bbox2 = _ref_forward(features2, params2)
    np.testing.assert_allclose(np.asarray(logits2[0].astype(jnp.float32)),
                               np.asarray(ref_logits2[0]), rtol=2e-2, atol=2e-2)
    np.testing.assert_allclose(np.asarray(bbox_reg2[0].astype(jnp.float32)),
                               np.asarray(ref_bbox2[0]), rtol=2e-2, atol=2e-2)

    print("KERNEL_OK")
</pallas_src>

<mosaic_0001>
module attributes {stable_mosaic.version = 11 : i64} {
  func.func @_retina_head_kernel(%arg0: i32, %arg1: memref<1x32x256xbf16, #tpu.memory_space<vmem>>, %arg2: memref<64x288xbf16, #tpu.memory_space<vmem>>, %arg3: memref<64x1xf32, #tpu.memory_space<vmem>>, %arg4: memref<2x32x288xbf16, #tpu.memory_space<vmem>>, %arg5: memref<2x32x1xf32, #tpu.memory_space<vmem>>, %arg6: memref<15x288xbf16, #tpu.memory_space<vmem>>, %arg7: memref<15x1xf32, #tpu.memory_space<vmem>>, %arg8: memref<12x288xbf16, #tpu.memory_space<vmem>>, %arg9: memref<12x1xf32, #tpu.memory_space<vmem>>, %arg10: memref<1x15x256xbf16, #tpu.memory_space<vmem>>, %arg11: memref<1x12x256xbf16, #tpu.memory_space<vmem>>, %arg12: memref<32x512xbf16, #tpu.memory_space<vmem>>) attributes {dimension_semantics = [#tpu.dimension_semantics<parallel>], iteration_bounds = array<i64: 2>, scalar_prefetch = 0 : i64, scratch_operands = 1 : i64, tpu.core_type = #tpu.core_type<tc>, window_params = [{transform_indices = @transform_0, window_bounds = array<i64: 1, 32, 256>}, {pipeline_mode = #tpu.pipeline_mode<synchronous>, transform_indices = @transform_1, window_bounds = array<i64: 64, 288>}, {pipeline_mode = #tpu.pipeline_mode<synchronous>, transform_indices = @transform_2, window_bounds = array<i64: 64, 1>}, {pipeline_mode = #tpu.pipeline_mode<synchronous>, transform_indices = @transform_3, window_bounds = array<i64: 2, 32, 288>}, {pipeline_mode = #tpu.pipeline_mode<synchronous>, transform_indices = @transform_4, window_bounds = array<i64: 2, 32, 1>}, {pipeline_mode = #tpu.pipeline_mode<synchronous>, transform_indices = @transform_5, window_bounds = array<i64: 15, 288>}, {pipeline_mode = #tpu.pipeline_mode<synchronous>, transform_indices = @transform_6, window_bounds = array<i64: 15, 1>}, {pipeline_mode = #tpu.pipeline_mode<synchronous>, transform_indices = @transform_7, window_bounds = array<i64: 12, 288>}, {pipeline_mode = #tpu.pipeline_mode<synchronous>, transform_indices = @transform_8, window_bounds = array<i64: 12, 1>}, {transform_indices = @transform_9, window_bounds = array<i64: 1, 15, 256>}, {transform_indices = @transform_10, window_bounds = array<i64: 1, 12, 256>}]} {
    %0 = tpu.iota {dimensions = array<i32: 1>} : vector<1x256xi32>
    %c16_i32 = arith.constant 16 : i32
    %c0_i32 = arith.constant 0 : i32
    %1 = arith.cmpi eq, %c16_i32, %c0_i32 : i32
    %c1_i32 = arith.constant 1 : i32
    %2 = arith.select %1, %c1_i32, %c16_i32 : i32
    %3 = vector.broadcast %2 : i32 to vector<1x256xi32>
    %4 = arith.remsi %0, %3 : vector<1x256xi32>
    %c0_i32_0 = arith.constant 0 : i32
    %5 = vector.broadcast %c0_i32_0 : i32 to vector<1x256xi32>
    %6 = arith.cmpi ne, %4, %5 : vector<1x256xi32>
    %c0_i32_1 = arith.constant 0 : i32
    %7 = vector.broadcast %c0_i32_1 : i32 to vector<1x256xi32>
    %8 = arith.cmpi slt, %4, %7 : vector<1x256xi32>
    %c0_i32_2 = arith.constant 0 : i32
    %9 = arith.cmpi slt, %2, %c0_i32_2 : i32
    %10 = vector.broadcast %9 : i1 to vector<1x256xi1>
    %11 = vector.broadcast %10 : vector<1x256xi1> to vector<1x256xi1>
    %12 = arith.xori %8, %11 : vector<1x256xi1>
    %13 = arith.andi %12, %6 : vector<1x256xi1>
    %14 = vector.broadcast %2 : i32 to vector<1x256xi32>
    %15 = arith.addi %4, %14 : vector<1x256xi32>
    %16 = arith.select %13, %15, %4 : vector<1x256xi1>, vector<1x256xi32>
    %c0_i32_3 = arith.constant 0 : i32
    %17 = vector.broadcast %c0_i32_3 : i32 to vector<1x256xi32>
    %18 = arith.cmpi ne, %16, %17 : vector<1x256xi32>
    %c15_i32 = arith.constant 15 : i32
    %19 = vector.broadcast %c15_i32 : i32 to vector<1x256xi32>
    %20 = arith.cmpi ne, %16, %19 : vector<1x256xi32>
    %cst = arith.constant 0.000000e+00 : bf16
    %21 = vector.broadcast %cst : bf16 to vector<32x128xbf16>
    %c0 = arith.constant 0 : index
    %c0_4 = arith.constant 0 : index
    %22 = vector.load %arg12[%c0, %c0_4] : memref<32x512xbf16, #tpu.memory_space<vmem>>, vector<32x128xbf16>
    tpu.vector_store %arg12[%c0, %c0_4], %21 {strides = array<i32>} : memref<32x512xbf16, #tpu.memory_space<vmem>>, vector<32x128xbf16>,
    %cst_5 = arith.constant 0.000000e+00 : bf16
    %23 = vector.broadcast %cst_5 : bf16 to vector<32x128xbf16>
    %c0_6 = arith.constant 0 : index
    %c384 = arith.constant 384 : index
    %24 = vector.load %arg12[%c0_6, %c384] : memref<32x512xbf16, #tpu.memory_space<vmem>>, vector<32x128xbf16>
    tpu.vector_store %arg12[%c0_6, %c384], %23 {strides = array<i32>} : memref<32x512xbf16, #tpu.memory_space<vmem>>, vector<32x128xbf16>,
    %c0_7 = arith.constant 0 : index
    %c0_8 = arith.constant 0 : index
    %c0_9 = arith.constant 0 : index
    %25 = vector.load %arg1[%c0_7, %c0_8, %c0_9] : memref<1x32x256xbf16, #tpu.memory_space<vmem>>, vector<1x32x256xbf16>
    %26 = vector.shape_cast %25 : vector<1x32x256xbf16> to vector<32x256xbf16>
    %c0_10 = arith.constant 0 : index
    %c0_11 = arith.constant 0 : index
    %27 = vector.load %arg2[%c0_10, %c0_11] : memref<64x288xbf16, #tpu.memory_space<vmem>>, vector<64x288xbf16>
    %c0_12 = arith.constant 0 : index
    %c0_13 = arith.constant 0 : index
    %28 = vector.load %arg3[%c0_12, %c0_13] : memref<64x1xf32, #tpu.memory_space<vmem>>, vector<64x1xf32>
    %c0_14 = arith.constant 0 : index
    %c128 = arith.constant 128 : index
    %29 = vector.load %arg12[%c0_14, %c128] : memref<32x512xbf16, #tpu.memory_space<vmem>>, vector<32x256xbf16>
    tpu.vector_store %arg12[%c0_14, %c128], %26 {strides = array<i32>} : memref<32x512xbf16, #tpu.memory_space<vmem>>, vector<32x256xbf16>,
    %c0_15 = arith.constant 0 : index
    %c111 = arith.constant 111 : index
    %30 = vector.load %arg12[%c0_15, %c111] : memref<32x512xbf16, #tpu.memory_space<vmem>>, vector<32x256xbf16>
    %cst_16 = arith.constant 0.000000e+00 : bf16
    %31 = vector.shape_cast %18 : vector<1x256xi1> to vector<1x256xi1>
    %32 = vector.broadcast %31 : vector<1x256xi1> to vector<32x256xi1>
    %33 = vector.broadcast %cst_16 : bf16 to vector<32x256xbf16>
    %34 = arith.select %32, %30, %33 : vector<32x256xi1>, vector<32x256xbf16>
    %c0_17 = arith.constant 0 : index
    %c112 = arith.constant 112 : index
    %35 = vector.load %arg12[%c0_17, %c112] : memref<32x512xbf16, #tpu.memory_space<vmem>>, vector<32x256xbf16>
    %c0_18 = arith.constant 0 : index
    %c113 = arith.constant 113 : index
    %36 = vector.load %arg12[%c0_18, %c113] : memref<32x512xbf16, #tpu.memory_space<vmem>>, vector<32x256xbf16>
    %cst_19 = arith.constant 0.000000e+00 : bf16
    %37 = vector.shape_cast %20 : vector<1x256xi1> to vector<1x256xi1>
    %38 = vector.broadcast %37 : vector<1x256xi1> to vector<32x256xi1>
    %39 = vector.broadcast %cst_19 : bf16 to vector<32x256xbf16>
    %40 = arith.select %38, %36, %39 : vector<32x256xi1>, vector<32x256xbf16>
    %c0_20 = arith.constant 0 : index
    %c127 = arith.constant 127 : index
    %41 = vector.load %arg12[%c0_20, %c127] : memref<32x512xbf16, #tpu.memory_space<vmem>>, vector<32x256xbf16>
    %cst_21 = arith.constant 0.000000e+00 : bf16
    %42 = vector.shape_cast %18 : vector<1x256xi1> to vector<1x256xi1>
    %43 = vector.broadcast %42 : vector<1x256xi1> to vector<32x256xi1>
    %44 = vector.broadcast %cst_21 : bf16 to vector<32x256xbf16>
    %45 = arith.select %43, %41, %44 : vector<32x256xi1>, vector<32x256xbf16>
    %c0_22 = arith.constant 0 : index
    %c128_23 = arith.constant 128 : index
    %46 = vector.load %arg12[%c0_22, %c128_23] : memref<32x512xbf16, #tpu.memory_space<vmem>>, vector<32x256xbf16>
    %c0_24 = arith.constant 0 : index
    %c129 = arith.constant 129 : index
    %47 = vector.load %arg12[%c0_24, %c129] : memref<32x512xbf16, #tpu.memory_space<vmem>>, vector<32x256xbf16>
    %cst_25 = arith.constant 0.000000e+00 : bf16
    %48 = vector.shape_cast %20 : vector<1x256xi1> to vector<1x256xi1>
    %49 = vector.broadcast %48 : vector<1x256xi1> to vector<32x256xi1>
    %50 = vector.broadcast %cst_25 : bf16 to vector<32x256xbf16>
    %51 = arith.select %49, %47, %50 : vector<32x256xi1>, vector<32x256xbf16>
    %c0_26 = arith.constant 0 : index
    %c143 = arith.constant 143 : index
    %52 = vector.load %arg12[%c0_26, %c143] : memref<32x512xbf16, #tpu.memory_space<vmem>>, vector<32x256xbf16>
    %cst_27 = arith.constant 0.000000e+00 : bf16
    %53 = vector.shape_cast %18 : vector<1x256xi1> to vector<1x256xi1>
    %54 = vector.broadcast %53 : vector<1x256xi1> to vector<32x256xi1>
    %55 = vector.broadcast %cst_27 : bf16 to vector<32x256xbf16>
    %56 = arith.select %54, %52, %55 : vector<32x256xi1>, vector<32x256xbf16>
    %c0_28 = arith.constant 0 : index
    %c144 = arith.constant 144 : index
    %57 = vector.load %arg12[%c0_28, %c144] : memref<32x512xbf16, #tpu.memory_space<vmem>>, vector<32x256xbf16>
    %c0_29 = arith.constant 0 : index
    %c145 = arith.constant 145 : index
    %58 = vector.load %arg12[%c0_29, %c145] : memref<32x512xbf16, #tpu.memory_space<vmem>>, vector<32x256xbf16>
    %cst_30 = arith.constant 0.000000e+00 : bf16
    %59 = vector.shape_cast %20 : vector<1x256xi1> to vector<1x256xi1>
    %60 = vector.broadcast %59 : vector<1x256xi1> to vector<32x256xi1>
    %61 = vector.broadcast %cst_30 : bf16 to vector<32x256xbf16>
    %62 = arith.select %60, %58, %61 : vector<32x256xi1>, vector<32x256xbf16>
    %63 = tpu.concatenate %34, %35, %40, %45, %46, %51, %56, %57, %62 in 0 : vector<32x256xbf16>, vector<32x256xbf16>, vector<32x256xbf16>, vector<32x256xbf16>, vector<32x256xbf16>, vector<32x256xbf16>, vector<32x256xbf16>, vector<32x256xbf16>, vector<32x256xbf16> -> vector<288x256xbf16>
    %cst_31 = arith.constant dense<0.000000e+00> : vector<64x256xf32>
    %64 = tpu.matmul %27, %63, %cst_31 {dimension_numbers = #tpu.dot_dimension_numbers<[1], [0], [0], [1], [0, 0, 1, 1], [], []>} : vector<64x288xbf16>, vector<288x256xbf16>, vector<64x256xf32> -> vector<64x256xf32>
    %65 = vector.broadcast %28 : vector<64x1xf32> to vector<64x256xf32>
    %66 = arith.addf %64, %65 : vector<64x256xf32>
    %cst_32 = arith.constant 0.000000e+00 : f32
    %67 = vector.broadcast %cst_32 : f32 to vector<64x256xf32>
    %68 = arith.maximumf %66, %67 : vector<64x256xf32>
    %69 = vector.extract_strided_slice %68 {offsets = [0, 0], sizes = [32, 256], strides = [1, 1]} : vector<64x256xf32> to vector<32x256xf32>
    %70 = arith.truncf %69 : vector<32x256xf32> to vector<32x256xbf16>
    %71 = vector.extract_strided_slice %68 {offsets = [32, 0], sizes = [32, 256], strides = [1, 1]} : vector<64x256xf32> to vector<32x256xf32>
    %72 = arith.truncf %71 : vector<32x256xf32> to vector<32x256xbf16>
    %c0_33 = arith.constant 0 : index
    %c0_34 = arith.constant 0 : index
    %c0_35 = arith.constant 0 : index
    %73 = vector.load %arg4[%c0_33, %c0_34, %c0_35] : memref<2x32x288xbf16, #tpu.memory_space<vmem>>, vector<1x32x288xbf16>
    %74 = vector.shape_cast %73 : vector<1x32x288xbf16> to vector<32x288xbf16>
    %c0_36 = arith.constant 0 : index
    %c0_37 = arith.constant 0 : index
    %c0_38 = arith.constant 0 : index
    %75 = vector.load %arg5[%c0_36, %c0_37, %c0_38] : memref<2x32x1xf32, #tpu.memory_space<vmem>>, vector<1x32x1xf32>
    %76 = vector.shape_cast %75 : vector<1x32x1xf32> to vector<32x1xf32>
    %c0_39 = arith.constant 0 : index
    %c128_40 = arith.constant 128 : index
    %77 = vector.load %arg12[%c0_39, %c128_40] : memref<32x512xbf16, #tpu.memory_space<vmem>>, vector<32x256xbf16>
    tpu.vector_store %arg12[%c0_39, %c128_40], %70 {strides = array<i32>} : memref<32x512xbf16, #tpu.memory_space<vmem>>, vector<32x256xbf16>,
    %c0_41 = arith.constant 0 : index
    %c111_42 = arith.constant 111 : index
    %78 = vector.load %arg12[%c0_41, %c111_42] : memref<32x512xbf16, #tpu.memory_space<vmem>>, vector<32x256xbf16>
    %cst_43 = arith.constant 0.000000e+00 : bf16
    %79 = vector.shape_cast %18 : vector<1x256xi1> to vector<1x256xi1>
    %80 = vector.broadcast %79 : vector<1x256xi1> to vector<32x256xi1>
    %81 = vector.broadcast %cst_43 : bf16 to vector<32x256xbf16>
    %82 = arith.select %80, %78, %81 : vector<32x256xi1>, vector<32x256xbf16>
    %c0_44 = arith.constant 0 : index
    %c112_45 = arith.constant 112 : index
    %83 = vector.load %arg12[%c0_44, %c112_45] : memref<32x512xbf16, #tpu.memory_space<vmem>>, vector<32x256xbf16>
    %c0_46 = arith.constant 0 : index
    %c113_47 = arith.constant 113 : index
    %84 = vector.load %arg12[%c0_46, %c113_47] : memref<32x512xbf16, #tpu.memory_space<vmem>>, vector<32x256xbf16>
    %cst_48 = arith.constant 0.000000e+00 : bf16
    %85 = vector.shape_cast %20 : vector<1x256xi1> to vector<1x256xi1>
    %86 = vector.broadcast %85 : vector<1x256xi1> to vector<32x256xi1>
    %87 = vector.broadcast %cst_48 : bf16 to vector<32x256xbf16>
    %88 = arith.select %86, %84, %87 : vector<32x256xi1>, vector<32x256xbf16>
    %c0_49 = arith.constant 0 : index
    %c127_50 = arith.constant 127 : index
    %89 = vector.load %arg12[%c0_49, %c127_50] : memref<32x512xbf16, #tpu.memory_space<vmem>>, vector<32x256xbf16>
    %cst_51 = arith.constant 0.000000e+00 : bf16
    %90 = vector.shape_cast %18 : vector<1x256xi1> to vector<1x256xi1>
    %91 = vector.broadcast %90 : vector<1x256xi1> to vector<32x256xi1>
    %92 = vector.broadcast %cst_51 : bf16 to vector<32x256xbf16>
    %93 = arith.select %91, %89, %92 : vector<32x256xi1>, vector<32x256xbf16>
    %c0_52 = arith.constant 0 : index
    %c128_53 = arith.constant 128 : index
    %94 = vector.load %arg12[%c0_52, %c128_53] : memref<32x512xbf16, #tpu.memory_space<vmem>>, vector<32x256xbf16>
    %c0_54 = arith.constant 0 : index
    %c129_55 = arith.constant 129 : index
    %95 = vector.load %arg12[%c0_54, %c129_55] : memref<32x512xbf16, #tpu.memory_space<vmem>>, vector<32x256xbf16>
    %cst_56 = arith.constant 0.000000e+00 : bf16
    %96 = vector.shape_cast %20 : vector<1x256xi1> to vector<1x256xi1>
    %97 = vector.broadcast %96 : vector<1x256xi1> to vector<32x256xi1>
    %98 = vector.broadcast %cst_56 : bf16 to vector<32x256xbf16>
    %99 = arith.select %97, %95, %98 : vector<32x256xi1>, vector<32x256xbf16>
    %c0_57 = arith.constant 0 : index
    %c143_58 = arith.constant 143 : index
    %100 = vector.load %arg12[%c0_57, %c143_58] : memref<32x512xbf16, #tpu.memory_space<vmem>>, vector<32x256xbf16>
    %cst_59 = arith.constant 0.000000e+00 : bf16
    %101 = vector.shape_cast %18 : vector<1x256xi1> to vector<1x256xi1>
    %102 = vector.broadcast %101 : vector<1x256xi1> to vector<32x256xi1>
    %103 = vector.broadcast %cst_59 : bf16 to vector<32x256xbf16>
    %104 = arith.select %102, %100, %103 : vector<32x256xi1>, vector<32x256xbf16>
    %c0_60 = arith.constant 0 : index
    %c144_61 = arith.constant 144 : index
    %105 = vector.load %arg12[%c0_60, %c144_61] : memref<32x512xbf16, #tpu.memory_space<vmem>>, vector<32x256xbf16>
    %c0_62 = arith.constant 0 : index
    %c145_63 = arith.constant 145 : index
    %106 = vector.load %arg12[%c0_62, %c145_63] : memref<32x512xbf16, #tpu.memory_space<vmem>>, vector<32x256xbf16>
    %cst_64 = arith.constant 0.000000e+00 : bf16
    %107 = vector.shape_cast %20 : vector<1x256xi1> to vector<1x256xi1>
    %108 = vector.broadcast %107 : vector<1x256xi1> to vector<32x256xi1>
    %109 = vector.broadcast %cst_64 : bf16 to vector<32x256xbf16>
    %110 = arith.select %108, %106, %109 : vector<32x256xi1>, vector<32x256xbf16>
    %111 = tpu.concatenate %82, %83, %88, %93, %94, %99, %104, %105, %110 in 0 : vector<32x256xbf16>, vector<32x256xbf16>, vector<32x256xbf16>, vector<32x256xbf16>, vector<32x256xbf16>, vector<32x256xbf16>, vector<32x256xbf16>, vector<32x256xbf16>, vector<32x256xbf16> -> vector<288x256xbf16>
    %cst_65 = arith.constant dense<0.000000e+00> : vector<32x256xf32>
    %112 = tpu.matmul %74, %111, %cst_65 {dimension_numbers = #tpu.dot_dimension_numbers<[1], [0], [0], [1], [0, 0, 1, 1], [], []>} : vector<32x288xbf16>, vector<288x256xbf16>, vector<32x256xf32> -> vector<32x256xf32>
    %113 = vector.broadcast %76 : vector<32x1xf32> to vector<32x256xf32>
    %114 = arith.addf %112, %113 : vector<32x256xf32>
    %cst_66 = arith.constant 0.000000e+00 : f32
    %115 = vector.broadcast %cst_66 : f32 to vector<32x256xf32>
    %116 = arith.maximumf %114, %115 : vector<32x256xf32>
    %117 = arith.truncf %116 : vector<32x256xf32> to vector<32x256xbf16>
    %c0_67 = arith.constant 0 : index
    %c0_68 = arith.constant 0 : index
    %118 = vector.load %arg6[%c0_67, %c0_68] : memref<15x288xbf16, #tpu.memory_space<vmem>>, vector<15x288xbf16>
    %c0_69 = arith.constant 0 : index
    %c0_70 = arith.constant 0 : index
    %119 = vector.load %arg7[%c0_69, %c0_70] : memref<15x1xf32, #tpu.memory_space<vmem>>, vector<15x1xf32>
    %c0_71 = arith.constant 0 : index
    %c128_72 = arith.constant 128 : index
    %120 = vector.load %arg12[%c0_71, %c128_72] : memref<32x512xbf16, #tpu.memory_space<vmem>>, vector<32x256xbf16>
    tpu.vector_store %arg12[%c0_71, %c128_72], %117 {strides = array<i32>} : memref<32x512xbf16, #tpu.memory_space<vmem>>, vector<32x256xbf16>,
    %c0_73 = arith.constant 0 : index
    %c111_74 = arith.constant 111 : index
    %121 = vector.load %arg12[%c0_73, %c111_74] : memref<32x512xbf16, #tpu.memory_space<vmem>>, vector<32x256xbf16>
    %cst_75 = arith.constant 0.000000e+00 : bf16
    %122 = vector.shape_cast %18 : vector<1x256xi1> to vector<1x256xi1>
    %123 = vector.broadcast %122 : vector<1x256xi1> to vector<32x256xi1>
    %124 = vector.broadcast %cst_75 : bf16 to vector<32x256xbf16>
    %125 = arith.select %123, %121, %124 : vector<32x256xi1>, vector<32x256xbf16>
    %c0_76 = arith.constant 0 : index
    %c112_77 = arith.constant 112 : index
    %126 = vector.load %arg12[%c0_76, %c112_77] : memref<32x512xbf16, #tpu.memory_space<vmem>>, vector<32x256xbf16>
    %c0_78 = arith.constant 0 : index
    %c113_79 = arith.constant 113 : index
    %127 = vector.load %arg12[%c0_78, %c113_79] : memref<32x512xbf16, #tpu.memory_space<vmem>>, vector<32x256xbf16>
    %cst_80 = arith.constant 0.000000e+00 : bf16
    %128 = vector.shape_cast %20 : vector<1x256xi1> to vector<1x256xi1>
    %129 = vector.broadcast %128 : vector<1x256xi1> to vector<32x256xi1>
    %130 = vector.broadcast %cst_80 : bf16 to vector<32x256xbf16>
    %131 = arith.select %129, %127, %130 : vector<32x256xi1>, vector<32x256xbf16>
    %c0_81 = arith.constant 0 : index
    %c127_82 = arith.constant 127 : index
    %132 = vector.load %arg12[%c0_81, %c127_82] : memref<32x512xbf16, #tpu.memory_space<vmem>>, vector<32x256xbf16>
    %cst_83 = arith.constant 0.000000e+00 : bf16
    %133 = vector.shape_cast %18 : vector<1x256xi1> to vector<1x256xi1>
    %134 = vector.broadcast %133 : vector<1x256xi1> to vector<32x256xi1>
    %135 = vector.broadcast %cst_83 : bf16 to vector<32x256xbf16>
    %136 = arith.select %134, %132, %135 : vector<32x256xi1>, vector<32x256xbf16>
    %c0_84 = arith.constant 0 : index
    %c128_85 = arith.constant 128 : index
    %137 = vector.load %arg12[%c0_84, %c128_85] : memref<32x512xbf16, #tpu.memory_space<vmem>>, vector<32x256xbf16>
    %c0_86 = arith.constant 0 : index
    %c129_87 = arith.constant 129 : index
    %138 = vector.load %arg12[%c0_86, %c129_87] : memref<32x512xbf16, #tpu.memory_space<vmem>>, vector<32x256xbf16>
    %cst_88 = arith.constant 0.000000e+00 : bf16
    %139 = vector.shape_cast %20 : vector<1x256xi1> to vector<1x256xi1>
    %140 = vector.broadcast %139 : vector<1x256xi1> to vector<32x256xi1>
    %141 = vector.broadcast %cst_88 : bf16 to vector<32x256xbf16>
    %142 = arith.select %140, %138, %141 : vector<32x256xi1>, vector<32x256xbf16>
    %c0_89 = arith.constant 0 : index
    %c143_90 = arith.constant 143 : index
    %143 = vector.load %arg12[%c0_89, %c143_90] : memref<32x512xbf16, #tpu.memory_space<vmem>>, vector<32x256xbf16>
    %cst_91 = arith.constant 0.000000e+00 : bf16
    %144 = vector.shape_cast %18 : vector<1x256xi1> to vector<1x256xi1>
    %145 = vector.broadcast %144 : vector<1x256xi1> to vector<32x256xi1>
    %146 = vector.broadcast %cst_91 : bf16 to vector<32x256xbf16>
    %147 = arith.select %145, %143, %146 : vector<32x256xi1>, vector<32x256xbf16>
    %c0_92 = arith.constant 0 : index
    %c144_93 = arith.constant 144 : index
    %148 = vector.load %arg12[%c0_92, %c144_93] : memref<32x512xbf16, #tpu.memory_space<vmem>>, vector<32x256xbf16>
    %c0_94 = arith.constant 0 : index
    %c145_95 = arith.constant 145 : index
    %149 = vector.load %arg12[%c0_94, %c145_95] : memref<32x512xbf16, #tpu.memory_space<vmem>>, vector<32x256xbf16>
    %cst_96 = arith.constant 0.000000e+00 : bf16
    %150 = vector.shape_cast %20 : vector<1x256xi1> to vector<1x256xi1>
    %151 = vector.broadcast %150 : vector<1x256xi1> to vector<32x256xi1>
    %152 = vector.broadcast %cst_96 : bf16 to vector<32x256xbf16>
    %153 = arith.select %151, %149, %152 : vector<32x256xi1>, vector<32x256xbf16>
    %154 = tpu.concatenate %125, %126, %131, %136, %137, %142, %147, %148, %153 in 0 : vector<32x256xbf16>, vector<32x256xbf16>, vector<32x256xbf16>, vector<32x256xbf16>, vector<32x256xbf16>, vector<32x256xbf16>, vector<32x256xbf16>, vector<32x256xbf16>, vector<32x256xbf16> -> vector<288x256xbf16>
    %cst_97 = arith.constant dense<0.000000e+00> : vector<15x256xf32>
    %155 = tpu.matmul %118, %154, %cst_97 {dimension_numbers = #tpu.dot_dimension_numbers<[1], [0], [0], [1], [0, 0, 1, 1], [], []>} : vector<15x288xbf16>, vector<288x256xbf16>, vector<15x256xf32> -> vector<15x256xf32>
    %156 = vector.broadcast %119 : vector<15x1xf32> to vector<15x256xf32>
    %157 = arith.addf %155, %156 : vector<15x256xf32>
    %158 = arith.truncf %157 : vector<15x256xf32> to vector<15x256xbf16>
    %c0_98 = arith.constant 0 : index
    %c0_99 = arith.constant 0 : index
    %c0_100 = arith.constant 0 : index
    %159 = vector.load %arg10[%c0_98, %c0_99, %c0_100] : memref<1x15x256xbf16, #tpu.memory_space<vmem>>, vector<1x15x256xbf16>
    %160 = vector.shape_cast %159 : vector<1x15x256xbf16> to vector<15x256xbf16>
    %161 = vector.shape_cast %158 : vector<15x256xbf16> to vector<1x15x256xbf16>
    tpu.vector_store %arg10[%c0_98, %c0_99, %c0_100], %161 {strides = array<i32>} : memref<1x15x256xbf16, #tpu.memory_space<vmem>>, vector<1x15x256xbf16>,
    %c1 = arith.constant 1 : index
    %c0_101 = arith.constant 0 : index
    %c0_102 = arith.constant 0 : index
    %162 = vector.load %arg4[%c1, %c0_101, %c0_102] : memref<2x32x288xbf16, #tpu.memory_space<vmem>>, vector<1x32x288xbf16>
    %163 = vector.shape_cast %162 : vector<1x32x288xbf16> to vector<32x288xbf16>
    %c1_103 = arith.constant 1 : index
    %c0_104 = arith.constant 0 : index
    %c0_105 = arith.constant 0 : index
    %164 = vector.load %arg5[%c1_103, %c0_104, %c0_105] : memref<2x32x1xf32, #tpu.memory_space<vmem>>, vector<1x32x1xf32>
    %165 = vector.shape_cast %164 : vector<1x32x1xf32> to vector<32x1xf32>
    %c0_106 = arith.constant 0 : index
    %c128_107 = arith.constant 128 : index
    %166 = vector.load %arg12[%c0_106, %c128_107] : memref<32x512xbf16, #tpu.memory_space<vmem>>, vector<32x256xbf16>
    tpu.vector_store %arg12[%c0_106, %c128_107], %72 {strides = array<i32>} : memref<32x512xbf16, #tpu.memory_space<vmem>>, vector<32x256xbf16>,
    %c0_108 = arith.constant 0 : index
    %c111_109 = arith.constant 111 : index
    %167 = vector.load %arg12[%c0_108, %c111_109] : memref<32x512xbf16, #tpu.memory_space<vmem>>, vector<32x256xbf16>
    %cst_110 = arith.constant 0.000000e+00 : bf16
    %168 = vector.shape_cast %18 : vector<1x256xi1> to vector<1x256xi1>
    %169 = vector.broadcast %168 : vector<1x256xi1> to vector<32x256xi1>
    %170 = vector.broadcast %cst_110 : bf16 to vector<32x256xbf16>
    %171 = arith.select %169, %167, %170 : vector<32x256xi1>, vector<32x256xbf16>
    %c0_111 = arith.constant 0 : index
    %c112_112 = arith.constant 112 : index
    %172 = vector.load %arg12[%c0_111, %c112_112] : memref<32x512xbf16, #tpu.memory_space<vmem>>, vector<32x256xbf16>
    %c0_113 = arith.constant 0 : index
    %c113_114 = arith.constant 113 : index
    %173 = vector.load %arg12[%c0_113, %c113_114] : memref<32x512xbf16, #tpu.memory_space<vmem>>, vector<32x256xbf16>
    %cst_115 = arith.constant 0.000000e+00 : bf16
    %174 = vector.shape_cast %20 : vector<1x256xi1> to vector<1x256xi1>
    %175 = vector.broadcast %174 : vector<1x256xi1> to vector<32x256xi1>
    %176 = vector.broadcast %cst_115 : bf16 to vector<32x256xbf16>
    %177 = arith.select %175, %173, %176 : vector<32x256xi1>, vector<32x256xbf16>
    %c0_116 = arith.constant 0 : index
    %c127_117 = arith.constant 127 : index
    %178 = vector.load %arg12[%c0_116, %c127_117] : memref<32x512xbf16, #tpu.memory_space<vmem>>, vector<32x256xbf16>
    %cst_118 = arith.constant 0.000000e+00 : bf16
    %179 = vector.shape_cast %18 : vector<1x256xi1> to vector<1x256xi1>
    %180 = vector.broadcast %179 : vector<1x256xi1> to vector<32x256xi1>
    %181 = vector.broadcast %cst_118 : bf16 to vector<32x256xbf16>
    %182 = arith.select %180, %178, %181 : vector<32x256xi1>, vector<32x256xbf16>
    %c0_119 = arith.constant 0 : index
    %c128_120 = arith.constant 128 : index
    %183 = vector.load %arg12[%c0_119, %c128_120] : memref<32x512xbf16, #tpu.memory_space<vmem>>, vector<32x256xbf16>
    %c0_121 = arith.constant 0 : index
    %c129_122 = arith.constant 129 : index
    %184 = vector.load %arg12[%c0_121, %c129_122] : memref<32x512xbf16, #tpu.memory_space<vmem>>, vector<32x256xbf16>
    %cst_123 = arith.constant 0.000000e+00 : bf16
    %185 = vector.shape_cast %20 : vector<1x256xi1> to vector<1x256xi1>
    %186 = vector.broadcast %185 : vector<1x256xi1> to vector<32x256xi1>
    %187 = vector.broadcast %cst_123 : bf16 to vector<32x256xbf16>
    %188 = arith.select %186, %184, %187 : vector<32x256xi1>, vector<32x256xbf16>
    %c0_124 = arith.constant 0 : index
    %c143_125 = arith.constant 143 : index
    %189 = vector.load %arg12[%c0_124, %c143_125] : memref<32x512xbf16, #tpu.memory_space<vmem>>, vector<32x256xbf16>
    %cst_126 = arith.constant 0.000000e+00 : bf16
    %190 = vector.shape_cast %18 : vector<1x256xi1> to vector<1x256xi1>
    %191 = vector.broadcast %190 : vector<1x256xi1> to vector<32x256xi1>
    %192 = vector.broadcast %cst_126 : bf16 to vector<32x256xbf16>
    %193 = arith.select %191, %189, %192 : vector<32x256xi1>, vector<32x256xbf16>
    %c0_127 = arith.constant 0 : index
    %c144_128 = arith.constant 144 : index
    %194 = vector.load %arg12[%c0_127, %c144_128] : memref<32x512xbf16, #tpu.memory_space<vmem>>, vector<32x256xbf16>
    %c0_129 = arith.constant 0 : index
    %c145_130 = arith.constant 145 : index
    %195 = vector.load %arg12[%c0_129, %c145_130] : memref<32x512xbf16, #tpu.memory_space<vmem>>, vector<32x256xbf16>
    %cst_131 = arith.constant 0.000000e+00 : bf16
    %196 = vector.shape_cast %20 : vector<1x256xi1> to vector<1x256xi1>
    %197 = vector.broadcast %196 : vector<1x256xi1> to vector<32x256xi1>
    %198 = vector.broadcast %cst_131 : bf16 to vector<32x256xbf16>
    %199 = arith.select %197, %195, %198 : vector<32x256xi1>, vector<32x256xbf16>
    %200 = tpu.concatenate %171, %172, %177, %182, %183, %188, %193, %194, %199 in 0 : vector<32x256xbf16>, vector<32x256xbf16>, vector<32x256xbf16>, vector<32x256xbf16>, vector<32x256xbf16>, vector<32x256xbf16>, vector<32x256xbf16>, vector<32x256xbf16>, vector<32x256xbf16> -> vector<288x256xbf16>
    %cst_132 = arith.constant dense<0.000000e+00> : vector<32x256xf32>
    %201 = tpu.matmul %163, %200, %cst_132 {dimension_numbers = #tpu.dot_dimension_numbers<[1], [0], [0], [1], [0, 0, 1, 1], [], []>} : vector<32x288xbf16>, vector<288x256xbf16>, vector<32x256xf32> -> vector<32x256xf32>
    %202 = vector.broadcast %165 : vector<32x1xf32> to vector<32x256xf32>
    %203 = arith.addf %201, %202 : vector<32x256xf32>
    %cst_133 = arith.constant 0.000000e+00 : f32
    %204 = vector.broadcast %cst_133 : f32 to vector<32x256xf32>
    %205 = arith.maximumf %203, %204 : vector<32x256xf32>
    %206 = arith.truncf %205 : vector<32x256xf32> to vector<32x256xbf16>
    %c0_134 = arith.constant 0 : index
    %c0_135 = arith.constant 0 : index
    %207 = vector.load %arg8[%c0_134, %c0_135] : memref<12x288xbf16, #tpu.memory_space<vmem>>, vector<12x288xbf16>
    %c0_136 = arith.constant 0 : index
    %c0_137 = arith.constant 0 : index
    %208 = vector.load %arg9[%c0_136, %c0_137] : memref<12x1xf32, #tpu.memory_space<vmem>>, vector<12x1xf32>
    %c0_138 = arith.constant 0 : index
    %c128_139 = arith.constant 128 : index
    %209 = vector.load %arg12[%c0_138, %c128_139] : memref<32x512xbf16, #tpu.memory_space<vmem>>, vector<32x256xbf16>
    tpu.vector_store %arg12[%c0_138, %c128_139], %206 {strides = array<i32>} : memref<32x512xbf16, #tpu.memory_space<vmem>>, vector<32x256xbf16>,
    %c0_140 = arith.constant 0 : index
    %c111_141 = arith.constant 111 : index
    %210 = vector.load %arg12[%c0_140, %c111_141] : memref<32x512xbf16, #tpu.memory_space<vmem>>, vector<32x256xbf16>
    %cst_142 = arith.constant 0.000000e+00 : bf16
    %211 = vector.shape_cast %18 : vector<1x256xi1> to vector<1x256xi1>
    %212 = vector.broadcast %211 : vector<1x256xi1> to vector<32x256xi1>
    %213 = vector.broadcast %cst_142 : bf16 to vector<32x256xbf16>
    %214 = arith.select %212, %210, %213 : vector<32x256xi1>, vector<32x256xbf16>
    %c0_143 = arith.constant 0 : index
    %c112_144 = arith.constant 112 : index
    %215 = vector.load %arg12[%c0_143, %c112_144] : memref<32x512xbf16, #tpu.memory_space<vmem>>, vector<32x256xbf16>
    %c0_145 = arith.constant 0 : index
    %c113_146 = arith.constant 113 : index
    %216 = vector.load %arg12[%c0_145, %c113_146] : memref<32x512xbf16, #tpu.memory_space<vmem>>, vector<32x256xbf16>
    %cst_147 = arith.constant 0.000000e+00 : bf16
    %217 = vector.shape_cast %20 : vector<1x256xi1> to vector<1x256xi1>
    %218 = vector.broadcast %217 : vector<1x256xi1> to vector<32x256xi1>
    %219 = vector.broadcast %cst_147 : bf16 to vector<32x256xbf16>
    %220 = arith.select %218, %216, %219 : vector<32x256xi1>, vector<32x256xbf16>
    %c0_148 = arith.constant 0 : index
    %c127_149 = arith.constant 127 : index
    %221 = vector.load %arg12[%c0_148, %c127_149] : memref<32x512xbf16, #tpu.memory_space<vmem>>, vector<32x256xbf16>
    %cst_150 = arith.constant 0.000000e+00 : bf16
    %222 = vector.shape_cast %18 : vector<1x256xi1> to vector<1x256xi1>
    %223 = vector.broadcast %222 : vector<1x256xi1> to vector<32x256xi1>
    %224 = vector.broadcast %cst_150 : bf16 to vector<32x256xbf16>
    %225 = arith.select %223, %221, %224 : vector<32x256xi1>, vector<32x256xbf16>
    %c0_151 = arith.constant 0 : index
    %c128_152 = arith.constant 128 : index
    %226 = vector.load %arg12[%c0_151, %c128_152] : memref<32x512xbf16, #tpu.memory_space<vmem>>, vector<32x256xbf16>
    %c0_153 = arith.constant 0 : index
    %c129_154 = arith.constant 129 : index
    %227 = vector.load %arg12[%c0_153, %c129_154] : memref<32x512xbf16, #tpu.memory_space<vmem>>, vector<32x256xbf16>
    %cst_155 = arith.constant 0.000000e+00 : bf16
    %228 = vector.shape_cast %20 : vector<1x256xi1> to vector<1x256xi1>
    %229 = vector.broadcast %228 : vector<1x256xi1> to vector<32x256xi1>
    %230 = vector.broadcast %cst_155 : bf16 to vector<32x256xbf16>
    %231 = arith.select %229, %227, %230 : vector<32x256xi1>, vector<32x256xbf16>
    %c0_156 = arith.constant 0 : index
    %c143_157 = arith.constant 143 : index
    %232 = vector.load %arg12[%c0_156, %c143_157] : memref<32x512xbf16, #tpu.memory_space<vmem>>, vector<32x256xbf16>
    %cst_158 = arith.constant 0.000000e+00 : bf16
    %233 = vector.shape_cast %18 : vector<1x256xi1> to vector<1x256xi1>
    %234 = vector.broadcast %233 : vector<1x256xi1> to vector<32x256xi1>
    %235 = vector.broadcast %cst_158 : bf16 to vector<32x256xbf16>
    %236 = arith.select %234, %232, %235 : vector<32x256xi1>, vector<32x256xbf16>
    %c0_159 = arith.constant 0 : index
    %c144_160 = arith.constant 144 : index
    %237 = vector.load %arg12[%c0_159, %c144_160] : memref<32x512xbf16, #tpu.memory_space<vmem>>, vector<32x256xbf16>
    %c0_161 = arith.constant 0 : index
    %c145_162 = arith.constant 145 : index
    %238 = vector.load %arg12[%c0_161, %c145_162] : memref<32x512xbf16, #tpu.memory_space<vmem>>, vector<32x256xbf16>
    %cst_163 = arith.constant 0.000000e+00 : bf16
    %239 = vector.shape_cast %20 : vector<1x256xi1> to vector<1x256xi1>
    %240 = vector.broadcast %239 : vector<1x256xi1> to vector<32x256xi1>
    %241 = vector.broadcast %cst_163 : bf16 to vector<32x256xbf16>
    %242 = arith.select %240, %238, %241 : vector<32x256xi1>, vector<32x256xbf16>
    %243 = tpu.concatenate %214, %215, %220, %225, %226, %231, %236, %237, %242 in 0 : vector<32x256xbf16>, vector<32x256xbf16>, vector<32x256xbf16>, vector<32x256xbf16>, vector<32x256xbf16>, vector<32x256xbf16>, vector<32x256xbf16>, vector<32x256xbf16>, vector<32x256xbf16> -> vector<288x256xbf16>
    %cst_164 = arith.constant dense<0.000000e+00> : vector<12x256xf32>
    %244 = tpu.matmul %207, %243, %cst_164 {dimension_numbers = #tpu.dot_dimension_numbers<[1], [0], [0], [1], [0, 0, 1, 1], [], []>} : vector<12x288xbf16>, vector<288x256xbf16>, vector<12x256xf32> -> vector<12x256xf32>
    %245 = vector.broadcast %208 : vector<12x1xf32> to vector<12x256xf32>
    %246 = arith.addf %244, %245 : vector<12x256xf32>
    %247 = arith.truncf %246 : vector<12x256xf32> to vector<12x256xbf16>
    %c0_165 = arith.constant 0 : index
    %c0_166 = arith.constant 0 : index
    %c0_167 = arith.constant 0 : index
    %248 = vector.load %arg11[%c0_165, %c0_166, %c0_167] : memref<1x12x256xbf16, #tpu.memory_space<vmem>>, vector<1x12x256xbf16>
    %249 = vector.shape_cast %248 : vector<1x12x256xbf16> to vector<12x256xbf16>
    %250 = vector.shape_cast %247 : vector<12x256xbf16> to vector<1x12x256xbf16>
    tpu.vector_store %arg11[%c0_165, %c0_166, %c0_167], %250 {strides = array<i32>} : memref<1x12x256xbf16, #tpu.memory_space<vmem>>, vector<1x12x256xbf16>,
    return
  }
  func.func @transform_0(%arg0: i32) -> (i32, i32, i32) {
    %c0_i32 = arith.constant 0 : i32
    %c0_i32_0 = arith.constant 0 : i32
    %c0_i32_1 = arith.constant 0 : i32
    return %arg0, %c0_i32, %c0_i32_0 : i32, i32, i32
  }
  func.func @transform_1(%arg0: i32) -> (i32, i32) {
    %c0_i32 = arith.constant 0 : i32
    %c0_i32_0 = arith.constant 0 : i32
    %c0_i32_1 = arith.constant 0 : i32
    return %c0_i32, %c0_i32_0 : i32, i32
  }
  func.func @transform_2(%arg0: i32) -> (i32, i32) {
    %c0_i32 = arith.constant 0 : i32
    %c0_i32_0 = arith.constant 0 : i32
    %c0_i32_1 = arith.constant 0 : i32
    return %c0_i32, %c0_i32_0 : i32, i32
  }
  func.func @transform_3(%arg0: i32) -> (i32, i32, i32) {
    %c0_i32 = arith.constant 0 : i32
    %c0_i32_0 = arith.constant 0 : i32
    %c0_i32_1 = arith.constant 0 : i32
    %c0_i32_2 = arith.constant 0 : i32
    return %c0_i32, %c0_i32_0, %c0_i32_1 : i32, i32, i32
  }
  func.func @transform_4(%arg0: i32) -> (i32, i32, i32) {
    %c0_i32 = arith.constant 0 : i32
    %c0_i32_0 = arith.constant 0 : i32
    %c0_i32_1 = arith.constant 0 : i32
    %c0_i32_2 = arith.constant 0 : i32
    return %c0_i32, %c0_i32_0, %c0_i32_1 : i32, i32, i32
  }
  func.func @transform_5(%arg0: i32) -> (i32, i32) {
    %c0_i32 = arith.constant 0 : i32
    %c0_i32_0 = arith.constant 0 : i32
    %c0_i32_1 = arith.constant 0 : i32
    return %c0_i32, %c0_i32_0 : i32, i32
  }
  func.func @transform_6(%arg0: i32) -> (i32, i32) {
    %c0_i32 = arith.constant 0 : i32
    %c0_i32_0 = arith.constant 0 : i32
    %c0_i32_1 = arith.constant 0 : i32
    return %c0_i32, %c0_i32_0 : i32, i32
  }
  func.func @transform_7(%arg0: i32) -> (i32, i32) {
    %c0_i32 = arith.constant 0 : i32
    %c0_i32_0 = arith.constant 0 : i32
    %c0_i32_1 = arith.constant 0 : i32
    return %c0_i32, %c0_i32_0 : i32, i32
  }
  func.func @transform_8(%arg0: i32) -> (i32, i32) {
    %c0_i32 = arith.constant 0 : i32
    %c0_i32_0 = arith.constant 0 : i32
    %c0_i32_1 = arith.constant 0 : i32
    return %c0_i32, %c0_i32_0 : i32, i32
  }
  func.func @transform_9(%arg0: i32) -> (i32, i32, i32) {
    %c0_i32 = arith.constant 0 : i32
    %c0_i32_0 = arith.constant 0 : i32
    %c0_i32_1 = arith.constant 0 : i32
    return %arg0, %c0_i32, %c0_i32_0 : i32, i32, i32
  }
  func.func @transform_10(%arg0: i32) -> (i32, i32, i32) {
    %c0_i32 = arith.constant 0 : i32
    %c0_i32_0 = arith.constant 0 : i32
    %c0_i32_1 = arith.constant 0 : i32
    return %arg0, %c0_i32, %c0_i32_0 : i32, i32, i32
  }
}

</mosaic_0001>

<llo_original>
// kernel: tpu_custom_call.1
$region0: #{tpu_custom_call.1}
  #allocation0 [shape = 'u32[]', space=smem, size = 0x4, offset = 0x4, fixed_abs, tag = 'smem constant byte address 0x4 - core index']
  #allocation1 [shape = 'u32[72,128]{1,0:T(1,128)}', space=vmem, size = 0x9000, scoped, tag = 'internal scratch']
  #allocation2 [shape = 'bf16[32,512]{1,0:T(8,128)(2,1)}', space=vmem, size = 0x8000, scoped, tag = 'scratch operand']
  %s0 = inlined_call_operand.hbm [shape: bf16[2,32,256], index: 0, kind: input, shape index: {}]
  %s1 = inlined_call_operand.vmem [shape: bf16[64,288], index: 1, kind: input, shape index: {}]
  %s2 = inlined_call_operand.vmem [shape: f32[64,1], index: 2, kind: input, shape index: {}]
  %s3 = inlined_call_operand.hbm [shape: bf16[2,32,288], index: 3, kind: input, shape index: {}]
  %s4 = inlined_call_operand.vmem [shape: f32[2,32,1], index: 4, kind: input, shape index: {}]
  %s5 = inlined_call_operand.vmem [shape: bf16[15,288], index: 5, kind: input, shape index: {}]
  %s6 = inlined_call_operand.vmem [shape: f32[15,1], index: 6, kind: input, shape index: {}]
  %s7 = inlined_call_operand.vmem [shape: bf16[12,288], index: 7, kind: input, shape index: {}]
  %s8 = inlined_call_operand.vmem [shape: f32[12,1], index: 8, kind: input, shape index: {}]
  %s9 = inlined_call_operand.vmem [shape: bf16[2,15,256], index: 9, kind: output, shape index: {0}]
  %s10 = inlined_call_operand.vmem [shape: bf16[2,12,256], index: 10, kind: output, shape index: {1}]
  %11 = xla_tuple %s9, %s10
  %s12 = sld [smem:[#allocation0]]
  $region85: #{tpu_custom_call.1} parent=0
    _
  %s14 = ssub.s32 1, %s12
  %s15 = scalar_select 0, %s14, %s12
  $region1: #{tpu_custom_call.1} parent=0
    #allocation3 [shape = 'u8[32768]{0}', space=vmem, size = 0x8000, scoped, tag = 'input window, operand 0']
    #allocation4 [shape = 's32[2]{0}', space=sflag, size = 0x8, scoped, tag = 'scoped memory for tpu_custom_call.1']
    #allocation5 [shape = 'u8[49152]{0}', space=vmem, size = 0xc000, scoped, tag = 'input window, operand 3, single buffered']
    #allocation6 [shape = 's32[1]{0}', space=sflag, size = 0x4, scoped, tag = 'scoped memory for tpu_custom_call.1']
    %16 = vsyncpa [#allocation4], 0
    %s17 = scalar_lea.sflag [#allocation4], 1
    %18 = vsyncpa %s17, 0
    %19 = vsyncpa [#allocation6], 0
    loop: start=0, step=1, limit=4
    $region2: #{tpu_custom_call.1} parent=1 // loop_pre_header
      _
    $region3: #{tpu_custom_call.1} parent=1 // loop_header
      %s21 = sphi 0, %s25
      %p22 = scmp.ge.s32.totalorder %s21, 4
      %s31 = sphi 0, %s33
      %s34 = sphi 0, %s31
      %s35 = sphi 0, %s34
      %s51 = sphi 0, %s35
      %s55 = sphi 0, %s55
      %s57 = sphi 0, %s55
      %s58 = sphi 0, %s57
      %s72 = sphi 0, %s58
      %s76 = sphi 0, %s76
      %s78 = sphi 0, %s76
      %s79 = sphi 0, %s78
      %s93 = sphi 0, %s79
      %s97 = sphi 0, %s97
      %s99 = sphi 0, %s97
      %s100 = sphi 0, %s99
      %s114 = sphi 0, %s100
      %s118 = sphi 0, %s118
      %s120 = sphi 0, %s118
      %s121 = sphi 0, %s120
      %s135 = sphi 0, %s121
      %s139 = sphi 0, %s139
      %s141 = sphi 0, %s139
      %s142 = sphi 0, %s141
      %s156 = sphi 0, %s142
      %s160 = sphi 0, %s160
      %s162 = sphi 0, %s160
      %s163 = sphi 0, %s162
      %s177 = sphi 0, %s163
      %s181 = sphi 0, %s181
      %s183 = sphi 0, %s181
      %s184 = sphi 0, %s183
      %s198 = sphi 0, %s184
      %s202 = sphi 0, %s202
      %s204 = sphi 0, %s202
      %s205 = sphi 0, %s204
      %s219 = sphi 0, %s205
      %s225 = sphi 0, %s227
      %s228 = sphi 0, %s225
      %s229 = sphi 0, %s228
      %s245 = sphi 0, %s229
      %s251 = sphi 0, %s253
      %s254 = sphi 0, %s251
      %s255 = sphi 0, %s254
      %s271 = sphi 0, %s255
    $region4: #{tpu_custom_call.1} parent=1 // loop_header_branch
      %24 = sbr.rel (%p22) target = $region8
    $region5: #{tpu_custom_call.1} parent=1 // loop_body
      %s26 = ssub.s32 %s21, 1
      %s27 = ssub.s32 %s21, 2
      %s28 = sadd.s32 %s21, 1
      %s29 = ssub.s32 %s21, %s28
      %p30 = scmp.eq.s32.totalorder %s29, 0
      %s32 = sadd.s32 %s31, 1
      %s33 = scalar_select %p30, %s31, %s32
      %p36 = pneg %p30
      %p37 = scmp.eq.s32.totalorder %s21, 1
      %p38 = por %p36, %p37
      %p39 = scmp.ne.s32.totalorder %s31, %s34
      %p40 = scmp.eq.s32.totalorder %s21, 0
      %p41 = por %p39, %p40
      %p42 = scmp.ne.s32.totalorder %s31, %s34
      %p43 = scmp.eq.s32.totalorder %s26, 1
      %p44 = por %p42, %p43
      %p45 = scmp.ne.s32.totalorder %s34, %s35
      %p46 = scmp.eq.s32.totalorder %s26, 0
      %p47 = por %p45, %p46
      %p48 = scmp.ne.s32.totalorder %s34, %s35
      %p49 = scmp.eq.s32.totalorder %s27, 1
      %p50 = por %p48, %p49
      %p52 = scmp.ne.s32.totalorder %s35, %s51
      %p53 = scmp.eq.s32.totalorder %s27, 0
      %p54 = por %p52, %p53
      %s56 = sadd.s32 %s55, 1
      %p59 = scmp.eq.s32.totalorder %s21, 1
      %p60 = scmp.ne.s32.totalorder %s55, %s57
      %p61 = scmp.eq.s32.totalorder %s21, 0
      %p62 = por %p60, %p61
      %p63 = scmp.ne.s32.totalorder %s55, %s57
      %p64 = scmp.eq.s32.totalorder %s26, 1
      %p65 = por %p63, %p64
      %p66 = scmp.ne.s32.totalorder %s57, %s58
      %p67 = scmp.eq.s32.totalorder %s26, 0
      %p68 = por %p66, %p67
      %p69 = scmp.ne.s32.totalorder %s57, %s58
      %p70 = scmp.eq.s32.totalorder %s27, 1
      %p71 = por %p69, %p70
      %p73 = scmp.ne.s32.totalorder %s58, %s72
      %p74 = scmp.eq.s32.totalorder %s27, 0
      %p75 = por %p73, %p74
      %s77 = sadd.s32 %s76, 1
      %p80 = scmp.eq.s32.totalorder %s21, 1
      %p81 = scmp.ne.s32.totalorder %s76, %s78
      %p82 = scmp.eq.s32.totalorder %s21, 0
      %p83 = por %p81, %p82
      %p84 = scmp.ne.s32.totalorder %s76, %s78
      %p85 = scmp.eq.s32.totalorder %s26, 1
      %p86 = por %p84, %p85
      %p87 = scmp.ne.s32.totalorder %s78, %s79
      %p88 = scmp.eq.s32.totalorder %s26, 0
      %p89 = por %p87, %p88
      %p90 = scmp.ne.s32.totalorder %s78, %s79
      %p91 = scmp.eq.s32.totalorder %s27, 1
      %p92 = por %p90, %p91
      %p94 = scmp.ne.s32.totalorder %s79, %s93
      %p95 = scmp.eq.s32.totalorder %s27, 0
      %p96 = por %p94, %p95
      %s98 = sadd.s32 %s97, 1
      %p101 = scmp.eq.s32.totalorder %s21, 1
      %p102 = scmp.ne.s32.totalorder %s97, %s99
      %p103 = scmp.eq.s32.totalorder %s21, 0
      %p104 = por %p102, %p103
      %p105 = scmp.ne.s32.totalorder %s97, %s99
      %p106 = scmp.eq.s32.totalorder %s26, 1
      %p107 = por %p105, %p106
      %p108 = scmp.ne.s32.totalorder %s99, %s100
      %p109 = scmp.eq.s32.totalorder %s26, 0
      %p110 = por %p108, %p109
      %p111 = scmp.ne.s32.totalorder %s99, %s100
      %p112 = scmp.eq.s32.totalorder %s27, 1
      %p113 = por %p111, %p112
      %p115 = scmp.ne.s32.totalorder %s100, %s114
      %p116 = scmp.eq.s32.totalorder %s27, 0
      %p117 = por %p115, %p116
      %s119 = sadd.s32 %s118, 1
      %p122 = scmp.eq.s32.totalorder %s21, 1
      %p123 = scmp.ne.s32.totalorder %s118, %s120
      %p124 = scmp.eq.s32.totalorder %s21, 0
      %p125 = por %p123, %p124
      %p126 = scmp.ne.s32.totalorder %s118, %s120
      %p127 = scmp.eq.s32.totalorder %s26, 1
      %p128 = por %p126, %p127
      %p129 = scmp.ne.s32.totalorder %s120, %s121
      %p130 = scmp.eq.s32.totalorder %s26, 0
      %p131 = por %p129, %p130
      %p132 = scmp.ne.s32.totalorder %s120, %s121
      %p133 = scmp.eq.s32.totalorder %s27, 1
      %p134 = por %p132, %p133
      %p136 = scmp.ne.s32.totalorder %s121, %s135
      %p137 = scmp.eq.s32.totalorder %s27, 0
      %p138 = por %p136, %p137
      %s140 = sadd.s32 %s139, 1
      %p143 = scmp.eq.s32.totalorder %s21, 1
      %p144 = scmp.ne.s32.totalorder %s139, %s141
      %p145 = scmp.eq.s32.totalorder %s21, 0
      %p146 = por %p144, %p145
      %p147 = scmp.ne.s32.totalorder %s139, %s141
      %p148 = scmp.eq.s32.totalorder %s26, 1
      %p149 = por %p147, %p148
      %p150 = scmp.ne.s32.totalorder %s141, %s142
      %p151 = scmp.eq.s32.totalorder %s26, 0
      %p152 = por %p150, %p151
      %p153 = scmp.ne.s32.totalorder %s141, %s142
      %p154 = scmp.eq.s32.totalorder %s27, 1
      %p155 = por %p153, %p154
      %p157 = scmp.ne.s32.totalorder %s142, %s156
      %p158 = scmp.eq.s32.totalorder %s27, 0
      %p159 = por %p157, %p158
      %s161 = sadd.s32 %s160, 1
      %p164 = scmp.eq.s32.totalorder %s21, 1
      %p165 = scmp.ne.s32.totalorder %s160, %s162
      %p166 = scmp.eq.s32.totalorder %s21, 0
      %p167 = por %p165, %p166
      %p168 = scmp.ne.s32.totalorder %s160, %s162
      %p169 = scmp.eq.s32.totalorder %s26, 1
      %p170 = por %p168, %p169
      %p171 = scmp.ne.s32.totalorder %s162, %s163
      %p172 = scmp.eq.s32.totalorder %s26, 0
      %p173 = por %p171, %p172
      %p174 = scmp.ne.s32.totalorder %s162, %s163
      %p175 = scmp.eq.s32.totalorder %s27, 1
      %p176 = por %p174, %p175
      %p178 = scmp.ne.s32.totalorder %s163, %s177
      %p179 = scmp.eq.s32.totalorder %s27, 0
      %p180 = por %p178, %p179
      %s182 = sadd.s32 %s181, 1
      %p185 = scmp.eq.s32.totalorder %s21, 1
      %p186 = scmp.ne.s32.totalorder %s181, %s183
      %p187 = scmp.eq.s32.totalorder %s21, 0
      %p188 = por %p186, %p187
      %p189 = scmp.ne.s32.totalorder %s181, %s183
      %p190 = scmp.eq.s32.totalorder %s26, 1
      %p191 = por %p189, %p190
      %p192 = scmp.ne.s32.totalorder %s183, %s184
      %p193 = scmp.eq.s32.totalorder %s26, 0
      %p194 = por %p192, %p193
      %p195 = scmp.ne.s32.totalorder %s183, %s184
      %p196 = scmp.eq.s32.totalorder %s27, 1
      %p197 = por %p195, %p196
      %p199 = scmp.ne.s32.totalorder %s184, %s198
      %p200 = scmp.eq.s32.totalorder %s27, 0
      %p201 = por %p199, %p200
      %s203 = sadd.s32 %s202, 1
      %p206 = scmp.eq.s32.totalorder %s21, 1
      %p207 = scmp.ne.s32.totalorder %s202, %s204
      %p208 = scmp.eq.s32.totalorder %s21, 0
      %p209 = por %p207, %p208
      %p210 = scmp.ne.s32.totalorder %s202, %s204
      %p211 = scmp.eq.s32.totalorder %s26, 1
      %p212 = por %p210, %p211
      %p213 = scmp.ne.s32.totalorder %s204, %s205
      %p214 = scmp.eq.s32.totalorder %s26, 0
      %p215 = por %p213, %p214
      %p216 = scmp.ne.s32.totalorder %s204, %s205
      %p217 = scmp.eq.s32.totalorder %s27, 1
      %p218 = por %p216, %p217
      %p220 = scmp.ne.s32.totalorder %s205, %s219
      %p221 = scmp.eq.s32.totalorder %s27, 0
      %p222 = por %p220, %p221
      %s223 = ssub.s32 %s21, %s28
      %p224 = scmp.eq.s32.totalorder %s223, 0
      %s226 = sadd.s32 %s225, 1
      %s227 = scalar_select %p224, %s225, %s226
      %p230 = pneg %p224
      %p231 = scmp.eq.s32.totalorder %s21, 1
      %p232 = por %p230, %p231
      %p233 = scmp.ne.s32.totalorder %s225, %s228
      %p234 = scmp.eq.s32.totalorder %s21, 0
      %p235 = por %p233, %p234
      %p236 = scmp.ne.s32.totalorder %s225, %s228
      %p237 = scmp.eq.s32.totalorder %s26, 1
      %p238 = por %p236, %p237
      %p239 = scmp.ne.s32.totalorder %s228, %s229
      %p240 = scmp.eq.s32.totalorder %s26, 0
      %p241 = por %p239, %p240
      %p242 = scmp.ne.s32.totalorder %s228, %s229
      %p243 = scmp.eq.s32.totalorder %s27, 1
      %p244 = por %p242, %p243
      %p246 = scmp.ne.s32.totalorder %s229, %s245
      %p247 = scmp.eq.s32.totalorder %s27, 0
      %p248 = por %p246, %p247
      %s249 = ssub.s32 %s21, %s28
      %p250 = scmp.eq.s32.totalorder %s249, 0
      %s252 = sadd.s32 %s251, 1
      %s253 = scalar_select %p250, %s251, %s252
      %p256 = pneg %p250
      %p257 = scmp.eq.s32.totalorder %s21, 1
      %p258 = por %p256, %p257
      %p259 = scmp.ne.s32.totalorder %s251, %s254
      %p260 = scmp.eq.s32.totalorder %s21, 0
      %p261 = por %p259, %p260
      %p262 = scmp.ne.s32.totalorder %s251, %s254
      %p263 = scmp.eq.s32.totalorder %s26, 1
      %p264 = por %p262, %p263
      %p265 = scmp.ne.s32.totalorder %s254, %s255
      %p266 = scmp.eq.s32.totalorder %s26, 0
      %p267 = por %p265, %p266
      %p268 = scmp.ne.s32.totalorder %s254, %s255
      %p269 = scmp.eq.s32.totalorder %s27, 1
      %p270 = por %p268, %p269
      %p272 = scmp.ne.s32.totalorder %s255, %s271
      %p273 = scmp.eq.s32.totalorder %s27, 0
      %p274 = por %p272, %p273
      %p275 = scmp.le.s32.totalorder 1, %s21
      %p276 = scmp.lt.s32.totalorder %s21, 3
      %p277 = pnand %p275, %p276
      %p278 = pneg %p277
      // Predicated region
      $region9: #{tpu_custom_call.1} parent=5 // pred_check
        _
      $region10: #{tpu_custom_call.1} parent=5 // pred_check_branch
        %280 = sbr.rel (%p277) target = $region12
      $region11: #{tpu_custom_call.1} parent=5 // pred_region
        %s281 = ssub.s32 %s21, 1
        // Predicated region
        $region13: #{tpu_custom_call.1} parent=11 // pred_check
          %p282 = pneg %p68
        $region14: #{tpu_custom_call.1} parent=11 // pred_check_branch
          %284 = sbr.rel (%p282) target = $region16
        $region15: #{tpu_custom_call.1} parent=11 // pred_region
          _
        $region16: #{tpu_custom_call.1} parent=11 // pred_fallthru
          _
        // Predicated region
        $region17: #{tpu_custom_call.1} parent=11 // pred_check
          %p285 = pneg %p89
        $region18: #{tpu_custom_call.1} parent=11 // pred_check_branch
          %287 = sbr.rel (%p285) target = $region20
        $region19: #{tpu_custom_call.1} parent=11 // pred_region
          _
        $region20: #{tpu_custom_call.1} parent=11 // pred_fallthru
          _
        // Predicated region
        $region21: #{tpu_custom_call.1} parent=11 // pred_check
          %p288 = pneg %p110
        $region22: #{tpu_custom_call.1} parent=11 // pred_check_branch
          %290 = sbr.rel (%p288) target = $region24
        $region23: #{tpu_custom_call.1} parent=11 // pred_region
          %292 = vsyncadd [#allocation6], 0
          %s293 = sshll.u32 %s3, 4
          %s294 = int_to_ptr.hbm [resolvable:$true] %s293
          %s295 = sshll.u32 [#allocation5], 4
          %s296 = int_to_ptr.vmem [resolvable:$true] %s295
          %301 = dma.hbm_to_vmem [thread:$0]  %s294, 1536, %s296, [#allocation6], 192, 192, 12
        $region24: #{tpu_custom_call.1} parent=11 // pred_fallthru
          _
        // Predicated region
        $region25: #{tpu_custom_call.1} parent=11 // pred_check
          %p302 = pneg %p131
        $region26: #{tpu_custom_call.1} parent=11 // pred_check_branch
          %304 = sbr.rel (%p302) target = $region28
        $region27: #{tpu_custom_call.1} parent=11 // pred_region
          _
        $region28: #{tpu_custom_call.1} parent=11 // pred_fallthru
          _
        // Predicated region
        $region29: #{tpu_custom_call.1} parent=11 // pred_check
          %p305 = pneg %p152
        $region30: #{tpu_custom_call.1} parent=11 // pred_check_branch
          %307 = sbr.rel (%p305) target = $region32
        $region31: #{tpu_custom_call.1} parent=11 // pred_region
          _
        $region32: #{tpu_custom_call.1} parent=11 // pred_fallthru
          _
        // Predicated region
        $region33: #{tpu_custom_call.1} parent=11 // pred_check
          %p308 = pneg %p173
        $region34: #{tpu_custom_call.1} parent=11 // pred_check_branch
          %310 = sbr.rel (%p308) target = $region36
        $region35: #{tpu_custom_call.1} parent=11 // pred_region
          _
        $region36: #{tpu_custom_call.1} parent=11 // pred_fallthru
          _
        // Predicated region
        $region37: #{tpu_custom_call.1} parent=11 // pred_check
          %p311 = pneg %p194
        $region38: #{tpu_custom_call.1} parent=11 // pred_check_branch
          %313 = sbr.rel (%p311) target = $region40
        $region39: #{tpu_custom_call.1} parent=11 // pred_region
          _
        $region40: #{tpu_custom_call.1} parent=11 // pred_fallthru
          _
        // Predicated region
        $region41: #{tpu_custom_call.1} parent=11 // pred_check
          %p314 = pneg %p215
        $region42: #{tpu_custom_call.1} parent=11 // pred_check_branch
          %316 = sbr.rel (%p314) target = $region44
        $region43: #{tpu_custom_call.1} parent=11 // pred_region
          _
        $region44: #{tpu_custom_call.1} parent=11 // pred_fallthru
          _
      $region12: #{tpu_custom_call.1} parent=5 // pred_fallthru
        _
      %p317 = scmp.lt.s32.totalorder %s21, 2
      // Predicated region
      $region45: #{tpu_custom_call.1} parent=5 // pred_check
        %p318 = pneg %p317
      $region46: #{tpu_custom_call.1} parent=5 // pred_check_branch
        %320 = sbr.rel (%p318) target = $region48
      $region47: #{tpu_custom_call.1} parent=5 // pred_region
        // Predicated region
        $region49: #{tpu_custom_call.1} parent=47 // pred_check
          %p321 = pneg %p41
        $region50: #{tpu_custom_call.1} parent=47 // pred_check_branch
          %323 = sbr.rel (%p321) target = $region52
        $region51: #{tpu_custom_call.1} parent=47 // pred_region
          %s324 = sand.u32 %s31, 1
          %s325 = scalar_lea.sflag [#allocation4], %s324
          %s326 = sand.u32 %s31, 1
          %s327 = smul.addr %s326, 32
          %s328 = scalar_lea.vmem [#allocation3], %s327
          %330 = vsyncadd %s325, 0
          %s331 = smul.addr %s21, 8
          %s332 = smul.addr %s331, 4
          %s333 = scalar_lea.hbm %s0, %s332
          %s334 = sshll.u32 %s333, 4
          %s335 = int_to_ptr.hbm [resolvable:$true] %s334
          %s336 = sshll.u32 %s328, 4
          %s337 = int_to_ptr.vmem [resolvable:$true] %s336
          %342 = dma.hbm_to_vmem [thread:$0]  %s335, 512, %s337, %s325, 128, 128, 8
        $region52: #{tpu_custom_call.1} parent=47 // pred_fallthru
          _
      $region48: #{tpu_custom_call.1} parent=5 // pred_fallthru
        _
      %p343 = scmp.le.s32.totalorder 1, %s21
      %p344 = scmp.lt.s32.totalorder %s21, 3
      %p345 = pnand %p343, %p344
      %p346 = pneg %p345
      // Predicated region
      $region53: #{tpu_custom_call.1} parent=5 // pred_check
        _
      $region54: #{tpu_custom_call.1} parent=5 // pred_check_branch
        %348 = sbr.rel (%p345) target = $region56
      $region55: #{tpu_custom_call.1} parent=5 // pred_region
        %s349 = ssub.s32 %s21, 1
        %s350 = sand.u32 %s34, 1
        %s351 = scalar_lea.sflag [#allocation4], %s350
        %s352 = sand.u32 %s34, 1
        %s353 = smul.addr %s352, 32
        %s354 = scalar_lea.vmem [#allocation3], %s353
        // Predicated region
        $region57: #{tpu_custom_call.1} parent=55 // pred_check
          %p355 = pneg %p47
        $region58: #{tpu_custom_call.1} parent=55 // pred_check_branch
          %357 = sbr.rel (%p355) target = $region60
        $region59: #{tpu_custom_call.1} parent=55 // pred_region
          %359 = dma.done %s351, 512
        $region60: #{tpu_custom_call.1} parent=55 // pred_fallthru
          _
        // Predicated region
        $region61: #{tpu_custom_call.1} parent=55 // pred_check
          %p360 = pneg %p110
        $region62: #{tpu_custom_call.1} parent=55 // pred_check_branch
          %362 = sbr.rel (%p360) target = $region64
        $region63: #{tpu_custom_call.1} parent=55 // pred_region
          %364 = dma.done [#allocation6], 1536
        $region64: #{tpu_custom_call.1} parent=55 // pred_fallthru
          _
        %s365 = sand.u32 %s34, 1
        %s366 = scalar_lea.sflag [#allocation4], %s365
        %s367 = sand.u32 %s34, 1
        %s368 = smul.addr %s367, 32
        %s369 = scalar_lea.vmem [#allocation3], %s368
        %p370 = pneg %p47
        %p371 = pneg %p44
        %p372 = pneg %p68
        %p373 = pneg %p65
        %p374 = pneg %p89
        %p375 = pneg %p86
        %p376 = pneg %p110
        %p377 = pneg %p107
        %p378 = pneg %p131
        %p379 = pneg %p128
        %p380 = pneg %p152
        %p381 = pneg %p149
        %p382 = pneg %p173
        %p383 = pneg %p170
        %p384 = pneg %p194
        %p385 = pneg %p191
        %p386 = pneg %p215
        %p387 = pneg %p212
        %p388 = pneg %p241
        %p389 = pneg %p238
        %p390 = scmp.lt.s32.totalorder %s26, 1
        %s391 = scalar_select %p390, %s26, 1
        %s392 = smul.addr %s391, 4
        %s393 = smul.addr %s392, 4
        %s394 = scalar_lea.vmem %s9, %s393
        %p395 = pneg %p267
        %p396 = pneg %p264
        %p397 = scmp.lt.s32.totalorder %s26, 1
        %s398 = scalar_select %p397, %s26, 1
        %s399 = smul.addr %s398, 4
        %s400 = smul.addr %s399, 4
        %s401 = scalar_lea.vmem %s10, %s400
        %p402 = scmp.lt.s32.totalorder %s26, 1
        %s403 = scalar_select %p402, %s26, 1
        %s404 = smul.addr %s403, 4
        %s405 = smul.addr %s404, 4
        %s406 = scalar_lea.vmem %s9, %s405
        %p407 = scmp.lt.s32.totalorder %s26, 1
        %s408 = scalar_select %p407, %s26, 1
        %s409 = smul.addr %s408, 4
        %s410 = smul.addr %s409, 4
        %s411 = scalar_lea.vmem %s10, %s410
        %v415 = vlaneseq
        %v416 = vand.u32 %v415, 127
        %v417 = vadd.s32 %v416, 128
        %vm418 = vcmp.lt.s32.totalorder %v416, 0
        %v419 = vsub.s32 0, %v416
        %v420 = vsel %vm418, %v419, %v416
        %v421 = vshrl.u32 %v420, 4
        %v422 = vand.u32 %v420, 15
        %v423 = vsub.s32 0, %v422
        %v424 = vsel %vm418, %v423, %v422
        %vm425 = vcmp.lt.s32.totalorder %v417, 0
        %v426 = vsub.s32 0, %v417
        %v427 = vsel %vm425, %v426, %v417
        %v428 = vshrl.u32 %v427, 4
        %v429 = vand.u32 %v427, 15
        %v430 = vsub.s32 0, %v429
        %v431 = vsel %vm425, %v430, %v429
        %vm432 = vcmp.ne.s32.totalorder %v424, 0
        %vm433 = vcmp.ne.s32.totalorder %v431, 0
        %vm434 = vcmp.lt.s32.totalorder %v424, 0
        %vm435 = vcmp.lt.s32.totalorder %v431, 0
        %vm436 = vmand %vm434, %vm432
        %vm437 = vmand %vm435, %vm433
        %v438 = vadd.s32 %v424, 16
        %v439 = vadd.s32 %v431, 16
        %v440 = vsel %vm436, %v438, %v424
        %v441 = vsel %vm437, %v439, %v431
        %vm442 = vcmp.ne.s32.totalorder %v440, 0
        %vm443 = vcmp.ne.s32.totalorder %v441, 0
        %vm444 = vcmp.ne.s32.totalorder %v440, 15
        %vm445 = vcmp.ne.s32.totalorder %v441, 15
        %446 = vst [vmem:[#allocation2] sm:$0xf] 0
        %447 = vst [vmem:[#allocation2 + $0x10] sm:$0xf] 0
        %448 = vst [vmem:[#allocation2 + $0x20] sm:$0xf] 0
        %449 = vst [vmem:[#allocation2 + $0x30] sm:$0xf] 0
        %450 = vst [vmem:[#allocation2 + $0xc] sm:$0xf] 0
        %451 = vst [vmem:[#allocation2 + $0x1c] sm:$0xf] 0
        %452 = vst [vmem:[#allocation2 + $0x2c] sm:$0xf] 0
        %453 = vst [vmem:[#allocation2 + $0x3c] sm:$0xf] 0
        %v454 = vld [vmem:[%s354] sm:$0xff]
        %v455 = vld [vmem:[%s354 + $0x8] sm:$0xff]
        %v456 = vld [vmem:[%s354 + $0x10] sm:$0xff]
        %v457 = vld [vmem:[%s354 + $0x18] sm:$0xff]
        %v458 = vld [vmem:[%s1] sm:$0xff]
        %v459 = vld [vmem:[%s1 + $0x8] sm:$0xf]
        %v460 = vld [vmem:[%s1 + $0xc] sm:$0xff]
        %v461 = vld [vmem:[%s1 + $0x14] sm:$0xf]
        %v462 = vld [vmem:[%s1 + $0x18] sm:$0xff]
        %v463 = vld [vmem:[%s1 + $0x20] sm:$0xf]
        %v464 = vld [vmem:[%s1 + $0x24] sm:$0xff]
        %v465 = vld [vmem:[%s1 + $0x2c] sm:$0xf]
        %v466 = vld [vmem:[%s1 + $0x30] sm:$0xff]
        %v467 = vld [vmem:[%s1 + $0x38] sm:$0xf]
        %v468 = vld [vmem:[%s1 + $0x3c] sm:$0xff]
        %v469 = vld [vmem:[%s1 + $0x44] sm:$0xf]
        %v470 = vld [vmem:[%s1 + $0x48] sm:$0xff]
        %v471 = vld [vmem:[%s1 + $0x50] sm:$0xf]
        %v472 = vld [vmem:[%s1 + $0x54] sm:$0xff]
        %v473 = vld [vmem:[%s1 + $0x5c] sm:$0xf]
        %v474 = vld [vmem:[%s2] sm:$0xff]
        %v475 = vld [vmem:[%s2 + $0x8] sm:$0xff]
        %v476 = vld [vmem:[%s2 + $0x10] sm:$0xff]
        %v477 = vld [vmem:[%s2 + $0x18] sm:$0xff]
        %v478 = vld [vmem:[%s2 + $0x20] sm:$0xff]
        %v479 = vld [vmem:[%s2 + $0x28] sm:$0xff]
        %v480 = vld [vmem:[%s2 + $0x30] sm:$0xff]
        %v481 = vld [vmem:[%s2 + $0x38] sm:$0xff]
        %482 = vst [vmem:[#allocation2 + $0x4] sm:$0xff] %v454
        %483 = vst [vmem:[#allocation2 + $0x14] sm:$0xff] %v455
        %484 = vst [vmem:[#allocation2 + $0x24] sm:$0xff] %v456
        %485 = vst [vmem:[#allocation2 + $0x34] sm:$0xff] %v457
        %v486 = vld [vmem:[#allocation2] sm:$0xff]
        %v487 = vld [vmem:[#allocation2 + $0x8] sm:$0xf]
        %v488 = vld [vmem:[#allocation2 + $0x10] sm:$0xff]
        %v489 = vld [vmem:[#allocation2 + $0x18] sm:$0xf]
        %v490 = vld [vmem:[#allocation2 + $0x20] sm:$0xff]
        %v491 = vld [vmem:[#allocation2 + $0x28] sm:$0xf]
        %v492 = vld [vmem:[#allocation2 + $0x30] sm:$0xff]
        %v493 = vld [vmem:[#allocation2 + $0x38] sm:$0xf]
        %v494 = vsel %vm442, 1, 0
        %v495 = vsel %vm443, 1, 0
        %vm496 = vcmp.eq.s32.totalorder %v494, 1
        %vm497 = vcmp.eq.s32.totalorder %v495, 1
        %vm498 = vmpackc.low %vm497, %vm496
        %v499 = vsel %vm498, 65537, 0
        %500 = vrot.lane.b32.xlu0 %v499, 111
        %v501 = vpop.permute.xlu0 %500
        %v502 = vrot.slane %v501, 4
        %vm503 = vcmask 908288
        %v504 = vsel %vm503, %v502, %v501
        %v505 = vunpack.c.l.b16 %v504
        %v506 = vunpack.c.h.b16 %v504
        %v507 = vunpack.c.l.b16 0
        %v508 = vunpack.c.h.b16 0
        %vm509 = vcmp.ne.s32.totalorder %v505, %v507
        %vm510 = vcmp.ne.s32.totalorder %v506, %v508
        %vm511 = vmpackc.low %vm510, %vm509
        %v512 = vunpack.c.l.b16 %v502
        %v513 = vunpack.c.h.b16 %v502
        %v514 = vunpack.c.l.b16 0
        %v515 = vunpack.c.h.b16 0
        %vm516 = vcmp.ne.s32.totalorder %v512, %v514
        %vm517 = vcmp.ne.s32.totalorder %v513, %v515
        %vm518 = vmpackc.low %vm517, %vm516
        %v519 = vsel %vm511, %v486, 0
        %v520 = vsel %vm518, %v487, 0
        %v521 = vsel %vm511, %v488, 0
        %v522 = vsel %vm518, %v489, 0
        %v523 = vsel %vm511, %v490, 0
        %v524 = vsel %vm518, %v491, 0
        %v525 = vsel %vm511, %v492, 0
        %v526 = vsel %vm518, %v493, 0
        %v527 = vsel %vm444, 1, 0
        %v528 = vsel %vm445, 1, 0
        %vm529 = vcmp.eq.s32.totalorder %v527, 1
        %vm530 = vcmp.eq.s32.totalorder %v528, 1
        %vm531 = vmpackc.low %vm530, %vm529
        %v532 = vsel %vm531, 65537, 0
        %533 = vrot.lane.b32.xlu0 %v532, 113
        %v534 = vpop.permute.xlu0 %533
        %v535 = vrot.slane %v534, 4
        %vm536 = vcmask 924672
        %v537 = vsel %vm536, %v535, %v534
        %v538 = vunpack.c.l.b16 %v537
        %v539 = vunpack.c.h.b16 %v537
        %v540 = vunpack.c.l.b16 0
        %v541 = vunpack.c.h.b16 0
        %vm542 = vcmp.ne.s32.totalorder %v538, %v540
        %vm543 = vcmp.ne.s32.totalorder %v539, %v541
        %vm544 = vmpackc.low %vm543, %vm542
        %v545 = vunpack.c.l.b16 %v535
        %v546 = vunpack.c.h.b16 %v535
        %v547 = vunpack.c.l.b16 0
        %v548 = vunpack.c.h.b16 0
        %vm549 = vcmp.ne.s32.totalorder %v545, %v547
        %vm550 = vcmp.ne.s32.totalorder %v546, %v548
        %vm551 = vmpackc.low %vm550, %vm549
        %v552 = vsel %vm544, %v486, 0
        %v553 = vsel %vm551, %v487, 0
        %v554 = vsel %vm544, %v488, 0
        %v555 = vsel %vm551, %v489, 0
        %v556 = vsel %vm544, %v490, 0
        %v557 = vsel %vm551, %v491, 0
        %v558 = vsel %vm544, %v492, 0
        %v559 = vsel %vm551, %v493, 0
        %560 = vrot.lane.b32.xlu0 %v499, 127
        %v561 = vpop.permute.xlu0 %560
        %v562 = vrot.slane %v561, 4
        %vm563 = vcmask 1039360
        %v564 = vsel %vm563, %v562, %v561
        %v565 = vunpack.c.l.b16 %v564
        %v566 = vunpack.c.h.b16 %v564
        %v567 = vunpack.c.l.b16 0
        %v568 = vunpack.c.h.b16 0
        %vm569 = vcmp.ne.s32.totalorder %v565, %v567
        %vm570 = vcmp.ne.s32.totalorder %v566, %v568
        %vm571 = vmpackc.low %vm570, %vm569
        %v572 = vunpack.c.l.b16 %v562
        %v573 = vunpack.c.h.b16 %v562
        %v574 = vunpack.c.l.b16 0
        %v575 = vunpack.c.h.b16 0
        %vm576 = vcmp.ne.s32.totalorder %v572, %v574
        %vm577 = vcmp.ne.s32.totalorder %v573, %v575
        %vm578 = vmpackc.low %vm577, %vm576
        %v579 = vsel %vm571, %v486, 0
        %v580 = vsel %vm578, %v487, 0
        %v581 = vsel %vm571, %v488, 0
        %v582 = vsel %vm578, %v489, 0
        %v583 = vsel %vm571, %v490, 0
        %v584 = vsel %vm578, %v491, 0
        %v585 = vsel %vm571, %v492, 0
        %v586 = vsel %vm578, %v493, 0
        %v587 = vld [vmem:[#allocation2 + $0x4] sm:$0xff]
        %v588 = vld [vmem:[#allocation2 + $0x14] sm:$0xff]
        %v589 = vld [vmem:[#allocation2 + $0x24] sm:$0xff]
        %v590 = vld [vmem:[#allocation2 + $0x34] sm:$0xff]
        %v591 = vld [vmem:[#allocation2 + $0x4] sm:$0xff]
        %v592 = vld [vmem:[#allocation2 + $0xc] sm:$0xf]
        %v593 = vld [vmem:[#allocation2 + $0x14] sm:$0xff]
        %v594 = vld [vmem:[#allocation2 + $0x1c] sm:$0xf]
        %v595 = vld [vmem:[#allocation2 + $0x24] sm:$0xff]
        %v596 = vld [vmem:[#allocation2 + $0x2c] sm:$0xf]
        %v597 = vld [vmem:[#allocation2 + $0x34] sm:$0xff]
        %v598 = vld [vmem:[#allocation2 + $0x3c] sm:$0xf]
        %599 = vrot.lane.b32.xlu0 %v532, 1
        %v600 = vpop.permute.xlu0 %599
        %v601 = vrot.slane %v600, 4
        %vm602 = vcmask 7168
        %v603 = vsel %vm602, %v601, %v600
        %v604 = vunpack.c.l.b16 %v603
        %v605 = vunpack.c.h.b16 %v603
        %v606 = vunpack.c.l.b16 0
        %v607 = vunpack.c.h.b16 0
        %vm608 = vcmp.ne.s32.totalorder %v604, %v606
        %vm609 = vcmp.ne.s32.totalorder %v605, %v607
        %vm610 = vmpackc.low %vm609, %vm608
        %v611 = vunpack.c.l.b16 %v601
        %v612 = vunpack.c.h.b16 %v601
        %v613 = vunpack.c.l.b16 0
        %v614 = vunpack.c.h.b16 0
        %vm615 = vcmp.ne.s32.totalorder %v611, %v613
        %vm616 = vcmp.ne.s32.totalorder %v612, %v614
        %vm617 = vmpackc.low %vm616, %vm615
        %v618 = vsel %vm610, %v591, 0
        %v619 = vsel %vm617, %v592, 0
        %v620 = vsel %vm610, %v593, 0
        %v621 = vsel %vm617, %v594, 0
        %v622 = vsel %vm610, %v595, 0
        %v623 = vsel %vm617, %v596, 0
        %v624 = vsel %vm610, %v597, 0
        %v625 = vsel %vm617, %v598, 0
        %626 = vrot.lane.b32.xlu0 %v499, 15
        %v627 = vpop.permute.xlu0 %626
        %v628 = vrot.slane %v627, 4
        %vm629 = vcmask 121856
        %v630 = vsel %vm629, %v628, %v627
        %v631 = vunpack.c.l.b16 %v630
        %v632 = vunpack.c.h.b16 %v630
        %v633 = vunpack.c.l.b16 0
        %v634 = vunpack.c.h.b16 0
        %vm635 = vcmp.ne.s32.totalorder %v631, %v633
        %vm636 = vcmp.ne.s32.totalorder %v632, %v634
        %vm637 = vmpackc.low %vm636, %vm635
        %v638 = vunpack.c.l.b16 %v628
        %v639 = vunpack.c.h.b16 %v628
        %v640 = vunpack.c.l.b16 0
        %v641 = vunpack.c.h.b16 0
        %vm642 = vcmp.ne.s32.totalorder %v638, %v640
        %vm643 = vcmp.ne.s32.totalorder %v639, %v641
        %vm644 = vmpackc.low %vm643, %vm642
        %v645 = vsel %vm637, %v591, 0
        %v646 = vsel %vm644, %v592, 0
        %v647 = vsel %vm637, %v593, 0
        %v648 = vsel %vm644, %v594, 0
        %v649 = vsel %vm637, %v595, 0
        %v650 = vsel %vm644, %v596, 0
        %v651 = vsel %vm637, %v597, 0
        %v652 = vsel %vm644, %v598, 0
        %653 = vrot.lane.b32.xlu0 %v532, 17
        %v654 = vpop.permute.xlu0 %653
        %v655 = vrot.slane %v654, 4
        %vm656 = vcmask 138240
        %v657 = vsel %vm656, %v655, %v654
        %v658 = vunpack.c.l.b16 %v657
        %v659 = vunpack.c.h.b16 %v657
        %v660 = vunpack.c.l.b16 0
        %v661 = vunpack.c.h.b16 0
        %vm662 = vcmp.ne.s32.totalorder %v658, %v660
        %vm663 = vcmp.ne.s32.totalorder %v659, %v661
        %vm664 = vmpackc.low %vm663, %vm662
        %v665 = vunpack.c.l.b16 %v655
        %v666 = vunpack.c.h.b16 %v655
        %v667 = vunpack.c.l.b16 0
        %v668 = vunpack.c.h.b16 0
        %vm669 = vcmp.ne.s32.totalorder %v665, %v667
        %vm670 = vcmp.ne.s32.totalorder %v666, %v668
        %vm671 = vmpackc.low %vm670, %vm669
        %v672 = vsel %vm664, %v591, 0
        %v673 = vsel %vm671, %v592, 0
        %v674 = vsel %vm664, %v593, 0
        %v675 = vsel %vm671, %v594, 0
        %v676 = vsel %vm664, %v595, 0
        %v677 = vsel %vm671, %v596, 0
        %v678 = vsel %vm664, %v597, 0
        %v679 = vsel %vm671, %v598, 0
        %v688 = vunpack.c.l.b16 %v519
        %v689 = vunpack.c.h.b16 %v519
        %v690 = vunpack.c.l.b16 %v520
        %v691 = vunpack.c.l.b16 %v521
        %v692 = vunpack.c.h.b16 %v521
        %v693 = vunpack.c.l.b16 %v522
        %v694 = vunpack.c.l.b16 %v523
        %v695 = vunpack.c.h.b16 %v523
        %v696 = vunpack.c.l.b16 %v524
        %v697 = vunpack.c.l.b16 %v525
        %v698 = vunpack.c.h.b16 %v525
        %v699 = vunpack.c.l.b16 %v526
        %v700 = vpack.c.b16 %v691, %v688
        %v701 = vpack.c.b16 %v692, %v689
        %v702 = vpack.c.b16 %v693, %v690
        %v703 = vpack.c.b16 %v697, %v694
        %v704 = vpack.c.b16 %v698, %v695
        %v705 = vpack.c.b16 %v699, %v696
        %v714 = vunpack.c.l.b16 %v486
        %v715 = vunpack.c.h.b16 %v486
        %v716 = vunpack.c.l.b16 %v487
        %v717 = vunpack.c.l.b16 %v488
        %v718 = vunpack.c.h.b16 %v488
        %v719 = vunpack.c.l.b16 %v489
        %v720 = vunpack.c.l.b16 %v490
        %v721 = vunpack.c.h.b16 %v490
        %v722 = vunpack.c.l.b16 %v491
        %v723 = vunpack.c.l.b16 %v492
        %v724 = vunpack.c.h.b16 %v492
        %v725 = vunpack.c.l.b16 %v493
        %v726 = vpack.c.b16 %v717, %v714
        %v727 = vpack.c.b16 %v718, %v715
        %v728 = vpack.c.b16 %v719, %v716
        %v729 = vpack.c.b16 %v723, %v720
        %v730 = vpack.c.b16 %v724, %v721
        %v731 = vpack.c.b16 %v725, %v722
        %732 = vrot.lane.b32.xlu0 %v726, 127
        %v733 = vpop.permute.xlu0 %732
        %734 = vrot.lane.b32.xlu0 %v727, 127
        %v735 = vpop.permute.xlu0 %734
        %736 = vrot.lane.b32.xlu0 %v728, 127
        %v737 = vpop.permute.xlu0 %736
        %738 = vrot.lane.b32.xlu0 %v729, 127
        %v739 = vpop.permute.xlu0 %738
        %740 = vrot.lane.b32.xlu0 %v730, 127
        %v741 = vpop.permute.xlu0 %740
        %742 = vrot.lane.b32.xlu0 %v731, 127
        %v743 = vpop.permute.xlu0 %742
        %v744 = vsel %vm563, %v733, %v735
        %v745 = vsel %vm563, %v735, %v737
        %v746 = vsel %vm563, %v739, %v741
        %v747 = vsel %vm563, %v741, %v743
        %v756 = vunpack.c.l.b16 %v552
        %v757 = vunpack.c.h.b16 %v552
        %v758 = vunpack.c.l.b16 %v553
        %v759 = vunpack.c.l.b16 %v554
        %v760 = vunpack.c.h.b16 %v554
        %v761 = vunpack.c.l.b16 %v555
        %v762 = vunpack.c.l.b16 %v556
        %v763 = vunpack.c.h.b16 %v556
        %v764 = vunpack.c.l.b16 %v557
        %v765 = vunpack.c.l.b16 %v558
        %v766 = vunpack.c.h.b16 %v558
        %v767 = vunpack.c.l.b16 %v559
        %v768 = vpack.c.b16 %v759, %v756
        %v769 = vpack.c.b16 %v760, %v757
        %v770 = vpack.c.b16 %v761, %v758
        %v771 = vpack.c.b16 %v765, %v762
        %v772 = vpack.c.b16 %v766, %v763
        %v773 = vpack.c.b16 %v767, %v764
        %774 = vrot.lane.b32.xlu0 %v768, 126
        %v775 = vpop.permute.xlu0 %774
        %776 = vrot.lane.b32.xlu0 %v769, 126
        %v777 = vpop.permute.xlu0 %776
        %778 = vrot.lane.b32.xlu0 %v770, 126
        %v779 = vpop.permute.xlu0 %778
        %780 = vrot.lane.b32.xlu0 %v771, 126
        %v781 = vpop.permute.xlu0 %780
        %782 = vrot.lane.b32.xlu0 %v772, 126
        %v783 = vpop.permute.xlu0 %782
        %784 = vrot.lane.b32.xlu0 %v773, 126
        %v785 = vpop.permute.xlu0 %784
        %vm786 = vcmask 1031168
        %v787 = vsel %vm786, %v775, %v777
        %v788 = vsel %vm786, %v777, %v779
        %v789 = vsel %vm786, %v781, %v783
        %v790 = vsel %vm786, %v783, %v785
        %v799 = vunpack.c.l.b16 %v579
        %v800 = vunpack.c.h.b16 %v579
        %v801 = vunpack.c.l.b16 %v580
        %v802 = vunpack.c.l.b16 %v581
        %v803 = vunpack.c.h.b16 %v581
        %v804 = vunpack.c.l.b16 %v582
        %v805 = vunpack.c.l.b16 %v583
        %v806 = vunpack.c.h.b16 %v583
        %v807 = vunpack.c.l.b16 %v584
        %v808 = vunpack.c.l.b16 %v585
        %v809 = vunpack.c.h.b16 %v585
        %v810 = vunpack.c.l.b16 %v586
        %v811 = vpack.c.b16 %v802, %v799
        %v812 = vpack.c.b16 %v803, %v800
        %v813 = vpack.c.b16 %v804, %v801
        %v814 = vpack.c.b16 %v808, %v805
        %v815 = vpack.c.b16 %v809, %v806
        %v816 = vpack.c.b16 %v810, %v807
        %817 = vrot.lane.b32.xlu0 %v811, 112
        %v818 = vpop.permute.xlu0 %817
        %819 = vrot.lane.b32.xlu0 %v812, 112
        %v820 = vpop.permute.xlu0 %819
        %821 = vrot.lane.b32.xlu0 %v813, 112
        %v822 = vpop.permute.xlu0 %821
        %823 = vrot.lane.b32.xlu0 %v814, 112
        %v824 = vpop.permute.xlu0 %823
        %825 = vrot.lane.b32.xlu0 %v815, 112
        %v826 = vpop.permute.xlu0 %825
        %827 = vrot.lane.b32.xlu0 %v816, 112
        %v828 = vpop.permute.xlu0 %827
        %vm829 = vcmask 916480
        %v830 = vsel %vm829, %v818, %v820
        %v831 = vsel %vm829, %v820, %v822
        %v832 = vsel %vm829, %v824, %v826
        %v833 = vsel %vm829, %v826, %v828
        %v838 = vunpack.c.l.b16 %v587
        %v839 = vunpack.c.h.b16 %v587
        %v840 = vunpack.c.l.b16 %v588
        %v841 = vunpack.c.h.b16 %v588
        %v842 = vunpack.c.l.b16 %v589
        %v843 = vunpack.c.h.b16 %v589
        %v844 = vunpack.c.l.b16 %v590
        %v845 = vunpack.c.h.b16 %v590
        %v846 = vpack.c.b16 %v840, %v838
        %v847 = vpack.c.b16 %v841, %v839
        %v848 = vpack.c.b16 %v844, %v842
        %v849 = vpack.c.b16 %v845, %v843
        %850 = vrot.lane.b32.xlu0 %v846, 111
        %v851 = vpop.permute.xlu0 %850
        %852 = vrot.lane.b32.xlu0 %v847, 111
        %v853 = vpop.permute.xlu0 %852
        %854 = vrot.lane.b32.xlu0 %v848, 111
        %v855 = vpop.permute.xlu0 %854
        %856 = vrot.lane.b32.xlu0 %v849, 111
        %v857 = vpop.permute.xlu0 %856
        %v858 = vsel %vm503, %v851, %v853
        %v859 = vsel %vm503, %v855, %v857
        %v868 = vunpack.c.l.b16 %v618
        %v869 = vunpack.c.h.b16 %v618
        %v870 = vunpack.c.l.b16 %v619
        %v871 = vunpack.c.l.b16 %v620
        %v872 = vunpack.c.h.b16 %v620
        %v873 = vunpack.c.l.b16 %v621
        %v874 = vunpack.c.l.b16 %v622
        %v875 = vunpack.c.h.b16 %v622
        %v876 = vunpack.c.l.b16 %v623
        %v877 = vunpack.c.l.b16 %v624
        %v878 = vunpack.c.h.b16 %v624
        %v879 = vunpack.c.l.b16 %v625
        %v880 = vpack.c.b16 %v871, %v868
        %v881 = vpack.c.b16 %v872, %v869
        %v882 = vpack.c.b16 %v873, %v870
        %v883 = vpack.c.b16 %v877, %v874
        %v884 = vpack.c.b16 %v878, %v875
        %v885 = vpack.c.b16 %v879, %v876
        %886 = vrot.lane.b32.xlu0 %v880, 110
        %v887 = vpop.permute.xlu0 %886
        %888 = vrot.lane.b32.xlu0 %v881, 110
        %v889 = vpop.permute.xlu0 %888
        %890 = vrot.lane.b32.xlu0 %v882, 110
        %v891 = vpop.permute.xlu0 %890
        %892 = vrot.lane.b32.xlu0 %v883, 110
        %v893 = vpop.permute.xlu0 %892
        %894 = vrot.lane.b32.xlu0 %v884, 110
        %v895 = vpop.permute.xlu0 %894
        %896 = vrot.lane.b32.xlu0 %v885, 110
        %v897 = vpop.permute.xlu0 %896
        %vm898 = vcmask 900096
        %v899 = vsel %vm898, %v887, %v889
        %v900 = vsel %vm898, %v889, %v891
        %v901 = vsel %vm898, %v893, %v895
        %v902 = vsel %vm898, %v895, %v897
        %v911 = vunpack.c.l.b16 %v645
        %v912 = vunpack.c.h.b16 %v645
        %v913 = vunpack.c.l.b16 %v646
        %v914 = vunpack.c.l.b16 %v647
        %v915 = vunpack.c.h.b16 %v647
        %v916 = vunpack.c.l.b16 %v648
        %v917 = vunpack.c.l.b16 %v649
        %v918 = vunpack.c.h.b16 %v649
        %v919 = vunpack.c.l.b16 %v650
        %v920 = vunpack.c.l.b16 %v651
        %v921 = vunpack.c.h.b16 %v651
        %v922 = vunpack.c.l.b16 %v652
        %v923 = vpack.c.b16 %v914, %v911
        %v924 = vpack.c.b16 %v915, %v912
        %v925 = vpack.c.b16 %v916, %v913
        %v926 = vpack.c.b16 %v920, %v917
        %v927 = vpack.c.b16 %v921, %v918
        %v928 = vpack.c.b16 %v922, %v919
        %929 = vrot.lane.b32.xlu0 %v923, 96
        %v930 = vpop.permute.xlu0 %929
        %931 = vrot.lane.b32.xlu0 %v924, 96
        %v932 = vpop.permute.xlu0 %931
        %933 = vrot.lane.b32.xlu0 %v925, 96
        %v934 = vpop.permute.xlu0 %933
        %935 = vrot.lane.b32.xlu0 %v926, 96
        %v936 = vpop.permute.xlu0 %935
        %937 = vrot.lane.b32.xlu0 %v927, 96
        %v938 = vpop.permute.xlu0 %937
        %939 = vrot.lane.b32.xlu0 %v928, 96
        %v940 = vpop.permute.xlu0 %939
        %vm941 = vcmask 785408
        %v942 = vsel %vm941, %v930, %v932
        %v943 = vsel %vm941, %v932, %v934
        %v944 = vsel %vm941, %v936, %v938
        %v945 = vsel %vm941, %v938, %v940
        %v954 = vunpack.c.l.b16 %v591
        %v955 = vunpack.c.h.b16 %v591
        %v956 = vunpack.c.l.b16 %v592
        %v957 = vunpack.c.l.b16 %v593
        %v958 = vunpack.c.h.b16 %v593
        %v959 = vunpack.c.l.b16 %v594
        %v960 = vunpack.c.l.b16 %v595
        %v961 = vunpack.c.h.b16 %v595
        %v962 = vunpack.c.l.b16 %v596
        %v963 = vunpack.c.l.b16 %v597
        %v964 = vunpack.c.h.b16 %v597
        %v965 = vunpack.c.l.b16 %v598
        %v966 = vpack.c.b16 %v957, %v954
        %v967 = vpack.c.b16 %v958, %v955
        %v968 = vpack.c.b16 %v959, %v956
        %v969 = vpack.c.b16 %v963, %v960
        %v970 = vpack.c.b16 %v964, %v961
        %v971 = vpack.c.b16 %v965, %v962
        %972 = vrot.lane.b32.xlu0 %v966, 95
        %v973 = vpop.permute.xlu0 %972
        %974 = vrot.lane.b32.xlu0 %v967, 95
        %v975 = vpop.permute.xlu0 %974
        %976 = vrot.lane.b32.xlu0 %v968, 95
        %v977 = vpop.permute.xlu0 %976
        %978 = vrot.lane.b32.xlu0 %v969, 95
        %v979 = vpop.permute.xlu0 %978
        %980 = vrot.lane.b32.xlu0 %v970, 95
        %v981 = vpop.permute.xlu0 %980
        %982 = vrot.lane.b32.xlu0 %v971, 95
        %v983 = vpop.permute.xlu0 %982
        %vm984 = vcmask 777216
        %v985 = vsel %vm984, %v973, %v975
        %v986 = vsel %vm984, %v975, %v977
        %v987 = vsel %vm984, %v979, %v981
        %v988 = vsel %vm984, %v981, %v983
        %v997 = vunpack.c.l.b16 %v672
        %v998 = vunpack.c.h.b16 %v672
        %v999 = vunpack.c.l.b16 %v673
        %v1000 = vunpack.c.l.b16 %v674
        %v1001 = vunpack.c.h.b16 %v674
        %v1002 = vunpack.c.l.b16 %v675
        %v1003 = vunpack.c.l.b16 %v676
        %v1004 = vunpack.c.h.b16 %v676
        %v1005 = vunpack.c.l.b16 %v677
        %v1006 = vunpack.c.l.b16 %v678
        %v1007 = vunpack.c.h.b16 %v678
        %v1008 = vunpack.c.l.b16 %v679
        %v1009 = vpack.c.b16 %v1000, %v997
        %v1010 = vpack.c.b16 %v1001, %v998
        %v1011 = vpack.c.b16 %v1002, %v999
        %v1012 = vpack.c.b16 %v1006, %v1003
        %v1013 = vpack.c.b16 %v1007, %v1004
        %v1014 = vpack.c.b16 %v1008, %v1005
        %1015 = vrot.lane.b32.xlu0 %v1009, 94
        %v1016 = vpop.permute.xlu0 %1015
        %1017 = vrot.lane.b32.xlu0 %v1010, 94
        %v1018 = vpop.permute.xlu0 %1017
        %1019 = vrot.lane.b32.xlu0 %v1011, 94
        %v1020 = vpop.permute.xlu0 %1019
        %1021 = vrot.lane.b32.xlu0 %v1012, 94
        %v1022 = vpop.permute.xlu0 %1021
        %1023 = vrot.lane.b32.xlu0 %v1013, 94
        %v1024 = vpop.permute.xlu0 %1023
        %1025 = vrot.lane.b32.xlu0 %v1014, 94
        %v1026 = vpop.permute.xlu0 %1025
        %vm1027 = vcmask 769024
        %v1028 = vsel %vm1027, %v1016, %v1018
        %v1029 = vsel %vm1027, %v1018, %v1020
        %v1030 = vsel %vm1027, %v1022, %v1024
        %v1031 = vsel %vm1027, %v1024, %v1026
        %1033 = vset.pattern.permute.xlu0 0
        %1034 = vperm.xlu0 %1033, %v474
        %v1035 = vpop.permute.xlu0 %1034
        %1038 = vset.pattern.permute.xlu0 0
        %1039 = vperm.xlu0 %1038, %v475
        %v1040 = vpop.permute.xlu0 %1039
        %1043 = vset.pattern.permute.xlu0 0
        %1044 = vperm.xlu0 %1043, %v476
        %v1045 = vpop.permute.xlu0 %1044
        %1048 = vset.pattern.permute.xlu0 0
        %1049 = vperm.xlu0 %1048, %v477
        %v1050 = vpop.permute.xlu0 %1049
        %1053 = vset.pattern.permute.xlu0 0
        %1054 = vperm.xlu0 %1053, %v478
        %v1055 = vpop.permute.xlu0 %1054
        %1058 = vset.pattern.permute.xlu0 0
        %1059 = vperm.xlu0 %1058, %v479
        %v1060 = vpop.permute.xlu0 %1059
        %1063 = vset.pattern.permute.xlu0 0
        %1064 = vperm.xlu0 %1063, %v480
        %v1065 = vpop.permute.xlu0 %1064
        %1068 = vset.pattern.permute.xlu0 0
        %1069 = vperm.xlu0 %1068, %v481
        %v1070 = vpop.permute.xlu0 %1069
        %v1088 = vunpack.c.l.b16 %v458
        %v1089 = vunpack.c.h.b16 %v458
        %v1090 = vunpack.c.l.b16 %v459
        %v1091 = vunpack.c.l.b16 %v460
        %v1092 = vunpack.c.h.b16 %v460
        %v1093 = vunpack.c.l.b16 %v461
        %v1094 = vunpack.c.l.b16 %v462
        %v1095 = vunpack.c.h.b16 %v462
        %v1096 = vunpack.c.l.b16 %v463
        %v1097 = vunpack.c.l.b16 %v464
        %v1098 = vunpack.c.h.b16 %v464
        %v1099 = vunpack.c.l.b16 %v465
        %v1100 = vunpack.c.l.b16 %v466
        %v1101 = vunpack.c.h.b16 %v466
        %v1102 = vunpack.c.l.b16 %v467
        %v1103 = vunpack.c.l.b16 %v468
        %v1104 = vunpack.c.h.b16 %v468
        %v1105 = vunpack.c.l.b16 %v469
        %v1106 = vunpack.c.l.b16 %v470
        %v1107 = vunpack.c.h.b16 %v470
        %v1108 = vunpack.c.l.b16 %v471
        %v1109 = vunpack.c.l.b16 %v472
        %v1110 = vunpack.c.h.b16 %v472
        %v1111 = vunpack.c.l.b16 %v473
        %v1112 = vpack.c.b16 %v1091, %v1088
        %v1113 = vpack.c.b16 %v1092, %v1089
        %v1114 = vpack.c.b16 %v1093, %v1090
        %v1115 = vpack.c.b16 %v1097, %v1094
        %v1116 = vpack.c.b16 %v1098, %v1095
        %v1117 = vpack.c.b16 %v1099, %v1096
        %v1118 = vpack.c.b16 %v1103, %v1100
        %v1119 = vpack.c.b16 %v1104, %v1101
        %v1120 = vpack.c.b16 %v1105, %v1102
        %v1121 = vpack.c.b16 %v1109, %v1106
        %v1122 = vpack.c.b16 %v1110, %v1107
        %v1123 = vpack.c.b16 %v1111, %v1108
        %1132 = vrot.lane.b32.xlu0 %v700, 17
        %v1133 = vpop.permute.xlu0 %1132
        %1134 = vrot.lane.b32.xlu0 %v701, 17
        %v1135 = vpop.permute.xlu0 %1134
        %1136 = vrot.lane.b32.xlu0 %v702, 17
        %v1137 = vpop.permute.xlu0 %1136
        %1138 = vrot.lane.b32.xlu0 %v703, 17
        %v1139 = vpop.permute.xlu0 %1138
        %1140 = vrot.lane.b32.xlu0 %v704, 17
        %v1141 = vpop.permute.xlu0 %1140
        %1142 = vrot.lane.b32.xlu0 %v705, 17
        %v1143 = vpop.permute.xlu0 %1142
        %1144 = vrot.lane.b32.xlu0 %v744, 17
        %v1145 = vpop.permute.xlu0 %1144
        %1146 = vrot.lane.b32.xlu0 %v745, 17
        %v1147 = vpop.permute.xlu0 %1146
        %1148 = vrot.lane.b32.xlu0 %v737, 17
        %v1149 = vpop.permute.xlu0 %1148
        %1150 = vrot.lane.b32.xlu0 %v746, 17
        %v1151 = vpop.permute.xlu0 %1150
        %1152 = vrot.lane.b32.xlu0 %v747, 17
        %v1153 = vpop.permute.xlu0 %1152
        %1154 = vrot.lane.b32.xlu0 %v743, 17
        %v1155 = vpop.permute.xlu0 %1154
        %1156 = vrot.lane.b32.xlu0 %v787, 17
        %v1157 = vpop.permute.xlu0 %1156
        %1158 = vrot.lane.b32.xlu0 %v788, 17
        %v1159 = vpop.permute.xlu0 %1158
        %1160 = vrot.lane.b32.xlu0 %v779, 17
        %v1161 = vpop.permute.xlu0 %1160
        %1162 = vrot.lane.b32.xlu0 %v789, 17
        %v1163 = vpop.permute.xlu0 %1162
        %1164 = vrot.lane.b32.xlu0 %v790, 17
        %v1165 = vpop.permute.xlu0 %1164
        %1166 = vrot.lane.b32.xlu0 %v785, 17
        %v1167 = vpop.permute.xlu0 %1166
        %1168 = vrot.lane.b32.xlu0 %v830, 17
        %v1169 = vpop.permute.xlu0 %1168
        %1170 = vrot.lane.b32.xlu0 %v831, 17
        %v1171 = vpop.permute.xlu0 %1170
        %1172 = vrot.lane.b32.xlu0 %v822, 17
        %v1173 = vpop.permute.xlu0 %1172
        %1174 = vrot.lane.b32.xlu0 %v832, 17
        %v1175 = vpop.permute.xlu0 %1174
        %1176 = vrot.lane.b32.xlu0 %v833, 17
        %v1177 = vpop.permute.xlu0 %1176
        %1178 = vrot.lane.b32.xlu0 %v828, 17
        %v1179 = vpop.permute.xlu0 %1178
        %1180 = vrot.lane.b32.xlu0 %v851, 17
        %v1181 = vpop.permute.xlu0 %1180
        %1182 = vrot.lane.b32.xlu0 %v858, 17
        %v1183 = vpop.permute.xlu0 %1182
        %1184 = vrot.lane.b32.xlu0 %v853, 17
        %v1185 = vpop.permute.xlu0 %1184
        %1186 = vrot.lane.b32.xlu0 %v855, 17
        %v1187 = vpop.permute.xlu0 %1186
        %1188 = vrot.lane.b32.xlu0 %v859, 17
        %v1189 = vpop.permute.xlu0 %1188
        %1190 = vrot.lane.b32.xlu0 %v857, 17
        %v1191 = vpop.permute.xlu0 %1190
        %1192 = vrot.lane.b32.xlu0 %v887, 17
        %v1193 = vpop.permute.xlu0 %1192
        %1194 = vrot.lane.b32.xlu0 %v899, 17
        %v1195 = vpop.permute.xlu0 %1194
        %1196 = vrot.lane.b32.xlu0 %v900, 17
        %v1197 = vpop.permute.xlu0 %1196
        %1198 = vrot.lane.b32.xlu0 %v893, 17
        %v1199 = vpop.permute.xlu0 %1198
        %1200 = vrot.lane.b32.xlu0 %v901, 17
        %v1201 = vpop.permute.xlu0 %1200
        %1202 = vrot.lane.b32.xlu0 %v902, 17
        %v1203 = vpop.permute.xlu0 %1202
        %1204 = vrot.lane.b32.xlu0 %v930, 17
        %v1205 = vpop.permute.xlu0 %1204
        %1206 = vrot.lane.b32.xlu0 %v942, 17
        %v1207 = vpop.permute.xlu0 %1206
        %1208 = vrot.lane.b32.xlu0 %v943, 17
        %v1209 = vpop.permute.xlu0 %1208
        %1210 = vrot.lane.b32.xlu0 %v936, 17
        %v1211 = vpop.permute.xlu0 %1210
        %1212 = vrot.lane.b32.xlu0 %v944, 17
        %v1213 = vpop.permute.xlu0 %1212
        %1214 = vrot.lane.b32.xlu0 %v945, 17
        %v1215 = vpop.permute.xlu0 %1214
        %1216 = vrot.lane.b32.xlu0 %v973, 17
        %v1217 = vpop.permute.xlu0 %1216
        %1218 = vrot.lane.b32.xlu0 %v985, 17
        %v1219 = vpop.permute.xlu0 %1218
        %1220 = vrot.lane.b32.xlu0 %v986, 17
        %v1221 = vpop.permute.xlu0 %1220
        %1222 = vrot.lane.b32.xlu0 %v979, 17
        %v1223 = vpop.permute.xlu0 %1222
        %1224 = vrot.lane.b32.xlu0 %v987, 17
        %v1225 = vpop.permute.xlu0 %1224
        %1226 = vrot.lane.b32.xlu0 %v988, 17
        %v1227 = vpop.permute.xlu0 %1226
        %1228 = vrot.lane.b32.xlu0 %v1016, 17
        %v1229 = vpop.permute.xlu0 %1228
        %1230 = vrot.lane.b32.xlu0 %v1028, 17
        %v1231 = vpop.permute.xlu0 %1230
        %1232 = vrot.lane.b32.xlu0 %v1029, 17
        %v1233 = vpop.permute.xlu0 %1232
        %1234 = vrot.lane.b32.xlu0 %v1022, 17
        %v1235 = vpop.permute.xlu0 %1234
        %1236 = vrot.lane.b32.xlu0 %v1030, 17
        %v1237 = vpop.permute.xlu0 %1236
        %1238 = vrot.lane.b32.xlu0 %v1031, 17
        %v1239 = vpop.permute.xlu0 %1238
        %v1240 = vsel %vm656, %v1133, %v1135
        %v1241 = vsel %vm656, %v1135, %v1137
        %v1242 = vsel %vm656, %v1139, %v1141
        %v1243 = vsel %vm656, %v1141, %v1143
        %v1244 = vsel %vm656, %v1145, %v1147
        %v1245 = vsel %vm656, %v1147, %v1149
        %v1246 = vsel %vm656, %v1151, %v1153
        %v1247 = vsel %vm656, %v1153, %v1155
        %v1248 = vsel %vm656, %v1157, %v1159
        %v1249 = vsel %vm656, %v1159, %v1161
        %v1250 = vsel %vm656, %v1163, %v1165
        %v1251 = vsel %vm656, %v1165, %v1167
        %v1252 = vsel %vm656, %v1169, %v1171
        %v1253 = vsel %vm656, %v1171, %v1173
        %v1254 = vsel %vm656, %v1175, %v1177
        %v1255 = vsel %vm656, %v1177, %v1179
        %v1256 = vsel %vm656, %v1181, %v1183
        %v1257 = vsel %vm656, %v1183, %v1185
        %v1258 = vsel %vm656, %v1187, %v1189
        %v1259 = vsel %vm656, %v1189, %v1191
        %v1260 = vsel %vm656, %v1193, %v1195
        %v1261 = vsel %vm656, %v1195, %v1197
        %v1262 = vsel %vm656, %v1199, %v1201
        %v1263 = vsel %vm656, %v1201, %v1203
        %v1264 = vsel %vm656, %v1205, %v1207
        %v1265 = vsel %vm656, %v1207, %v1209
        %v1266 = vsel %vm656, %v1211, %v1213
        %v1267 = vsel %vm656, %v1213, %v1215
        %v1268 = vsel %vm656, %v1217, %v1219
        %v1269 = vsel %vm656, %v1219, %v1221
        %v1270 = vsel %vm656, %v1223, %v1225
        %v1271 = vsel %vm656, %v1225, %v1227
        %v1272 = vsel %vm656, %v1229, %v1231
        %v1273 = vsel %vm656, %v1231, %v1233
        %v1274 = vsel %vm656, %v1235, %v1237
        %v1275 = vsel %vm656, %v1237, %v1239
        %vm1312 = vcmask 261120
        %v1314 = vsel %vm1312, %v1114, 0
        %v1317 = vsel %vm1312, %v1117, 0
        %v1320 = vsel %vm1312, %v1120, 0
        %v1323 = vsel %vm1312, %v1123, 0
        %1325 = vmatpush.bf16.msra.mxu0 %v1254
        %1326 = vmatpush.bf16.msra.mxu0 %v1252
        %1327 = vmatpush.bf16.msra.mxu0 %v1250
        %1328 = vmatpush.bf16.msra.mxu0 %v1248
        %1329 = vmatpush.bf16.msra.mxu0 %v1246
        %1330 = vmatpush.bf16.msra.mxu0 %v1244
        %1331 = vmatpush.bf16.msra.mxu0 %v1242
        %1332 = vmatpush.bf16.msra.mxu0 %v1240
        %1333 = vmatmul.bf16.gmra.mxu0 %v1112
        %v1334 = vpop.f32.mrf.mxu0
        %v1335 = vadd.f32 %v1035, %v1334
        %v1336 = vpop.f32.mrf.mxu0
        %v1337 = vadd.f32 %v1040, %v1336
        %1338 = vmatmul.bf16.gmra.mxu0 %v1115
        %v1339 = vpop.f32.mrf.mxu0
        %v1340 = vadd.f32 %v1045, %v1339
        %v1341 = vpop.f32.mrf.mxu0
        %v1342 = vadd.f32 %v1050, %v1341
        %1343 = vmatmul.bf16.gmra.mxu0 %v1118
        %v1344 = vpop.f32.mrf.mxu0
        %v1345 = vadd.f32 %v1055, %v1344
        %v1346 = vpop.f32.mrf.mxu0
        %v1347 = vadd.f32 %v1060, %v1346
        %1348 = vmatmul.bf16.gmra.mxu0 %v1121
        %v1349 = vpop.f32.mrf.mxu0
        %v1350 = vadd.f32 %v1065, %v1349
        %v1351 = vpop.f32.mrf.mxu0
        %v1352 = vadd.f32 %v1070, %v1351
        %1353 = vdwg.mxu0
        %1354 = vmatpush.bf16.msra.mxu0 %v1270
        %1355 = vmatpush.bf16.msra.mxu0 %v1268
        %1356 = vmatpush.bf16.msra.mxu0 %v1266
        %1357 = vmatpush.bf16.msra.mxu0 %v1264
        %1358 = vmatpush.bf16.msra.mxu0 %v1262
        %1359 = vmatpush.bf16.msra.mxu0 %v1260
        %1360 = vmatpush.bf16.msra.mxu0 %v1258
        %1361 = vmatpush.bf16.msra.mxu0 %v1256
        %1362 = vmatmul.bf16.gmra.mxu0 %v1113
        %v1363 = vpop.f32.mrf.mxu0
        %v1364 = vadd.f32 %v1335, %v1363
        %v1365 = vpop.f32.mrf.mxu0
        %v1366 = vadd.f32 %v1337, %v1365
        %1367 = vmatmul.bf16.gmra.mxu0 %v1116
        %v1368 = vpop.f32.mrf.mxu0
        %v1369 = vadd.f32 %v1340, %v1368
        %v1370 = vpop.f32.mrf.mxu0
        %v1371 = vadd.f32 %v1342, %v1370
        %1372 = vmatmul.bf16.gmra.mxu0 %v1119
        %v1373 = vpop.f32.mrf.mxu0
        %v1374 = vadd.f32 %v1345, %v1373
        %v1375 = vpop.f32.mrf.mxu0
        %v1376 = vadd.f32 %v1347, %v1375
        %1377 = vmatmul.bf16.gmra.mxu0 %v1122
        %v1378 = vpop.f32.mrf.mxu0
        %v1379 = vadd.f32 %v1350, %v1378
        %v1380 = vpop.f32.mrf.mxu0
        %v1381 = vadd.f32 %v1352, %v1380
        %1382 = vdwg.mxu0
        %1383 = vmatpush.bf16.msra.mxu0 0
        %1384 = vmatpush.bf16.msra.mxu0 0
        %1385 = vmatpush.bf16.msra.mxu0 0
        %1386 = vmatpush.bf16.msra.mxu0 0
        %1387 = vmatpush.bf16.msra.mxu0 0
        %1388 = vmatpush.bf16.msra.mxu0 0
        %1389 = vmatpush.bf16.msra.mxu0 %v1274
        %1390 = vmatpush.bf16.msra.mxu0 %v1272
        %1391 = vmatmul.bf16.gmra.mxu0 %v1314
        %v1392 = vpop.f32.mrf.mxu0
        %v1393 = vadd.f32 %v1364, %v1392
        %v1394 = vpop.f32.mrf.mxu0
        %v1395 = vadd.f32 %v1366, %v1394
        %1396 = vmatmul.bf16.gmra.mxu0 %v1317
        %v1397 = vpop.f32.mrf.mxu0
        %v1398 = vadd.f32 %v1369, %v1397
        %v1399 = vpop.f32.mrf.mxu0
        %v1400 = vadd.f32 %v1371, %v1399
        %1401 = vmatmul.bf16.gmra.mxu0 %v1320
        %v1402 = vpop.f32.mrf.mxu0
        %v1403 = vadd.f32 %v1374, %v1402
        %v1404 = vpop.f32.mrf.mxu0
        %v1405 = vadd.f32 %v1376, %v1404
        %1406 = vmatmul.bf16.gmra.mxu0 %v1323
        %v1407 = vpop.f32.mrf.mxu0
        %v1408 = vadd.f32 %v1379, %v1407
        %v1409 = vpop.f32.mrf.mxu0
        %v1410 = vadd.f32 %v1381, %v1409
        %1411 = vdwg.mxu0
        %1412 = vmatpush.bf16.msra.mxu0 %v1255
        %1413 = vmatpush.bf16.msra.mxu0 %v1253
        %1414 = vmatpush.bf16.msra.mxu0 %v1251
        %1415 = vmatpush.bf16.msra.mxu0 %v1249
        %1416 = vmatpush.bf16.msra.mxu0 %v1247
        %1417 = vmatpush.bf16.msra.mxu0 %v1245
        %1418 = vmatpush.bf16.msra.mxu0 %v1243
        %1419 = vmatpush.bf16.msra.mxu0 %v1241
        %1420 = vmatmul.bf16.gmra.mxu0 %v1112
        %v1421 = vpop.f32.mrf.mxu0
        %v1422 = vadd.f32 %v1035, %v1421
        %v1423 = vpop.f32.mrf.mxu0
        %v1424 = vadd.f32 %v1040, %v1423
        %1425 = vmatmul.bf16.gmra.mxu0 %v1115
        %v1426 = vpop.f32.mrf.mxu0
        %v1427 = vadd.f32 %v1045, %v1426
        %v1428 = vpop.f32.mrf.mxu0
        %v1429 = vadd.f32 %v1050, %v1428
        %1430 = vmatmul.bf16.gmra.mxu0 %v1118
        %v1431 = vpop.f32.mrf.mxu0
        %v1432 = vadd.f32 %v1055, %v1431
        %v1433 = vpop.f32.mrf.mxu0
        %v1434 = vadd.f32 %v1060, %v1433
        %1435 = vmatmul.bf16.gmra.mxu0 %v1121
        %v1436 = vpop.f32.mrf.mxu0
        %v1437 = vadd.f32 %v1065, %v1436
        %v1438 = vpop.f32.mrf.mxu0
        %v1439 = vadd.f32 %v1070, %v1438
        %1440 = vdwg.mxu0
        %1441 = vmatpush.bf16.msra.mxu0 %v1271
        %1442 = vmatpush.bf16.msra.mxu0 %v1269
        %1443 = vmatpush.bf16.msra.mxu0 %v1267
        %1444 = vmatpush.bf16.msra.mxu0 %v1265
        %1445 = vmatpush.bf16.msra.mxu0 %v1263
        %1446 = vmatpush.bf16.msra.mxu0 %v1261
        %1447 = vmatpush.bf16.msra.mxu0 %v1259
        %1448 = vmatpush.bf16.msra.mxu0 %v1257
        %1449 = vmatmul.bf16.gmra.mxu0 %v1113
        %v1450 = vpop.f32.mrf.mxu0
        %v1451 = vadd.f32 %v1422, %v1450
        %v1452 = vpop.f32.mrf.mxu0
        %v1453 = vadd.f32 %v1424, %v1452
        %1454 = vmatmul.bf16.gmra.mxu0 %v1116
        %v1455 = vpop.f32.mrf.mxu0
        %v1456 = vadd.f32 %v1427, %v1455
        %v1457 = vpop.f32.mrf.mxu0
        %v1458 = vadd.f32 %v1429, %v1457
        %1459 = vmatmul.bf16.gmra.mxu0 %v1119
        %v1460 = vpop.f32.mrf.mxu0
        %v1461 = vadd.f32 %v1432, %v1460
        %v1462 = vpop.f32.mrf.mxu0
        %v1463 = vadd.f32 %v1434, %v1462
        %1464 = vmatmul.bf16.gmra.mxu0 %v1122
        %v1465 = vpop.f32.mrf.mxu0
        %v1466 = vadd.f32 %v1437, %v1465
        %v1467 = vpop.f32.mrf.mxu0
        %v1468 = vadd.f32 %v1439, %v1467
        %1469 = vdwg.mxu0
        %1470 = vmatpush.bf16.msra.mxu0 0
        %1471 = vmatpush.bf16.msra.mxu0 0
        %1472 = vmatpush.bf16.msra.mxu0 0
        %1473 = vmatpush.bf16.msra.mxu0 0
        %1474 = vmatpush.bf16.msra.mxu0 0
        %1475 = vmatpush.bf16.msra.mxu0 0
        %1476 = vmatpush.bf16.msra.mxu0 %v1275
        %1477 = vmatpush.bf16.msra.mxu0 %v1273
        %1478 = vmatmul.bf16.gmra.mxu0 %v1314
        %v1479 = vpop.f32.mrf.mxu0
        %v1480 = vadd.f32 %v1451, %v1479
        %v1481 = vpop.f32.mrf.mxu0
        %v1482 = vadd.f32 %v1453, %v1481
        %1483 = vmatmul.bf16.gmra.mxu0 %v1317
        %v1484 = vpop.f32.mrf.mxu0
        %v1485 = vadd.f32 %v1456, %v1484
        %v1486 = vpop.f32.mrf.mxu0
        %v1487 = vadd.f32 %v1458, %v1486
        %1488 = vmatmul.bf16.gmra.mxu0 %v1320
        %v1489 = vpop.f32.mrf.mxu0
        %v1490 = vadd.f32 %v1461, %v1489
        %v1491 = vpop.f32.mrf.mxu0
        %v1492 = vadd.f32 %v1463, %v1491
        %1493 = vmatmul.bf16.gmra.mxu0 %v1323
        %v1494 = vpop.f32.mrf.mxu0
        %v1495 = vadd.f32 %v1466, %v1494
        %v1496 = vpop.f32.mrf.mxu0
        %v1497 = vadd.f32 %v1468, %v1496
        %1498 = vdwg.mxu0
        %v1499 = vmax.f32 %v1393, 0.0
        %v1500 = vmax.f32 %v1480, 0.0
        %v1501 = vmax.f32 %v1395, 0.0
        %v1502 = vmax.f32 %v1482, 0.0
        %v1503 = vmax.f32 %v1398, 0.0
        %v1504 = vmax.f32 %v1485, 0.0
        %v1505 = vmax.f32 %v1400, 0.0
        %v1506 = vmax.f32 %v1487, 0.0
        %v1507 = vmax.f32 %v1403, 0.0
        %v1508 = vmax.f32 %v1490, 0.0
        %v1509 = vmax.f32 %v1405, 0.0
        %v1510 = vmax.f32 %v1492, 0.0
        %v1511 = vmax.f32 %v1408, 0.0
        %v1512 = vmax.f32 %v1495, 0.0
        %v1513 = vmax.f32 %v1410, 0.0
        %v1514 = vmax.f32 %v1497, 0.0
        %v1515 = vpack.c.bf16 %v1500, %v1499
        %v1516 = vpack.c.bf16 %v1502, %v1501
        %v1517 = vpack.c.bf16 %v1504, %v1503
        %v1518 = vpack.c.bf16 %v1506, %v1505
        %v1519 = vpack.c.bf16 %v1508, %v1507
        %v1520 = vpack.c.bf16 %v1510, %v1509
        %v1521 = vpack.c.bf16 %v1512, %v1511
        %v1522 = vpack.c.bf16 %v1514, %v1513
        %v1523 = vld [vmem:[#allocation5] sm:$0xff]
        %v1524 = vld [vmem:[#allocation5 + $0x8] sm:$0xf]
        %v1525 = vld [vmem:[#allocation5 + $0xc] sm:$0xff]
        %v1526 = vld [vmem:[#allocation5 + $0x14] sm:$0xf]
        %v1527 = vld [vmem:[#allocation5 + $0x18] sm:$0xff]
        %v1528 = vld [vmem:[#allocation5 + $0x20] sm:$0xf]
        %v1529 = vld [vmem:[#allocation5 + $0x24] sm:$0xff]
        %v1530 = vld [vmem:[#allocation5 + $0x2c] sm:$0xf]
        %v1531 = vld [vmem:[%s4] sm:$0xff]
        %v1532 = vld [vmem:[%s4 + $0x8] sm:$0xff]
        %v1533 = vld [vmem:[%s4 + $0x10] sm:$0xff]
        %v1534 = vld [vmem:[%s4 + $0x18] sm:$0xff]
        %1535 = vst [vmem:[#allocation2 + $0x4] sm:$0xff] %v1515
        %1536 = vst [vmem:[#allocation2 + $0x14] sm:$0xff] %v1516
        %1537 = vst [vmem:[#allocation2 + $0x24] sm:$0xff] %v1517
        %1538 = vst [vmem:[#allocation2 + $0x34] sm:$0xff] %v1518
        %v1539 = vld [vmem:[#allocation2] sm:$0xff]
        %v1540 = vld [vmem:[#allocation2 + $0x8] sm:$0xf]
        %v1541 = vld [vmem:[#allocation2 + $0x10] sm:$0xff]
        %v1542 = vld [vmem:[#allocation2 + $0x18] sm:$0xf]
        %v1543 = vld [vmem:[#allocation2 + $0x20] sm:$0xff]
        %v1544 = vld [vmem:[#allocation2 + $0x28] sm:$0xf]
        %v1545 = vld [vmem:[#allocation2 + $0x30] sm:$0xff]
        %v1546 = vld [vmem:[#allocation2 + $0x38] sm:$0xf]
        %v1547 = vsel %vm511, %v1539, 0
        %v1548 = vsel %vm518, %v1540, 0
        %v1549 = vsel %vm511, %v1541, 0
        %v1550 = vsel %vm518, %v1542, 0
        %v1551 = vsel %vm511, %v1543, 0
        %v1552 = vsel %vm518, %v1544, 0
        %v1553 = vsel %vm511, %v1545, 0
        %v1554 = vsel %vm518, %v1546, 0
        %v1555 = vsel %vm544, %v1539, 0
        %v1556 = vsel %vm551, %v1540, 0
        %v1557 = vsel %vm544, %v1541, 0
        %v1558 = vsel %vm551, %v1542, 0
        %v1559 = vsel %vm544, %v1543, 0
        %v1560 = vsel %vm551, %v1544, 0
        %v1561 = vsel %vm544, %v1545, 0
        %v1562 = vsel %vm551, %v1546, 0
        %v1563 = vsel %vm571, %v1539, 0
        %v1564 = vsel %vm578, %v1540, 0
        %v1565 = vsel %vm571, %v1541, 0
        %v1566 = vsel %vm578, %v1542, 0
        %v1567 = vsel %vm571, %v1543, 0
        %v1568 = vsel %vm578, %v1544, 0
        %v1569 = vsel %vm571, %v1545, 0
        %v1570 = vsel %vm578, %v1546, 0
        %v1571 = vld [vmem:[#allocation2 + $0x4] sm:$0xff]
        %v1572 = vld [vmem:[#allocation2 + $0x14] sm:$0xff]
        %v1573 = vld [vmem:[#allocation2 + $0x24] sm:$0xff]
        %v1574 = vld [vmem:[#allocation2 + $0x34] sm:$0xff]
        %v1575 = vld [vmem:[#allocation2 + $0x4] sm:$0xff]
        %v1576 = vld [vmem:[#allocation2 + $0xc] sm:$0xf]
        %v1577 = vld [vmem:[#allocation2 + $0x14] sm:$0xff]
        %v1578 = vld [vmem:[#allocation2 + $0x1c] sm:$0xf]
        %v1579 = vld [vmem:[#allocation2 + $0x24] sm:$0xff]
        %v1580 = vld [vmem:[#allocation2 + $0x2c] sm:$0xf]
        %v1581 = vld [vmem:[#allocation2 + $0x34] sm:$0xff]
        %v1582 = vld [vmem:[#allocation2 + $0x3c] sm:$0xf]
        %v1583 = vsel %vm610, %v1575, 0
        %v1584 = vsel %vm617, %v1576, 0
        %v1585 = vsel %vm610, %v1577, 0
        %v1586 = vsel %vm617, %v1578, 0
        %v1587 = vsel %vm610, %v1579, 0
        %v1588 = vsel %vm617, %v1580, 0
        %v1589 = vsel %vm610, %v1581, 0
        %v1590 = vsel %vm617, %v1582, 0
        %v1591 = vsel %vm637, %v1575, 0
        %v1592 = vsel %vm644, %v1576, 0
        %v1593 = vsel %vm637, %v1577, 0
        %v1594 = vsel %vm644, %v1578, 0
        %v1595 = vsel %vm637, %v1579, 0
        %v1596 = vsel %vm644, %v1580, 0
        %v1597 = vsel %vm637, %v1581, 0
        %v1598 = vsel %vm644, %v1582, 0
        %v1599 = vsel %vm664, %v1575, 0
        %v1600 = vsel %vm671, %v1576, 0
        %v1601 = vsel %vm664, %v1577, 0
        %v1602 = vsel %vm671, %v1578, 0
        %v1603 = vsel %vm664, %v1579, 0
        %v1604 = vsel %vm671, %v1580, 0
        %v1605 = vsel %vm664, %v1581, 0
        %v1606 = vsel %vm671, %v1582, 0
        %v1615 = vunpack.c.l.b16 %v1547
        %v1616 = vunpack.c.h.b16 %v1547
        %v1617 = vunpack.c.l.b16 %v1548
        %v1618 = vunpack.c.l.b16 %v1549
        %v1619 = vunpack.c.h.b16 %v1549
        %v1620 = vunpack.c.l.b16 %v1550
        %v1621 = vunpack.c.l.b16 %v1551
        %v1622 = vunpack.c.h.b16 %v1551
        %v1623 = vunpack.c.l.b16 %v1552
        %v1624 = vunpack.c.l.b16 %v1553
        %v1625 = vunpack.c.h.b16 %v1553
        %v1626 = vunpack.c.l.b16 %v1554
        %v1627 = vpack.c.b16 %v1618, %v1615
        %v1628 = vpack.c.b16 %v1619, %v1616
        %v1629 = vpack.c.b16 %v1620, %v1617
        %v1630 = vpack.c.b16 %v1624, %v1621
        %v1631 = vpack.c.b16 %v1625, %v1622
        %v1632 = vpack.c.b16 %v1626, %v1623
        %v1641 = vunpack.c.l.b16 %v1539
        %v1642 = vunpack.c.h.b16 %v1539
        %v1643 = vunpack.c.l.b16 %v1540
        %v1644 = vunpack.c.l.b16 %v1541
        %v1645 = vunpack.c.h.b16 %v1541
        %v1646 = vunpack.c.l.b16 %v1542
        %v1647 = vunpack.c.l.b16 %v1543
        %v1648 = vunpack.c.h.b16 %v1543
        %v1649 = vunpack.c.l.b16 %v1544
        %v1650 = vunpack.c.l.b16 %v1545
        %v1651 = vunpack.c.h.b16 %v1545
        %v1652 = vunpack.c.l.b16 %v1546
        %v1653 = vpack.c.b16 %v1644, %v1641
        %v1654 = vpack.c.b16 %v1645, %v1642
        %v1655 = vpack.c.b16 %v1646, %v1643
        %v1656 = vpack.c.b16 %v1650, %v1647
        %v1657 = vpack.c.b16 %v1651, %v1648
        %v1658 = vpack.c.b16 %v1652, %v1649
        %1659 = vrot.lane.b32.xlu0 %v1653, 127
        %v1660 = vpop.permute.xlu0 %1659
        %1661 = vrot.lane.b32.xlu0 %v1654, 127
        %v1662 = vpop.permute.xlu0 %1661
        %1663 = vrot.lane.b32.xlu0 %v1655, 127
        %v1664 = vpop.permute.xlu0 %1663
        %1665 = vrot.lane.b32.xlu0 %v1656, 127
        %v1666 = vpop.permute.xlu0 %1665
        %1667 = vrot.lane.b32.xlu0 %v1657, 127
        %v1668 = vpop.permute.xlu0 %1667
        %1669 = vrot.lane.b32.xlu0 %v1658, 127
        %v1670 = vpop.permute.xlu0 %1669
        %v1671 = vsel %vm563, %v1660, %v1662
        %v1672 = vsel %vm563, %v1662, %v1664
        %v1673 = vsel %vm563, %v1666, %v1668
        %v1674 = vsel %vm563, %v1668, %v1670
        %v1683 = vunpack.c.l.b16 %v1555
        %v1684 = vunpack.c.h.b16 %v1555
        %v1685 = vunpack.c.l.b16 %v1556
        %v1686 = vunpack.c.l.b16 %v1557
        %v1687 = vunpack.c.h.b16 %v1557
        %v1688 = vunpack.c.l.b16 %v1558
        %v1689 = vunpack.c.l.b16 %v1559
        %v1690 = vunpack.c.h.b16 %v1559
        %v1691 = vunpack.c.l.b16 %v1560
        %v1692 = vunpack.c.l.b16 %v1561
        %v1693 = vunpack.c.h.b16 %v1561
        %v1694 = vunpack.c.l.b16 %v1562
        %v1695 = vpack.c.b16 %v1686, %v1683
        %v1696 = vpack.c.b16 %v1687, %v1684
        %v1697 = vpack.c.b16 %v1688, %v1685
        %v1698 = vpack.c.b16 %v1692, %v1689
        %v1699 = vpack.c.b16 %v1693, %v1690
        %v1700 = vpack.c.b16 %v1694, %v1691
        %1701 = vrot.lane.b32.xlu0 %v1695, 126
        %v1702 = vpop.permute.xlu0 %1701
        %1703 = vrot.lane.b32.xlu0 %v1696, 126
        %v1704 = vpop.permute.xlu0 %1703
        %1705 = vrot.lane.b32.xlu0 %v1697, 126
        %v1706 = vpop.permute.xlu0 %1705
        %1707 = vrot.lane.b32.xlu0 %v1698, 126
        %v1708 = vpop.permute.xlu0 %1707
        %1709 = vrot.lane.b32.xlu0 %v1699, 126
        %v1710 = vpop.permute.xlu0 %1709
        %1711 = vrot.lane.b32.xlu0 %v1700, 126
        %v1712 = vpop.permute.xlu0 %1711
        %v1713 = vsel %vm786, %v1702, %v1704
        %v1714 = vsel %vm786, %v1704, %v1706
        %v1715 = vsel %vm786, %v1708, %v1710
        %v1716 = vsel %vm786, %v1710, %v1712
        %v1725 = vunpack.c.l.b16 %v1563
        %v1726 = vunpack.c.h.b16 %v1563
        %v1727 = vunpack.c.l.b16 %v1564
        %v1728 = vunpack.c.l.b16 %v1565
        %v1729 = vunpack.c.h.b16 %v1565
        %v1730 = vunpack.c.l.b16 %v1566
        %v1731 = vunpack.c.l.b16 %v1567
        %v1732 = vunpack.c.h.b16 %v1567
        %v1733 = vunpack.c.l.b16 %v1568
        %v1734 = vunpack.c.l.b16 %v1569
        %v1735 = vunpack.c.h.b16 %v1569
        %v1736 = vunpack.c.l.b16 %v1570
        %v1737 = vpack.c.b16 %v1728, %v1725
        %v1738 = vpack.c.b16 %v1729, %v1726
        %v1739 = vpack.c.b16 %v1730, %v1727
        %v1740 = vpack.c.b16 %v1734, %v1731
        %v1741 = vpack.c.b16 %v1735, %v1732
        %v1742 = vpack.c.b16 %v1736, %v1733
        %1743 = vrot.lane.b32.xlu0 %v1737, 112
        %v1744 = vpop.permute.xlu0 %1743
        %1745 = vrot.lane.b32.xlu0 %v1738, 112
        %v1746 = vpop.permute.xlu0 %1745
        %1747 = vrot.lane.b32.xlu0 %v1739, 112
        %v1748 = vpop.permute.xlu0 %1747
        %1749 = vrot.lane.b32.xlu0 %v1740, 112
        %v1750 = vpop.permute.xlu0 %1749
        %1751 = vrot.lane.b32.xlu0 %v1741, 112
        %v1752 = vpop.permute.xlu0 %1751
        %1753 = vrot.lane.b32.xlu0 %v1742, 112
        %v1754 = vpop.permute.xlu0 %1753
        %v1755 = vsel %vm829, %v1744, %v1746
        %v1756 = vsel %vm829, %v1746, %v1748
        %v1757 = vsel %vm829, %v1750, %v1752
        %v1758 = vsel %vm829, %v1752, %v1754
        %v1763 = vunpack.c.l.b16 %v1571
        %v1764 = vunpack.c.h.b16 %v1571
        %v1765 = vunpack.c.l.b16 %v1572
        %v1766 = vunpack.c.h.b16 %v1572
        %v1767 = vunpack.c.l.b16 %v1573
        %v1768 = vunpack.c.h.b16 %v1573
        %v1769 = vunpack.c.l.b16 %v1574
        %v1770 = vunpack.c.h.b16 %v1574
        %v1771 = vpack.c.b16 %v1765, %v1763
        %v1772 = vpack.c.b16 %v1766, %v1764
        %v1773 = vpack.c.b16 %v1769, %v1767
        %v1774 = vpack.c.b16 %v1770, %v1768
        %1775 = vrot.lane.b32.xlu0 %v1771, 111
        %v1776 = vpop.permute.xlu0 %1775
        %1777 = vrot.lane.b32.xlu0 %v1772, 111
        %v1778 = vpop.permute.xlu0 %1777
        %1779 = vrot.lane.b32.xlu0 %v1773, 111
        %v1780 = vpop.permute.xlu0 %1779
        %1781 = vrot.lane.b32.xlu0 %v1774, 111
        %v1782 = vpop.permute.xlu0 %1781
        %v1783 = vsel %vm503, %v1776, %v1778
        %v1784 = vsel %vm503, %v1780, %v1782
        %v1793 = vunpack.c.l.b16 %v1583
        %v1794 = vunpack.c.h.b16 %v1583
        %v1795 = vunpack.c.l.b16 %v1584
        %v1796 = vunpack.c.l.b16 %v1585
        %v1797 = vunpack.c.h.b16 %v1585
        %v1798 = vunpack.c.l.b16 %v1586
        %v1799 = vunpack.c.l.b16 %v1587
        %v1800 = vunpack.c.h.b16 %v1587
        %v1801 = vunpack.c.l.b16 %v1588
        %v1802 = vunpack.c.l.b16 %v1589
        %v1803 = vunpack.c.h.b16 %v1589
        %v1804 = vunpack.c.l.b16 %v1590
        %v1805 = vpack.c.b16 %v1796, %v1793
        %v1806 = vpack.c.b16 %v1797, %v1794
        %v1807 = vpack.c.b16 %v1798, %v1795
        %v1808 = vpack.c.b16 %v1802, %v1799
        %v1809 = vpack.c.b16 %v1803, %v1800
        %v1810 = vpack.c.b16 %v1804, %v1801
        %1811 = vrot.lane.b32.xlu0 %v1805, 110
        %v1812 = vpop.permute.xlu0 %1811
        %1813 = vrot.lane.b32.xlu0 %v1806, 110
        %v1814 = vpop.permute.xlu0 %1813
        %1815 = vrot.lane.b32.xlu0 %v1807, 110
        %v1816 = vpop.permute.xlu0 %1815
        %1817 = vrot.lane.b32.xlu0 %v1808, 110
        %v1818 = vpop.permute.xlu0 %1817
        %1819 = vrot.lane.b32.xlu0 %v1809, 110
        %v1820 = vpop.permute.xlu0 %1819
        %1821 = vrot.lane.b32.xlu0 %v1810, 110
        %v1822 = vpop.permute.xlu0 %1821
        %v1823 = vsel %vm898, %v1812, %v1814
        %v1824 = vsel %vm898, %v1814, %v1816
        %v1825 = vsel %vm898, %v1818, %v1820
        %v1826 = vsel %vm898, %v1820, %v1822
        %v1835 = vunpack.c.l.b16 %v1591
        %v1836 = vunpack.c.h.b16 %v1591
        %v1837 = vunpack.c.l.b16 %v1592
        %v1838 = vunpack.c.l.b16 %v1593
        %v1839 = vunpack.c.h.b16 %v1593
        %v1840 = vunpack.c.l.b16 %v1594
        %v1841 = vunpack.c.l.b16 %v1595
        %v1842 = vunpack.c.h.b16 %v1595
        %v1843 = vunpack.c.l.b16 %v1596
        %v1844 = vunpack.c.l.b16 %v1597
        %v1845 = vunpack.c.h.b16 %v1597
        %v1846 = vunpack.c.l.b16 %v1598
        %v1847 = vpack.c.b16 %v1838, %v1835
        %v1848 = vpack.c.b16 %v1839, %v1836
        %v1849 = vpack.c.b16 %v1840, %v1837
        %v1850 = vpack.c.b16 %v1844, %v1841
        %v1851 = vpack.c.b16 %v1845, %v1842
        %v1852 = vpack.c.b16 %v1846, %v1843
        %1853 = vrot.lane.b32.xlu0 %v1847, 96
        %v1854 = vpop.permute.xlu0 %1853
        %1855 = vrot.lane.b32.xlu0 %v1848, 96
        %v1856 = vpop.permute.xlu0 %1855
        %1857 = vrot.lane.b32.xlu0 %v1849, 96
        %v1858 = vpop.permute.xlu0 %1857
        %1859 = vrot.lane.b32.xlu0 %v1850, 96
        %v1860 = vpop.permute.xlu0 %1859
        %1861 = vrot.lane.b32.xlu0 %v1851, 96
        %v1862 = vpop.permute.xlu0 %1861
        %1863 = vrot.lane.b32.xlu0 %v1852, 96
        %v1864 = vpop.permute.xlu0 %1863
        %v1865 = vsel %vm941, %v1854, %v1856
        %v1866 = vsel %vm941, %v1856, %v1858
        %v1867 = vsel %vm941, %v1860, %v1862
        %v1868 = vsel %vm941, %v1862, %v1864
        %v1877 = vunpack.c.l.b16 %v1575
        %v1878 = vunpack.c.h.b16 %v1575
        %v1879 = vunpack.c.l.b16 %v1576
        %v1880 = vunpack.c.l.b16 %v1577
        %v1881 = vunpack.c.h.b16 %v1577
        %v1882 = vunpack.c.l.b16 %v1578
        %v1883 = vunpack.c.l.b16 %v1579
        %v1884 = vunpack.c.h.b16 %v1579
        %v1885 = vunpack.c.l.b16 %v1580
        %v1886 = vunpack.c.l.b16 %v1581
        %v1887 = vunpack.c.h.b16 %v1581
        %v1888 = vunpack.c.l.b16 %v1582
        %v1889 = vpack.c.b16 %v1880, %v1877
        %v1890 = vpack.c.b16 %v1881, %v1878
        %v1891 = vpack.c.b16 %v1882, %v1879
        %v1892 = vpack.c.b16 %v1886, %v1883
        %v1893 = vpack.c.b16 %v1887, %v1884
        %v1894 = vpack.c.b16 %v1888, %v1885
        %1895 = vrot.lane.b32.xlu0 %v1889, 95
        %v1896 = vpop.permute.xlu0 %1895
        %1897 = vrot.lane.b32.xlu0 %v1890, 95
        %v1898 = vpop.permute.xlu0 %1897
        %1899 = vrot.lane.b32.xlu0 %v1891, 95
        %v1900 = vpop.permute.xlu0 %1899
        %1901 = vrot.lane.b32.xlu0 %v1892, 95
        %v1902 = vpop.permute.xlu0 %1901
        %1903 = vrot.lane.b32.xlu0 %v1893, 95
        %v1904 = vpop.permute.xlu0 %1903
        %1905 = vrot.lane.b32.xlu0 %v1894, 95
        %v1906 = vpop.permute.xlu0 %1905
        %v1907 = vsel %vm984, %v1896, %v1898
        %v1908 = vsel %vm984, %v1898, %v1900
        %v1909 = vsel %vm984, %v1902, %v1904
        %v1910 = vsel %vm984, %v1904, %v1906
        %v1919 = vunpack.c.l.b16 %v1599
        %v1920 = vunpack.c.h.b16 %v1599
        %v1921 = vunpack.c.l.b16 %v1600
        %v1922 = vunpack.c.l.b16 %v1601
        %v1923 = vunpack.c.h.b16 %v1601
        %v1924 = vunpack.c.l.b16 %v1602
        %v1925 = vunpack.c.l.b16 %v1603
        %v1926 = vunpack.c.h.b16 %v1603
        %v1927 = vunpack.c.l.b16 %v1604
        %v1928 = vunpack.c.l.b16 %v1605
        %v1929 = vunpack.c.h.b16 %v1605
        %v1930 = vunpack.c.l.b16 %v1606
        %v1931 = vpack.c.b16 %v1922, %v1919
        %v1932 = vpack.c.b16 %v1923, %v1920
        %v1933 = vpack.c.b16 %v1924, %v1921
        %v1934 = vpack.c.b16 %v1928, %v1925
        %v1935 = vpack.c.b16 %v1929, %v1926
        %v1936 = vpack.c.b16 %v1930, %v1927
        %1937 = vrot.lane.b32.xlu0 %v1931, 94
        %v1938 = vpop.permute.xlu0 %1937
        %1939 = vrot.lane.b32.xlu0 %v1932, 94
        %v1940 = vpop.permute.xlu0 %1939
        %1941 = vrot.lane.b32.xlu0 %v1933, 94
        %v1942 = vpop.permute.xlu0 %1941
        %1943 = vrot.lane.b32.xlu0 %v1934, 94
        %v1944 = vpop.permute.xlu0 %1943
        %1945 = vrot.lane.b32.xlu0 %v1935, 94
        %v1946 = vpop.permute.xlu0 %1945
        %1947 = vrot.lane.b32.xlu0 %v1936, 94
        %v1948 = vpop.permute.xlu0 %1947
        %v1949 = vsel %vm1027, %v1938, %v1940
        %v1950 = vsel %vm1027, %v1940, %v1942
        %v1951 = vsel %vm1027, %v1944, %v1946
        %v1952 = vsel %vm1027, %v1946, %v1948
        %1954 = vset.pattern.permute.xlu0 0
        %1955 = vperm.xlu0 %1954, %v1531
        %v1956 = vpop.permute.xlu0 %1955
        %1959 = vset.pattern.permute.xlu0 0
        %1960 = vperm.xlu0 %1959, %v1532
        %v1961 = vpop.permute.xlu0 %1960
        %1964 = vset.pattern.permute.xlu0 0
        %1965 = vperm.xlu0 %1964, %v1533
        %v1966 = vpop.permute.xlu0 %1965
        %1969 = vset.pattern.permute.xlu0 0
        %1970 = vperm.xlu0 %1969, %v1534
        %v1971 = vpop.permute.xlu0 %1970
        %v1981 = vunpack.c.l.b16 %v1523
        %v1982 = vunpack.c.h.b16 %v1523
        %v1983 = vunpack.c.l.b16 %v1524
        %v1984 = vunpack.c.l.b16 %v1525
        %v1985 = vunpack.c.h.b16 %v1525
        %v1986 = vunpack.c.l.b16 %v1526
        %v1987 = vunpack.c.l.b16 %v1527
        %v1988 = vunpack.c.h.b16 %v1527
        %v1989 = vunpack.c.l.b16 %v1528
        %v1990 = vunpack.c.l.b16 %v1529
        %v1991 = vunpack.c.h.b16 %v1529
        %v1992 = vunpack.c.l.b16 %v1530
        %v1993 = vpack.c.b16 %v1984, %v1981
        %v1994 = vpack.c.b16 %v1985, %v1982
        %v1995 = vpack.c.b16 %v1986, %v1983
        %v1996 = vpack.c.b16 %v1990, %v1987
        %v1997 = vpack.c.b16 %v1991, %v1988
        %v1998 = vpack.c.b16 %v1992, %v1989
        %2003 = vrot.lane.b32.xlu0 %v1627, 17
        %v2004 = vpop.permute.xlu0 %2003
        %2005 = vrot.lane.b32.xlu0 %v1628, 17
        %v2006 = vpop.permute.xlu0 %2005
        %2007 = vrot.lane.b32.xlu0 %v1629, 17
        %v2008 = vpop.permute.xlu0 %2007
        %2009 = vrot.lane.b32.xlu0 %v1630, 17
        %v2010 = vpop.permute.xlu0 %2009
        %2011 = vrot.lane.b32.xlu0 %v1631, 17
        %v2012 = vpop.permute.xlu0 %2011
        %2013 = vrot.lane.b32.xlu0 %v1632, 17
        %v2014 = vpop.permute.xlu0 %2013
        %2015 = vrot.lane.b32.xlu0 %v1671, 17
        %v2016 = vpop.permute.xlu0 %2015
        %2017 = vrot.lane.b32.xlu0 %v1672, 17
        %v2018 = vpop.permute.xlu0 %2017
        %2019 = vrot.lane.b32.xlu0 %v1664, 17
        %v2020 = vpop.permute.xlu0 %2019
        %2021 = vrot.lane.b32.xlu0 %v1673, 17
        %v2022 = vpop.permute.xlu0 %2021
        %2023 = vrot.lane.b32.xlu0 %v1674, 17
        %v2024 = vpop.permute.xlu0 %2023
        %2025 = vrot.lane.b32.xlu0 %v1670, 17
        %v2026 = vpop.permute.xlu0 %2025
        %2027 = vrot.lane.b32.xlu0 %v1713, 17
        %v2028 = vpop.permute.xlu0 %2027
        %2029 = vrot.lane.b32.xlu0 %v1714, 17
        %v2030 = vpop.permute.xlu0 %2029
        %2031 = vrot.lane.b32.xlu0 %v1706, 17
        %v2032 = vpop.permute.xlu0 %2031
        %2033 = vrot.lane.b32.xlu0 %v1715, 17
        %v2034 = vpop.permute.xlu0 %2033
        %2035 = vrot.lane.b32.xlu0 %v1716, 17
        %v2036 = vpop.permute.xlu0 %2035
        %2037 = vrot.lane.b32.xlu0 %v1712, 17
        %v2038 = vpop.permute.xlu0 %2037
        %2039 = vrot.lane.b32.xlu0 %v1755, 17
        %v2040 = vpop.permute.xlu0 %2039
        %2041 = vrot.lane.b32.xlu0 %v1756, 17
        %v2042 = vpop.permute.xlu0 %2041
        %2043 = vrot.lane.b32.xlu0 %v1748, 17
        %v2044 = vpop.permute.xlu0 %2043
        %2045 = vrot.lane.b32.xlu0 %v1757, 17
        %v2046 = vpop.permute.xlu0 %2045
        %2047 = vrot.lane.b32.xlu0 %v1758, 17
        %v2048 = vpop.permute.xlu0 %2047
        %2049 = vrot.lane.b32.xlu0 %v1754, 17
        %v2050 = vpop.permute.xlu0 %2049
        %2051 = vrot.lane.b32.xlu0 %v1776, 17
        %v2052 = vpop.permute.xlu0 %2051
        %2053 = vrot.lane.b32.xlu0 %v1783, 17
        %v2054 = vpop.permute.xlu0 %2053
        %2055 = vrot.lane.b32.xlu0 %v1778, 17
        %v2056 = vpop.permute.xlu0 %2055
        %2057 = vrot.lane.b32.xlu0 %v1780, 17
        %v2058 = vpop.permute.xlu0 %2057
        %2059 = vrot.lane.b32.xlu0 %v1784, 17
        %v2060 = vpop.permute.xlu0 %2059
        %2061 = vrot.lane.b32.xlu0 %v1782, 17
        %v2062 = vpop.permute.xlu0 %2061
        %2063 = vrot.lane.b32.xlu0 %v1812, 17
        %v2064 = vpop.permute.xlu0 %2063
        %2065 = vrot.lane.b32.xlu0 %v1823, 17
        %v2066 = vpop.permute.xlu0 %2065
        %2067 = vrot.lane.b32.xlu0 %v1824, 17
        %v2068 = vpop.permute.xlu0 %2067
        %2069 = vrot.lane.b32.xlu0 %v1818, 17
        %v2070 = vpop.permute.xlu0 %2069
        %2071 = vrot.lane.b32.xlu0 %v1825, 17
        %v2072 = vpop.permute.xlu0 %2071
        %2073 = vrot.lane.b32.xlu0 %v1826, 17
        %v2074 = vpop.permute.xlu0 %2073
        %2075 = vrot.lane.b32.xlu0 %v1854, 17
        %v2076 = vpop.permute.xlu0 %2075
        %2077 = vrot.lane.b32.xlu0 %v1865, 17
        %v2078 = vpop.permute.xlu0 %2077
        %2079 = vrot.lane.b32.xlu0 %v1866, 17
        %v2080 = vpop.permute.xlu0 %2079
        %2081 = vrot.lane.b32.xlu0 %v1860, 17
        %v2082 = vpop.permute.xlu0 %2081
        %2083 = vrot.lane.b32.xlu0 %v1867, 17
        %v2084 = vpop.permute.xlu0 %2083
        %2085 = vrot.lane.b32.xlu0 %v1868, 17
        %v2086 = vpop.permute.xlu0 %2085
        %2087 = vrot.lane.b32.xlu0 %v1896, 17
        %v2088 = vpop.permute.xlu0 %2087
        %2089 = vrot.lane.b32.xlu0 %v1907, 17
        %v2090 = vpop.permute.xlu0 %2089
        %2091 = vrot.lane.b32.xlu0 %v1908, 17
        %v2092 = vpop.permute.xlu0 %2091
        %2093 = vrot.lane.b32.xlu0 %v1902, 17
        %v2094 = vpop.permute.xlu0 %2093
        %2095 = vrot.lane.b32.xlu0 %v1909, 17
        %v2096 = vpop.permute.xlu0 %2095
        %2097 = vrot.lane.b32.xlu0 %v1910, 17
        %v2098 = vpop.permute.xlu0 %2097
        %2099 = vrot.lane.b32.xlu0 %v1938, 17
        %v2100 = vpop.permute.xlu0 %2099
        %2101 = vrot.lane.b32.xlu0 %v1949, 17
        %v2102 = vpop.permute.xlu0 %2101
        %2103 = vrot.lane.b32.xlu0 %v1950, 17
        %v2104 = vpop.permute.xlu0 %2103
        %2105 = vrot.lane.b32.xlu0 %v1944, 17
        %v2106 = vpop.permute.xlu0 %2105
        %2107 = vrot.lane.b32.xlu0 %v1951, 17
        %v2108 = vpop.permute.xlu0 %2107
        %2109 = vrot.lane.b32.xlu0 %v1952, 17
        %v2110 = vpop.permute.xlu0 %2109
        %v2111 = vsel %vm656, %v2004, %v2006
        %v2112 = vsel %vm656, %v2006, %v2008
        %v2113 = vsel %vm656, %v2010, %v2012
        %v2114 = vsel %vm656, %v2012, %v2014
        %v2115 = vsel %vm656, %v2016, %v2018
        %v2116 = vsel %vm656, %v2018, %v2020
        %v2117 = vsel %vm656, %v2022, %v2024
        %v2118 = vsel %vm656, %v2024, %v2026
        %v2119 = vsel %vm656, %v2028, %v2030
        %v2120 = vsel %vm656, %v2030, %v2032
        %v2121 = vsel %vm656, %v2034, %v2036
        %v2122 = vsel %vm656, %v2036, %v2038
        %v2123 = vsel %vm656, %v2040, %v2042
        %v2124 = vsel %vm656, %v2042, %v2044
        %v2125 = vsel %vm656, %v2046, %v2048
        %v2126 = vsel %vm656, %v2048, %v2050
        %v2127 = vsel %vm656, %v2052, %v2054
        %v2128 = vsel %vm656, %v2054, %v2056
        %v2129 = vsel %vm656, %v2058, %v2060
        %v2130 = vsel %vm656, %v2060, %v2062
        %v2131 = vsel %vm656, %v2064, %v2066
        %v2132 = vsel %vm656, %v2066, %v2068
        %v2133 = vsel %vm656, %v2070, %v2072
        %v2134 = vsel %vm656, %v2072, %v2074
        %v2135 = vsel %vm656, %v2076, %v2078
        %v2136 = vsel %vm656, %v2078, %v2080
        %v2137 = vsel %vm656, %v2082, %v2084
        %v2138 = vsel %vm656, %v2084, %v2086
        %v2139 = vsel %vm656, %v2088, %v2090
        %v2140 = vsel %vm656, %v2090, %v2092
        %v2141 = vsel %vm656, %v2094, %v2096
        %v2142 = vsel %vm656, %v2096, %v2098
        %v2143 = vsel %vm656, %v2100, %v2102
        %v2144 = vsel %vm656, %v2102, %v2104
        %v2145 = vsel %vm656, %v2106, %v2108
        %v2146 = vsel %vm656, %v2108, %v2110
        %v2184 = vsel %vm1312, %v1995, 0
        %v2187 = vsel %vm1312, %v1998, 0
        %2189 = vmatpush.bf16.msra.mxu0 %v2125
        %2190 = vmatpush.bf16.msra.mxu0 %v2123
        %2191 = vmatpush.bf16.msra.mxu0 %v2121
        %2192 = vmatpush.bf16.msra.mxu0 %v2119
        %2193 = vmatpush.bf16.msra.mxu0 %v2117
        %2194 = vmatpush.bf16.msra.mxu0 %v2115
        %2195 = vmatpush.bf16.msra.mxu0 %v2113
        %2196 = vmatpush.bf16.msra.mxu0 %v2111
        %2197 = vmatmul.bf16.gmra.mxu0 %v1993
        %v2198 = vpop.f32.mrf.mxu0
        %v2199 = vadd.f32 %v1956, %v2198
        %v2200 = vpop.f32.mrf.mxu0
        %v2201 = vadd.f32 %v1961, %v2200
        %2202 = vmatmul.bf16.gmra.mxu0 %v1996
        %v2203 = vpop.f32.mrf.mxu0
        %v2204 = vadd.f32 %v1966, %v2203
        %v2205 = vpop.f32.mrf.mxu0
        %v2206 = vadd.f32 %v1971, %v2205
        %2207 = vdwg.mxu0
        %2208 = vmatpush.bf16.msra.mxu0 %v2141
        %2209 = vmatpush.bf16.msra.mxu0 %v2139
        %2210 = vmatpush.bf16.msra.mxu0 %v2137
        %2211 = vmatpush.bf16.msra.mxu0 %v2135
        %2212 = vmatpush.bf16.msra.mxu0 %v2133
        %2213 = vmatpush.bf16.msra.mxu0 %v2131
        %2214 = vmatpush.bf16.msra.mxu0 %v2129
        %2215 = vmatpush.bf16.msra.mxu0 %v2127
        %2216 = vmatmul.bf16.gmra.mxu0 %v1994
        %v2217 = vpop.f32.mrf.mxu0
        %v2218 = vadd.f32 %v2199, %v2217
        %v2219 = vpop.f32.mrf.mxu0
        %v2220 = vadd.f32 %v2201, %v2219
        %2221 = vmatmul.bf16.gmra.mxu0 %v1997
        %v2222 = vpop.f32.mrf.mxu0
        %v2223 = vadd.f32 %v2204, %v2222
        %v2224 = vpop.f32.mrf.mxu0
        %v2225 = vadd.f32 %v2206, %v2224
        %2226 = vdwg.mxu0
        %2227 = vmatpush.bf16.msra.mxu0 0
        %2228 = vmatpush.bf16.msra.mxu0 0
        %2229 = vmatpush.bf16.msra.mxu0 0
        %2230 = vmatpush.bf16.msra.mxu0 0
        %2231 = vmatpush.bf16.msra.mxu0 0
        %2232 = vmatpush.bf16.msra.mxu0 0
        %2233 = vmatpush.bf16.msra.mxu0 %v2145
        %2234 = vmatpush.bf16.msra.mxu0 %v2143
        %2235 = vmatmul.bf16.gmra.mxu0 %v2184
        %v2236 = vpop.f32.mrf.mxu0
        %v2237 = vadd.f32 %v2218, %v2236
        %v2238 = vpop.f32.mrf.mxu0
        %v2239 = vadd.f32 %v2220, %v2238
        %2240 = vmatmul.bf16.gmra.mxu0 %v2187
        %v2241 = vpop.f32.mrf.mxu0
        %v2242 = vadd.f32 %v2223, %v2241
        %v2243 = vpop.f32.mrf.mxu0
        %v2244 = vadd.f32 %v2225, %v2243
        %2245 = vdwg.mxu0
        %2246 = vmatpush.bf16.msra.mxu0 %v2126
        %2247 = vmatpush.bf16.msra.mxu0 %v2124
        %2248 = vmatpush.bf16.msra.mxu0 %v2122
        %2249 = vmatpush.bf16.msra.mxu0 %v2120
        %2250 = vmatpush.bf16.msra.mxu0 %v2118
        %2251 = vmatpush.bf16.msra.mxu0 %v2116
        %2252 = vmatpush.bf16.msra.mxu0 %v2114
        %2253 = vmatpush.bf16.msra.mxu0 %v2112
        %2254 = vmatmul.bf16.gmra.mxu0 %v1993
        %v2255 = vpop.f32.mrf.mxu0
        %v2256 = vadd.f32 %v1956, %v2255
        %v2257 = vpop.f32.mrf.mxu0
        %v2258 = vadd.f32 %v1961, %v2257
        %2259 = vmatmul.bf16.gmra.mxu0 %v1996
        %v2260 = vpop.f32.mrf.mxu0
        %v2261 = vadd.f32 %v1966, %v2260
        %v2262 = vpop.f32.mrf.mxu0
        %v2263 = vadd.f32 %v1971, %v2262
        %2264 = vdwg.mxu0
        %2265 = vmatpush.bf16.msra.mxu0 %v2142
        %2266 = vmatpush.bf16.msra.mxu0 %v2140
        %2267 = vmatpush.bf16.msra.mxu0 %v2138
        %2268 = vmatpush.bf16.msra.mxu0 %v2136
        %2269 = vmatpush.bf16.msra.mxu0 %v2134
        %2270 = vmatpush.bf16.msra.mxu0 %v2132
        %2271 = vmatpush.bf16.msra.mxu0 %v2130
        %2272 = vmatpush.bf16.msra.mxu0 %v2128
        %2273 = vmatmul.bf16.gmra.mxu0 %v1994
        %v2274 = vpop.f32.mrf.mxu0
        %v2275 = vadd.f32 %v2256, %v2274
        %v2276 = vpop.f32.mrf.mxu0
        %v2277 = vadd.f32 %v2258, %v2276
        %2278 = vmatmul.bf16.gmra.mxu0 %v1997
        %v2279 = vpop.f32.mrf.mxu0
        %v2280 = vadd.f32 %v2261, %v2279
        %v2281 = vpop.f32.mrf.mxu0
        %v2282 = vadd.f32 %v2263, %v2281
        %2283 = vdwg.mxu0
        %2284 = vmatpush.bf16.msra.mxu0 0
        %2285 = vmatpush.bf16.msra.mxu0 0
        %2286 = vmatpush.bf16.msra.mxu0 0
        %2287 = vmatpush.bf16.msra.mxu0 0
        %2288 = vmatpush.bf16.msra.mxu0 0
        %2289 = vmatpush.bf16.msra.mxu0 0
        %2290 = vmatpush.bf16.msra.mxu0 %v2146
        %2291 = vmatpush.bf16.msra.mxu0 %v2144
        %2292 = vmatmul.bf16.gmra.mxu0 %v2184
        %v2293 = vpop.f32.mrf.mxu0
        %v2294 = vadd.f32 %v2275, %v2293
        %v2295 = vpop.f32.mrf.mxu0
        %v2296 = vadd.f32 %v2277, %v2295
        %2297 = vmatmul.bf16.gmra.mxu0 %v2187
        %v2298 = vpop.f32.mrf.mxu0
        %v2299 = vadd.f32 %v2280, %v2298
        %v2300 = vpop.f32.mrf.mxu0
        %v2301 = vadd.f32 %v2282, %v2300
        %2302 = vdwg.mxu0
        %v2303 = vmax.f32 %v2237, 0.0
        %v2304 = vmax.f32 %v2294, 0.0
        %v2305 = vmax.f32 %v2239, 0.0
        %v2306 = vmax.f32 %v2296, 0.0
        %v2307 = vmax.f32 %v2242, 0.0
        %v2308 = vmax.f32 %v2299, 0.0
        %v2309 = vmax.f32 %v2244, 0.0
        %v2310 = vmax.f32 %v2301, 0.0
        %v2311 = vpack.c.bf16 %v2304, %v2303
        %v2312 = vpack.c.bf16 %v2306, %v2305
        %v2313 = vpack.c.bf16 %v2308, %v2307
        %v2314 = vpack.c.bf16 %v2310, %v2309
        %v2315 = vld [vmem:[%s5] sm:$0xff]
        %v2316 = vld [vmem:[%s5 + $0x8] sm:$0xf]
        %v2317 = vld [vmem:[%s5 + $0xc] sm:$0xff]
        %v2318 = vld [vmem:[%s5 + $0x14] sm:$0xf]
        %v2319 = vld [vmem:[%s6] sm:$0xff]
        %v2320 = vld [vmem:[%s6 + $0x8] sm:$0x7f]
        %2321 = vst [vmem:[#allocation2 + $0x4] sm:$0xff] %v2311
        %2322 = vst [vmem:[#allocation2 + $0x14] sm:$0xff] %v2312
        %2323 = vst [vmem:[#allocation2 + $0x24] sm:$0xff] %v2313
        %2324 = vst [vmem:[#allocation2 + $0x34] sm:$0xff] %v2314
        %v2325 = vld [vmem:[#allocation2] sm:$0xff]
        %v2326 = vld [vmem:[#allocation2 + $0x8] sm:$0xf]
        %v2327 = vld [vmem:[#allocation2 + $0x10] sm:$0xff]
        %v2328 = vld [vmem:[#allocation2 + $0x18] sm:$0xf]
        %v2329 = vld [vmem:[#allocation2 + $0x20] sm:$0xff]
        %v2330 = vld [vmem:[#allocation2 + $0x28] sm:$0xf]
        %v2331 = vld [vmem:[#allocation2 + $0x30] sm:$0xff]
        %v2332 = vld [vmem:[#allocation2 + $0x38] sm:$0xf]
        %v2333 = vsel %vm511, %v2325, 0
        %v2334 = vsel %vm518, %v2326, 0
        %v2335 = vsel %vm511, %v2327, 0
        %v2336 = vsel %vm518, %v2328, 0
        %v2337 = vsel %vm511, %v2329, 0
        %v2338 = vsel %vm518, %v2330, 0
        %v2339 = vsel %vm511, %v2331, 0
        %v2340 = vsel %vm518, %v2332, 0
        %v2341 = vsel %vm544, %v2325, 0
        %v2342 = vsel %vm551, %v2326, 0
        %v2343 = vsel %vm544, %v2327, 0
        %v2344 = vsel %vm551, %v2328, 0
        %v2345 = vsel %vm544, %v2329, 0
        %v2346 = vsel %vm551, %v2330, 0
        %v2347 = vsel %vm544, %v2331, 0
        %v2348 = vsel %vm551, %v2332, 0
        %v2349 = vsel %vm571, %v2325, 0
        %v2350 = vsel %vm578, %v2326, 0
        %v2351 = vsel %vm571, %v2327, 0
        %v2352 = vsel %vm578, %v2328, 0
        %v2353 = vsel %vm571, %v2329, 0
        %v2354 = vsel %vm578, %v2330, 0
        %v2355 = vsel %vm571, %v2331, 0
        %v2356 = vsel %vm578, %v2332, 0
        %v2357 = vld [vmem:[#allocation2 + $0x4] sm:$0xff]
        %v2358 = vld [vmem:[#allocation2 + $0x14] sm:$0xff]
        %v2359 = vld [vmem:[#allocation2 + $0x24] sm:$0xff]
        %v2360 = vld [vmem:[#allocation2 + $0x34] sm:$0xff]
        %v2361 = vld [vmem:[#allocation2 + $0x4] sm:$0xff]
        %v2362 = vld [vmem:[#allocation2 + $0xc] sm:$0xf]
        %v2363 = vld [vmem:[#allocation2 + $0x14] sm:$0xff]
        %v2364 = vld [vmem:[#allocation2 + $0x1c] sm:$0xf]
        %v2365 = vld [vmem:[#allocation2 + $0x24] sm:$0xff]
        %v2366 = vld [vmem:[#allocation2 + $0x2c] sm:$0xf]
        %v2367 = vld [vmem:[#allocation2 + $0x34] sm:$0xff]
        %v2368 = vld [vmem:[#allocation2 + $0x3c] sm:$0xf]
        %v2369 = vsel %vm610, %v2361, 0
        %v2370 = vsel %vm617, %v2362, 0
        %v2371 = vsel %vm610, %v2363, 0
        %v2372 = vsel %vm617, %v2364, 0
        %v2373 = vsel %vm610, %v2365, 0
        %v2374 = vsel %vm617, %v2366, 0
        %v2375 = vsel %vm610, %v2367, 0
        %v2376 = vsel %vm617, %v2368, 0
        %v2377 = vsel %vm637, %v2361, 0
        %v2378 = vsel %vm644, %v2362, 0
        %v2379 = vsel %vm637, %v2363, 0
        %v2380 = vsel %vm644, %v2364, 0
        %v2381 = vsel %vm637, %v2365, 0
        %v2382 = vsel %vm644, %v2366, 0
        %v2383 = vsel %vm637, %v2367, 0
        %v2384 = vsel %vm644, %v2368, 0
        %v2385 = vsel %vm664, %v2361, 0
        %v2386 = vsel %vm671, %v2362, 0
        %v2387 = vsel %vm664, %v2363, 0
        %v2388 = vsel %vm671, %v2364, 0
        %v2389 = vsel %vm664, %v2365, 0
        %v2390 = vsel %vm671, %v2366, 0
        %v2391 = vsel %vm664, %v2367, 0
        %v2392 = vsel %vm671, %v2368, 0
        %v2401 = vunpack.c.l.b16 %v2333
        %v2402 = vunpack.c.h.b16 %v2333
        %v2403 = vunpack.c.l.b16 %v2334
        %v2404 = vunpack.c.l.b16 %v2335
        %v2405 = vunpack.c.h.b16 %v2335
        %v2406 = vunpack.c.l.b16 %v2336
        %v2407 = vunpack.c.l.b16 %v2337
        %v2408 = vunpack.c.h.b16 %v2337
        %v2409 = vunpack.c.l.b16 %v2338
        %v2410 = vunpack.c.l.b16 %v2339
        %v2411 = vunpack.c.h.b16 %v2339
        %v2412 = vunpack.c.l.b16 %v2340
        %v2413 = vpack.c.b16 %v2404, %v2401
        %v2414 = vpack.c.b16 %v2405, %v2402
        %v2415 = vpack.c.b16 %v2406, %v2403
        %v2416 = vpack.c.b16 %v2410, %v2407
        %v2417 = vpack.c.b16 %v2411, %v2408
        %v2418 = vpack.c.b16 %v2412, %v2409
        %v2427 = vunpack.c.l.b16 %v2325
        %v2428 = vunpack.c.h.b16 %v2325
        %v2429 = vunpack.c.l.b16 %v2326
        %v2430 = vunpack.c.l.b16 %v2327
        %v2431 = vunpack.c.h.b16 %v2327
        %v2432 = vunpack.c.l.b16 %v2328
        %v2433 = vunpack.c.l.b16 %v2329
        %v2434 = vunpack.c.h.b16 %v2329
        %v2435 = vunpack.c.l.b16 %v2330
        %v2436 = vunpack.c.l.b16 %v2331
        %v2437 = vunpack.c.h.b16 %v2331
        %v2438 = vunpack.c.l.b16 %v2332
        %v2439 = vpack.c.b16 %v2430, %v2427
        %v2440 = vpack.c.b16 %v2431, %v2428
        %v2441 = vpack.c.b16 %v2432, %v2429
        %v2442 = vpack.c.b16 %v2436, %v2433
        %v2443 = vpack.c.b16 %v2437, %v2434
        %v2444 = vpack.c.b16 %v2438, %v2435
        %2445 = vrot.lane.b32.xlu0 %v2439, 127
        %v2446 = vpop.permute.xlu0 %2445
        %2447 = vrot.lane.b32.xlu0 %v2440, 127
        %v2448 = vpop.permute.xlu0 %2447
        %2449 = vrot.lane.b32.xlu0 %v2441, 127
        %v2450 = vpop.permute.xlu0 %2449
        %2451 = vrot.lane.b32.xlu0 %v2442, 127
        %v2452 = vpop.permute.xlu0 %2451
        %2453 = vrot.lane.b32.xlu0 %v2443, 127
        %v2454 = vpop.permute.xlu0 %2453
        %2455 = vrot.lane.b32.xlu0 %v2444, 127
        %v2456 = vpop.permute.xlu0 %2455
        %v2457 = vsel %vm563, %v2446, %v2448
        %v2458 = vsel %vm563, %v2448, %v2450
        %v2459 = vsel %vm563, %v2452, %v2454
        %v2460 = vsel %vm563, %v2454, %v2456
        %v2469 = vunpack.c.l.b16 %v2341
        %v2470 = vunpack.c.h.b16 %v2341
        %v2471 = vunpack.c.l.b16 %v2342
        %v2472 = vunpack.c.l.b16 %v2343
        %v2473 = vunpack.c.h.b16 %v2343
        %v2474 = vunpack.c.l.b16 %v2344
        %v2475 = vunpack.c.l.b16 %v2345
        %v2476 = vunpack.c.h.b16 %v2345
        %v2477 = vunpack.c.l.b16 %v2346
        %v2478 = vunpack.c.l.b16 %v2347
        %v2479 = vunpack.c.h.b16 %v2347
        %v2480 = vunpack.c.l.b16 %v2348
        %v2481 = vpack.c.b16 %v2472, %v2469
        %v2482 = vpack.c.b16 %v2473, %v2470
        %v2483 = vpack.c.b16 %v2474, %v2471
        %v2484 = vpack.c.b16 %v2478, %v2475
        %v2485 = vpack.c.b16 %v2479, %v2476
        %v2486 = vpack.c.b16 %v2480, %v2477
        %2487 = vrot.lane.b32.xlu0 %v2481, 126
        %v2488 = vpop.permute.xlu0 %2487
        %2489 = vrot.lane.b32.xlu0 %v2482, 126
        %v2490 = vpop.permute.xlu0 %2489
        %2491 = vrot.lane.b32.xlu0 %v2483, 126
        %v2492 = vpop.permute.xlu0 %2491
        %2493 = vrot.lane.b32.xlu0 %v2484, 126
        %v2494 = vpop.permute.xlu0 %2493
        %2495 = vrot.lane.b32.xlu0 %v2485, 126
        %v2496 = vpop.permute.xlu0 %2495
        %2497 = vrot.lane.b32.xlu0 %v2486, 126
        %v2498 = vpop.permute.xlu0 %2497
        %v2499 = vsel %vm786, %v2488, %v2490
        %v2500 = vsel %vm786, %v2490, %v2492
        %v2501 = vsel %vm786, %v2494, %v2496
        %v2502 = vsel %vm786, %v2496, %v2498
        %v2511 = vunpack.c.l.b16 %v2349
        %v2512 = vunpack.c.h.b16 %v2349
        %v2513 = vunpack.c.l.b16 %v2350
        %v2514 = vunpack.c.l.b16 %v2351
        %v2515 = vunpack.c.h.b16 %v2351
        %v2516 = vunpack.c.l.b16 %v2352
        %v2517 = vunpack.c.l.b16 %v2353
        %v2518 = vunpack.c.h.b16 %v2353
        %v2519 = vunpack.c.l.b16 %v2354
        %v2520 = vunpack.c.l.b16 %v2355
        %v2521 = vunpack.c.h.b16 %v2355
        %v2522 = vunpack.c.l.b16 %v2356
        %v2523 = vpack.c.b16 %v2514, %v2511
        %v2524 = vpack.c.b16 %v2515, %v2512
        %v2525 = vpack.c.b16 %v2516, %v2513
        %v2526 = vpack.c.b16 %v2520, %v2517
        %v2527 = vpack.c.b16 %v2521, %v2518
        %v2528 = vpack.c.b16 %v2522, %v2519
        %2529 = vrot.lane.b32.xlu0 %v2523, 112
        %v2530 = vpop.permute.xlu0 %2529
        %2531 = vrot.lane.b32.xlu0 %v2524, 112
        %v2532 = vpop.permute.xlu0 %2531
        %2533 = vrot.lane.b32.xlu0 %v2525, 112
        %v2534 = vpop.permute.xlu0 %2533
        %2535 = vrot.lane.b32.xlu0 %v2526, 112
        %v2536 = vpop.permute.xlu0 %2535
        %2537 = vrot.lane.b32.xlu0 %v2527, 112
        %v2538 = vpop.permute.xlu0 %2537
        %2539 = vrot.lane.b32.xlu0 %v2528, 112
        %v2540 = vpop.permute.xlu0 %2539
        %v2541 = vsel %vm829, %v2530, %v2532
        %v2542 = vsel %vm829, %v2532, %v2534
        %v2543 = vsel %vm829, %v2536, %v2538
        %v2544 = vsel %vm829, %v2538, %v2540
        %v2549 = vunpack.c.l.b16 %v2357
        %v2550 = vunpack.c.h.b16 %v2357
        %v2551 = vunpack.c.l.b16 %v2358
        %v2552 = vunpack.c.h.b16 %v2358
        %v2553 = vunpack.c.l.b16 %v2359
        %v2554 = vunpack.c.h.b16 %v2359
        %v2555 = vunpack.c.l.b16 %v2360
        %v2556 = vunpack.c.h.b16 %v2360
        %v2557 = vpack.c.b16 %v2551, %v2549
        %v2558 = vpack.c.b16 %v2552, %v2550
        %v2559 = vpack.c.b16 %v2555, %v2553
        %v2560 = vpack.c.b16 %v2556, %v2554
        %2561 = vrot.lane.b32.xlu0 %v2557, 111
        %v2562 = vpop.permute.xlu0 %2561
        %2563 = vrot.lane.b32.xlu0 %v2558, 111
        %v2564 = vpop.permute.xlu0 %2563
        %2565 = vrot.lane.b32.xlu0 %v2559, 111
        %v2566 = vpop.permute.xlu0 %2565
        %2567 = vrot.lane.b32.xlu0 %v2560, 111
        %v2568 = vpop.permute.xlu0 %2567
        %v2569 = vsel %vm503, %v2562, %v2564
        %v2570 = vsel %vm503, %v2566, %v2568
        %v2579 = vunpack.c.l.b16 %v2369
        %v2580 = vunpack.c.h.b16 %v2369
        %v2581 = vunpack.c.l.b16 %v2370
        %v2582 = vunpack.c.l.b16 %v2371
        %v2583 = vunpack.c.h.b16 %v2371
        %v2584 = vunpack.c.l.b16 %v2372
        %v2585 = vunpack.c.l.b16 %v2373
        %v2586 = vunpack.c.h.b16 %v2373
        %v2587 = vunpack.c.l.b16 %v2374
        %v2588 = vunpack.c.l.b16 %v2375
        %v2589 = vunpack.c.h.b16 %v2375
        %v2590 = vunpack.c.l.b16 %v2376
        %v2591 = vpack.c.b16 %v2582, %v2579
        %v2592 = vpack.c.b16 %v2583, %v2580
        %v2593 = vpack.c.b16 %v2584, %v2581
        %v2594 = vpack.c.b16 %v2588, %v2585
        %v2595 = vpack.c.b16 %v2589, %v2586
        %v2596 = vpack.c.b16 %v2590, %v2587
        %2597 = vrot.lane.b32.xlu0 %v2591, 110
        %v2598 = vpop.permute.xlu0 %2597
        %2599 = vrot.lane.b32.xlu0 %v2592, 110
        %v2600 = vpop.permute.xlu0 %2599
        %2601 = vrot.lane.b32.xlu0 %v2593, 110
        %v2602 = vpop.permute.xlu0 %2601
        %2603 = vrot.lane.b32.xlu0 %v2594, 110
        %v2604 = vpop.permute.xlu0 %2603
        %2605 = vrot.lane.b32.xlu0 %v2595, 110
        %v2606 = vpop.permute.xlu0 %2605
        %2607 = vrot.lane.b32.xlu0 %v2596, 110
        %v2608 = vpop.permute.xlu0 %2607
        %v2609 = vsel %vm898, %v2598, %v2600
        %v2610 = vsel %vm898, %v2600, %v2602
        %v2611 = vsel %vm898, %v2604, %v2606
        %v2612 = vsel %vm898, %v2606, %v2608
        %v2621 = vunpack.c.l.b16 %v2377
        %v2622 = vunpack.c.h.b16 %v2377
        %v2623 = vunpack.c.l.b16 %v2378
        %v2624 = vunpack.c.l.b16 %v2379
        %v2625 = vunpack.c.h.b16 %v2379
        %v2626 = vunpack.c.l.b16 %v2380
        %v2627 = vunpack.c.l.b16 %v2381
        %v2628 = vunpack.c.h.b16 %v2381
        %v2629 = vunpack.c.l.b16 %v2382
        %v2630 = vunpack.c.l.b16 %v2383
        %v2631 = vunpack.c.h.b16 %v2383
        %v2632 = vunpack.c.l.b16 %v2384
        %v2633 = vpack.c.b16 %v2624, %v2621
        %v2634 = vpack.c.b16 %v2625, %v2622
        %v2635 = vpack.c.b16 %v2626, %v2623
        %v2636 = vpack.c.b16 %v2630, %v2627
        %v2637 = vpack.c.b16 %v2631, %v2628
        %v2638 = vpack.c.b16 %v2632, %v2629
        %2639 = vrot.lane.b32.xlu0 %v2633, 96
        %v2640 = vpop.permute.xlu0 %2639
        %2641 = vrot.lane.b32.xlu0 %v2634, 96
        %v2642 = vpop.permute.xlu0 %2641
        %2643 = vrot.lane.b32.xlu0 %v2635, 96
        %v2644 = vpop.permute.xlu0 %2643
        %2645 = vrot.lane.b32.xlu0 %v2636, 96
        %v2646 = vpop.permute.xlu0 %2645
        %2647 = vrot.lane.b32.xlu0 %v2637, 96
        %v2648 = vpop.permute.xlu0 %2647
        %2649 = vrot.lane.b32.xlu0 %v2638, 96
        %v2650 = vpop.permute.xlu0 %2649
        %v2651 = vsel %vm941, %v2640, %v2642
        %v2652 = vsel %vm941, %v2642, %v2644
        %v2653 = vsel %vm941, %v2646, %v2648
        %v2654 = vsel %vm941, %v2648, %v2650
        %v2663 = vunpack.c.l.b16 %v2361
        %v2664 = vunpack.c.h.b16 %v2361
        %v2665 = vunpack.c.l.b16 %v2362
        %v2666 = vunpack.c.l.b16 %v2363
        %v2667 = vunpack.c.h.b16 %v2363
        %v2668 = vunpack.c.l.b16 %v2364
        %v2669 = vunpack.c.l.b16 %v2365
        %v2670 = vunpack.c.h.b16 %v2365
        %v2671 = vunpack.c.l.b16 %v2366
        %v2672 = vunpack.c.l.b16 %v2367
        %v2673 = vunpack.c.h.b16 %v2367
        %v2674 = vunpack.c.l.b16 %v2368
        %v2675 = vpack.c.b16 %v2666, %v2663
        %v2676 = vpack.c.b16 %v2667, %v2664
        %v2677 = vpack.c.b16 %v2668, %v2665
        %v2678 = vpack.c.b16 %v2672, %v2669
        %v2679 = vpack.c.b16 %v2673, %v2670
        %v2680 = vpack.c.b16 %v2674, %v2671
        %2681 = vrot.lane.b32.xlu0 %v2675, 95
        %v2682 = vpop.permute.xlu0 %2681
        %2683 = vrot.lane.b32.xlu0 %v2676, 95
        %v2684 = vpop.permute.xlu0 %2683
        %2685 = vrot.lane.b32.xlu0 %v2677, 95
        %v2686 = vpop.permute.xlu0 %2685
        %2687 = vrot.lane.b32.xlu0 %v2678, 95
        %v2688 = vpop.permute.xlu0 %2687
        %2689 = vrot.lane.b32.xlu0 %v2679, 95
        %v2690 = vpop.permute.xlu0 %2689
        %2691 = vrot.lane.b32.xlu0 %v2680, 95
        %v2692 = vpop.permute.xlu0 %2691
        %v2693 = vsel %vm984, %v2682, %v2684
        %v2694 = vsel %vm984, %v2684, %v2686
        %v2695 = vsel %vm984, %v2688, %v2690
        %v2696 = vsel %vm984, %v2690, %v2692
        %v2705 = vunpack.c.l.b16 %v2385
        %v2706 = vunpack.c.h.b16 %v2385
        %v2707 = vunpack.c.l.b16 %v2386
        %v2708 = vunpack.c.l.b16 %v2387
        %v2709 = vunpack.c.h.b16 %v2387
        %v2710 = vunpack.c.l.b16 %v2388
        %v2711 = vunpack.c.l.b16 %v2389
        %v2712 = vunpack.c.h.b16 %v2389
        %v2713 = vunpack.c.l.b16 %v2390
        %v2714 = vunpack.c.l.b16 %v2391
        %v2715 = vunpack.c.h.b16 %v2391
        %v2716 = vunpack.c.l.b16 %v2392
        %v2717 = vpack.c.b16 %v2708, %v2705
        %v2718 = vpack.c.b16 %v2709, %v2706
        %v2719 = vpack.c.b16 %v2710, %v2707
        %v2720 = vpack.c.b16 %v2714, %v2711
        %v2721 = vpack.c.b16 %v2715, %v2712
        %v2722 = vpack.c.b16 %v2716, %v2713
        %2723 = vrot.lane.b32.xlu0 %v2717, 94
        %v2724 = vpop.permute.xlu0 %2723
        %2725 = vrot.lane.b32.xlu0 %v2718, 94
        %v2726 = vpop.permute.xlu0 %2725
        %2727 = vrot.lane.b32.xlu0 %v2719, 94
        %v2728 = vpop.permute.xlu0 %2727
        %2729 = vrot.lane.b32.xlu0 %v2720, 94
        %v2730 = vpop.permute.xlu0 %2729
        %2731 = vrot.lane.b32.xlu0 %v2721, 94
        %v2732 = vpop.permute.xlu0 %2731
        %2733 = vrot.lane.b32.xlu0 %v2722, 94
        %v2734 = vpop.permute.xlu0 %2733
        %v2735 = vsel %vm1027, %v2724, %v2726
        %v2736 = vsel %vm1027, %v2726, %v2728
        %v2737 = vsel %vm1027, %v2730, %v2732
        %v2738 = vsel %vm1027, %v2732, %v2734
        %2740 = vset.pattern.permute.xlu0 0
        %2741 = vperm.xlu0 %2740, %v2319
        %v2742 = vpop.permute.xlu0 %2741
        %2745 = vset.pattern.permute.xlu0 0
        %2746 = vperm.xlu0 %2745, %v2320
        %v2747 = vpop.permute.xlu0 %2746
        %v2753 = vunpack.c.l.b16 %v2315
        %v2754 = vunpack.c.h.b16 %v2315
        %v2755 = vunpack.c.l.b16 %v2316
        %v2756 = vunpack.c.l.b16 %v2317
        %v2757 = vunpack.c.h.b16 %v2317
        %v2758 = vunpack.c.l.b16 %v2318
        %v2759 = vpack.c.b16 %v2756, %v2753
        %v2760 = vpack.c.b16 %v2757, %v2754
        %v2761 = vpack.c.b16 %v2758, %v2755
        %2764 = vrot.lane.b32.xlu0 %v2413, 17
        %v2765 = vpop.permute.xlu0 %2764
        %2766 = vrot.lane.b32.xlu0 %v2414, 17
        %v2767 = vpop.permute.xlu0 %2766
        %2768 = vrot.lane.b32.xlu0 %v2415, 17
        %v2769 = vpop.permute.xlu0 %2768
        %2770 = vrot.lane.b32.xlu0 %v2416, 17
        %v2771 = vpop.permute.xlu0 %2770
        %2772 = vrot.lane.b32.xlu0 %v2417, 17
        %v2773 = vpop.permute.xlu0 %2772
        %2774 = vrot.lane.b32.xlu0 %v2418, 17
        %v2775 = vpop.permute.xlu0 %2774
        %2776 = vrot.lane.b32.xlu0 %v2457, 17
        %v2777 = vpop.permute.xlu0 %2776
        %2778 = vrot.lane.b32.xlu0 %v2458, 17
        %v2779 = vpop.permute.xlu0 %2778
        %2780 = vrot.lane.b32.xlu0 %v2450, 17
        %v2781 = vpop.permute.xlu0 %2780
        %2782 = vrot.lane.b32.xlu0 %v2459, 17
        %v2783 = vpop.permute.xlu0 %2782
        %2784 = vrot.lane.b32.xlu0 %v2460, 17
        %v2785 = vpop.permute.xlu0 %2784
        %2786 = vrot.lane.b32.xlu0 %v2456, 17
        %v2787 = vpop.permute.xlu0 %2786
        %2788 = vrot.lane.b32.xlu0 %v2499, 17
        %v2789 = vpop.permute.xlu0 %2788
        %2790 = vrot.lane.b32.xlu0 %v2500, 17
        %v2791 = vpop.permute.xlu0 %2790
        %2792 = vrot.lane.b32.xlu0 %v2492, 17
        %v2793 = vpop.permute.xlu0 %2792
        %2794 = vrot.lane.b32.xlu0 %v2501, 17
        %v2795 = vpop.permute.xlu0 %2794
        %2796 = vrot.lane.b32.xlu0 %v2502, 17
        %v2797 = vpop.permute.xlu0 %2796
        %2798 = vrot.lane.b32.xlu0 %v2498, 17
        %v2799 = vpop.permute.xlu0 %2798
        %2800 = vrot.lane.b32.xlu0 %v2541, 17
        %v2801 = vpop.permute.xlu0 %2800
        %2802 = vrot.lane.b32.xlu0 %v2542, 17
        %v2803 = vpop.permute.xlu0 %2802
        %2804 = vrot.lane.b32.xlu0 %v2534, 17
        %v2805 = vpop.permute.xlu0 %2804
        %2806 = vrot.lane.b32.xlu0 %v2543, 17
        %v2807 = vpop.permute.xlu0 %2806
        %2808 = vrot.lane.b32.xlu0 %v2544, 17
        %v2809 = vpop.permute.xlu0 %2808
        %2810 = vrot.lane.b32.xlu0 %v2540, 17
        %v2811 = vpop.permute.xlu0 %2810
        %2812 = vrot.lane.b32.xlu0 %v2562, 17
        %v2813 = vpop.permute.xlu0 %2812
        %2814 = vrot.lane.b32.xlu0 %v2569, 17
        %v2815 = vpop.permute.xlu0 %2814
        %2816 = vrot.lane.b32.xlu0 %v2564, 17
        %v2817 = vpop.permute.xlu0 %2816
        %2818 = vrot.lane.b32.xlu0 %v2566, 17
        %v2819 = vpop.permute.xlu0 %2818
        %2820 = vrot.lane.b32.xlu0 %v2570, 17
        %v2821 = vpop.permute.xlu0 %2820
        %2822 = vrot.lane.b32.xlu0 %v2568, 17
        %v2823 = vpop.permute.xlu0 %2822
        %2824 = vrot.lane.b32.xlu0 %v2598, 17
        %v2825 = vpop.permute.xlu0 %2824
        %2826 = vrot.lane.b32.xlu0 %v2609, 17
        %v2827 = vpop.permute.xlu0 %2826
        %2828 = vrot.lane.b32.xlu0 %v2610, 17
        %v2829 = vpop.permute.xlu0 %2828
        %2830 = vrot.lane.b32.xlu0 %v2604, 17
        %v2831 = vpop.permute.xlu0 %2830
        %2832 = vrot.lane.b32.xlu0 %v2611, 17
        %v2833 = vpop.permute.xlu0 %2832
        %2834 = vrot.lane.b32.xlu0 %v2612, 17
        %v2835 = vpop.permute.xlu0 %2834
        %2836 = vrot.lane.b32.xlu0 %v2640, 17
        %v2837 = vpop.permute.xlu0 %2836
        %2838 = vrot.lane.b32.xlu0 %v2651, 17
        %v2839 = vpop.permute.xlu0 %2838
        %2840 = vrot.lane.b32.xlu0 %v2652, 17
        %v2841 = vpop.permute.xlu0 %2840
        %2842 = vrot.lane.b32.xlu0 %v2646, 17
        %v2843 = vpop.permute.xlu0 %2842
        %2844 = vrot.lane.b32.xlu0 %v2653, 17
        %v2845 = vpop.permute.xlu0 %2844
        %2846 = vrot.lane.b32.xlu0 %v2654, 17
        %v2847 = vpop.permute.xlu0 %2846
        %2848 = vrot.lane.b32.xlu0 %v2682, 17
        %v2849 = vpop.permute.xlu0 %2848
        %2850 = vrot.lane.b32.xlu0 %v2693, 17
        %v2851 = vpop.permute.xlu0 %2850
        %2852 = vrot.lane.b32.xlu0 %v2694, 17
        %v2853 = vpop.permute.xlu0 %2852
        %2854 = vrot.lane.b32.xlu0 %v2688, 17
        %v2855 = vpop.permute.xlu0 %2854
        %2856 = vrot.lane.b32.xlu0 %v2695, 17
        %v2857 = vpop.permute.xlu0 %2856
        %2858 = vrot.lane.b32.xlu0 %v2696, 17
        %v2859 = vpop.permute.xlu0 %2858
        %2860 = vrot.lane.b32.xlu0 %v2724, 17
        %v2861 = vpop.permute.xlu0 %2860
        %2862 = vrot.lane.b32.xlu0 %v2735, 17
        %v2863 = vpop.permute.xlu0 %2862
        %2864 = vrot.lane.b32.xlu0 %v2736, 17
        %v2865 = vpop.permute.xlu0 %2864
        %2866 = vrot.lane.b32.xlu0 %v2730, 17
        %v2867 = vpop.permute.xlu0 %2866
        %2868 = vrot.lane.b32.xlu0 %v2737, 17
        %v2869 = vpop.permute.xlu0 %2868
        %2870 = vrot.lane.b32.xlu0 %v2738, 17
        %v2871 = vpop.permute.xlu0 %2870
        %v2872 = vsel %vm656, %v2765, %v2767
        %v2873 = vsel %vm656, %v2767, %v2769
        %v2874 = vsel %vm656, %v2771, %v2773
        %v2875 = vsel %vm656, %v2773, %v2775
        %v2876 = vsel %vm656, %v2777, %v2779
        %v2877 = vsel %vm656, %v2779, %v2781
        %v2878 = vsel %vm656, %v2783, %v2785
        %v2879 = vsel %vm656, %v2785, %v2787
        %v2880 = vsel %vm656, %v2789, %v2791
        %v2881 = vsel %vm656, %v2791, %v2793
        %v2882 = vsel %vm656, %v2795, %v2797
        %v2883 = vsel %vm656, %v2797, %v2799
        %v2884 = vsel %vm656, %v2801, %v2803
        %v2885 = vsel %vm656, %v2803, %v2805
        %v2886 = vsel %vm656, %v2807, %v2809
        %v2887 = vsel %vm656, %v2809, %v2811
        %v2888 = vsel %vm656, %v2813, %v2815
        %v2889 = vsel %vm656, %v2815, %v2817
        %v2890 = vsel %vm656, %v2819, %v2821
        %v2891 = vsel %vm656, %v2821, %v2823
        %v2892 = vsel %vm656, %v2825, %v2827
        %v2893 = vsel %vm656, %v2827, %v2829
        %v2894 = vsel %vm656, %v2831, %v2833
        %v2895 = vsel %vm656, %v2833, %v2835
        %v2896 = vsel %vm656, %v2837, %v2839
        %v2897 = vsel %vm656, %v2839, %v2841
        %v2898 = vsel %vm656, %v2843, %v2845
        %v2899 = vsel %vm656, %v2845, %v2847
        %v2900 = vsel %vm656, %v2849, %v2851
        %v2901 = vsel %vm656, %v2851, %v2853
        %v2902 = vsel %vm656, %v2855, %v2857
        %v2903 = vsel %vm656, %v2857, %v2859
        %v2904 = vsel %vm656, %v2861, %v2863
        %v2905 = vsel %vm656, %v2863, %v2865
        %v2906 = vsel %vm656, %v2867, %v2869
        %v2907 = vsel %vm656, %v2869, %v2871
        %v2945 = vsel %vm1312, %v2761, 0
        %2947 = vmatpush.bf16.msra.mxu0 %v2886
        %2948 = vmatpush.bf16.msra.mxu0 %v2884
        %2949 = vmatpush.bf16.msra.mxu0 %v2882
        %2950 = vmatpush.bf16.msra.mxu0 %v2880
        %2951 = vmatpush.bf16.msra.mxu0 %v2878
        %2952 = vmatpush.bf16.msra.mxu0 %v2876
        %2953 = vmatpush.bf16.msra.mxu0 %v2874
        %2954 = vmatpush.bf16.msra.mxu0 %v2872
        %2955 = vmatmul.bf16.gmra.mxu0 %v2759
        %v2956 = vpop.f32.mrf.mxu0
        %v2957 = vadd.f32 %v2742, %v2956
        %v2958 = vpop.f32.mrf.mxu0
        %v2959 = vadd.f32 %v2747, %v2958
        %2960 = vdwg.mxu0
        %2961 = vmatpush.bf16.msra.mxu0 %v2902
        %2962 = vmatpush.bf16.msra.mxu0 %v2900
        %2963 = vmatpush.bf16.msra.mxu0 %v2898
        %2964 = vmatpush.bf16.msra.mxu0 %v2896
        %2965 = vmatpush.bf16.msra.mxu0 %v2894
        %2966 = vmatpush.bf16.msra.mxu0 %v2892
        %2967 = vmatpush.bf16.msra.mxu0 %v2890
        %2968 = vmatpush.bf16.msra.mxu0 %v2888
        %2969 = vmatmul.bf16.gmra.mxu0 %v2760
        %v2970 = vpop.f32.mrf.mxu0
        %v2971 = vadd.f32 %v2957, %v2970
        %v2972 = vpop.f32.mrf.mxu0
        %v2973 = vadd.f32 %v2959, %v2972
        %2974 = vdwg.mxu0
        %2975 = vmatpush.bf16.msra.mxu0 0
        %2976 = vmatpush.bf16.msra.mxu0 0
        %2977 = vmatpush.bf16.msra.mxu0 0
        %2978 = vmatpush.bf16.msra.mxu0 0
        %2979 = vmatpush.bf16.msra.mxu0 0
        %2980 = vmatpush.bf16.msra.mxu0 0
        %2981 = vmatpush.bf16.msra.mxu0 %v2906
        %2982 = vmatpush.bf16.msra.mxu0 %v2904
        %2983 = vmatmul.bf16.gmra.mxu0 %v2945
        %v2984 = vpop.f32.mrf.mxu0
        %v2985 = vadd.f32 %v2971, %v2984
        %v2986 = vpop.f32.mrf.mxu0
        %v2987 = vadd.f32 %v2973, %v2986
        %2988 = vdwg.mxu0
        %2989 = vmatpush.bf16.msra.mxu0 %v2887
        %2990 = vmatpush.bf16.msra.mxu0 %v2885
        %2991 = vmatpush.bf16.msra.mxu0 %v2883
        %2992 = vmatpush.bf16.msra.mxu0 %v2881
        %2993 = vmatpush.bf16.msra.mxu0 %v2879
        %2994 = vmatpush.bf16.msra.mxu0 %v2877
        %2995 = vmatpush.bf16.msra.mxu0 %v2875
        %2996 = vmatpush.bf16.msra.mxu0 %v2873
        %2997 = vmatmul.bf16.gmra.mxu0 %v2759
        %v2998 = vpop.f32.mrf.mxu0
        %v2999 = vadd.f32 %v2742, %v2998
        %v3000 = vpop.f32.mrf.mxu0
        %v3001 = vadd.f32 %v2747, %v3000
        %3002 = vdwg.mxu0
        %3003 = vmatpush.bf16.msra.mxu0 %v2903
        %3004 = vmatpush.bf16.msra.mxu0 %v2901
        %3005 = vmatpush.bf16.msra.mxu0 %v2899
        %3006 = vmatpush.bf16.msra.mxu0 %v2897
        %3007 = vmatpush.bf16.msra.mxu0 %v2895
        %3008 = vmatpush.bf16.msra.mxu0 %v2893
        %3009 = vmatpush.bf16.msra.mxu0 %v2891
        %3010 = vmatpush.bf16.msra.mxu0 %v2889
        %3011 = vmatmul.bf16.gmra.mxu0 %v2760
        %v3012 = vpop.f32.mrf.mxu0
        %v3013 = vadd.f32 %v2999, %v3012
        %v3014 = vpop.f32.mrf.mxu0
        %v3015 = vadd.f32 %v3001, %v3014
        %3016 = vdwg.mxu0
        %3017 = vmatpush.bf16.msra.mxu0 0
        %3018 = vmatpush.bf16.msra.mxu0 0
        %3019 = vmatpush.bf16.msra.mxu0 0
        %3020 = vmatpush.bf16.msra.mxu0 0
        %3021 = vmatpush.bf16.msra.mxu0 0
        %3022 = vmatpush.bf16.msra.mxu0 0
        %3023 = vmatpush.bf16.msra.mxu0 %v2907
        %3024 = vmatpush.bf16.msra.mxu0 %v2905
        %3025 = vmatmul.bf16.gmra.mxu0 %v2945
        %v3026 = vpop.f32.mrf.mxu0
        %v3027 = vadd.f32 %v3013, %v3026
        %v3028 = vpop.f32.mrf.mxu0
        %v3029 = vadd.f32 %v3015, %v3028
        %3030 = vdwg.mxu0
        %v3031 = vpack.c.bf16 %v3027, %v2985
        %v3032 = vpack.c.bf16 %v3029, %v2987
        %3033 = vst [vmem:[%s406] sm:$0xff] %v3031
        %vm3034 = vcmask 1043456
        %vm3035 = vsmask.f32 3328
        %vm3036 = vmand %vm3034, %vm3035
        %vm3037 = vcmask 1047556
        %vm3038 = vsmask.f32 7424
        %vm3039 = vmand %vm3037, %vm3038
        %vm3040 = vmor %vm3039, %vm3036
        %v3041 = vld [vmem:[%s406 + $0x8] sm:$0xff]
        %v3042 = vsel %vm3040, %v3032, %v3041
        %3043 = vst [vmem:[%s406 + $0x8] sm:$0xff] %v3042
        %s3044 = scalar_lea.vmem [#allocation5], 48
        %v3045 = vld [vmem:[%s3044] sm:$0xff]
        %v3046 = vld [vmem:[%s3044 + $0x8] sm:$0xf]
        %v3047 = vld [vmem:[%s3044 + $0xc] sm:$0xff]
        %v3048 = vld [vmem:[%s3044 + $0x14] sm:$0xf]
        %v3049 = vld [vmem:[%s3044 + $0x18] sm:$0xff]
        %v3050 = vld [vmem:[%s3044 + $0x20] sm:$0xf]
        %v3051 = vld [vmem:[%s3044 + $0x24] sm:$0xff]
        %v3052 = vld [vmem:[%s3044 + $0x2c] sm:$0xf]
        %s3053 = scalar_lea.vmem %s4, 32
        %v3054 = vld [vmem:[%s3053] sm:$0xff]
        %v3055 = vld [vmem:[%s3053 + $0x8] sm:$0xff]
        %v3056 = vld [vmem:[%s3053 + $0x10] sm:$0xff]
        %v3057 = vld [vmem:[%s3053 + $0x18] sm:$0xff]
        %3058 = vst [vmem:[#allocation2 + $0x4] sm:$0xff] %v1519
        %3059 = vst [vmem:[#allocation2 + $0x14] sm:$0xff] %v1520
        %3060 = vst [vmem:[#allocation2 + $0x24] sm:$0xff] %v1521
        %3061 = vst [vmem:[#allocation2 + $0x34] sm:$0xff] %v1522
        %v3062 = vld [vmem:[#allocation2] sm:$0xff]
        %v3063 = vld [vmem:[#allocation2 + $0x8] sm:$0xf]
        %v3064 = vld [vmem:[#allocation2 + $0x10] sm:$0xff]
        %v3065 = vld [vmem:[#allocation2 + $0x18] sm:$0xf]
        %v3066 = vld [vmem:[#allocation2 + $0x20] sm:$0xff]
        %v3067 = vld [vmem:[#allocation2 + $0x28] sm:$0xf]
        %v3068 = vld [vmem:[#allocation2 + $0x30] sm:$0xff]
        %v3069 = vld [vmem:[#allocation2 + $0x38] sm:$0xf]
        %v3070 = vsel %vm511, %v3062, 0
        %v3071 = vsel %vm518, %v3063, 0
        %v3072 = vsel %vm511, %v3064, 0
        %v3073 = vsel %vm518, %v3065, 0
        %v3074 = vsel %vm511, %v3066, 0
        %v3075 = vsel %vm518, %v3067, 0
        %v3076 = vsel %vm511, %v3068, 0
        %v3077 = vsel %vm518, %v3069, 0
        %v3078 = vsel %vm544, %v3062, 0
        %v3079 = vsel %vm551, %v3063, 0
        %v3080 = vsel %vm544, %v3064, 0
        %v3081 = vsel %vm551, %v3065, 0
        %v3082 = vsel %vm544, %v3066, 0
        %v3083 = vsel %vm551, %v3067, 0
        %v3084 = vsel %vm544, %v3068, 0
        %v3085 = vsel %vm551, %v3069, 0
        %v3086 = vsel %vm571, %v3062, 0
        %v3087 = vsel %vm578, %v3063, 0
        %v3088 = vsel %vm571, %v3064, 0
        %v3089 = vsel %vm578, %v3065, 0
        %v3090 = vsel %vm571, %v3066, 0
        %v3091 = vsel %vm578, %v3067, 0
        %v3092 = vsel %vm571, %v3068, 0
        %v3093 = vsel %vm578, %v3069, 0
        %v3094 = vld [vmem:[#allocation2 + $0x4] sm:$0xff]
        %v3095 = vld [vmem:[#allocation2 + $0x14] sm:$0xff]
        %v3096 = vld [vmem:[#allocation2 + $0x24] sm:$0xff]
        %v3097 = vld [vmem:[#allocation2 + $0x34] sm:$0xff]
        %v3098 = vld [vmem:[#allocation2 + $0x4] sm:$0xff]
        %v3099 = vld [vmem:[#allocation2 + $0xc] sm:$0xf]
        %v3100 = vld [vmem:[#allocation2 + $0x14] sm:$0xff]
        %v3101 = vld [vmem:[#allocation2 + $0x1c] sm:$0xf]
        %v3102 = vld [vmem:[#allocation2 + $0x24] sm:$0xff]
        %v3103 = vld [vmem:[#allocation2 + $0x2c] sm:$0xf]
        %v3104 = vld [vmem:[#allocation2 + $0x34] sm:$0xff]
        %v3105 = vld [vmem:[#allocation2 + $0x3c] sm:$0xf]
        %v3106 = vsel %vm610, %v3098, 0
        %v3107 = vsel %vm617, %v3099, 0
        %v3108 = vsel %vm610, %v3100, 0
        %v3109 = vsel %vm617, %v3101, 0
        %v3110 = vsel %vm610, %v3102, 0
        %v3111 = vsel %vm617, %v3103, 0
        %v3112 = vsel %vm610, %v3104, 0
        %v3113 = vsel %vm617, %v3105, 0
        %v3114 = vsel %vm637, %v3098, 0
        %v3115 = vsel %vm644, %v3099, 0
        %v3116 = vsel %vm637, %v3100, 0
        %v3117 = vsel %vm644, %v3101, 0
        %v3118 = vsel %vm637, %v3102, 0
        %v3119 = vsel %vm644, %v3103, 0
        %v3120 = vsel %vm637, %v3104, 0
        %v3121 = vsel %vm644, %v3105, 0
        %v3122 = vsel %vm664, %v3098, 0
        %v3123 = vsel %vm671, %v3099, 0
        %v3124 = vsel %vm664, %v3100, 0
        %v3125 = vsel %vm671, %v3101, 0
        %v3126 = vsel %vm664, %v3102, 0
        %v3127 = vsel %vm671, %v3103, 0
        %v3128 = vsel %vm664, %v3104, 0
        %v3129 = vsel %vm671, %v3105, 0
        %v3138 = vunpack.c.l.b16 %v3070
        %v3139 = vunpack.c.h.b16 %v3070
        %v3140 = vunpack.c.l.b16 %v3071
        %v3141 = vunpack.c.l.b16 %v3072
        %v3142 = vunpack.c.h.b16 %v3072
        %v3143 = vunpack.c.l.b16 %v3073
        %v3144 = vunpack.c.l.b16 %v3074
        %v3145 = vunpack.c.h.b16 %v3074
        %v3146 = vunpack.c.l.b16 %v3075
        %v3147 = vunpack.c.l.b16 %v3076
        %v3148 = vunpack.c.h.b16 %v3076
        %v3149 = vunpack.c.l.b16 %v3077
        %v3150 = vpack.c.b16 %v3141, %v3138
        %v3151 = vpack.c.b16 %v3142, %v3139
        %v3152 = vpack.c.b16 %v3143, %v3140
        %v3153 = vpack.c.b16 %v3147, %v3144
        %v3154 = vpack.c.b16 %v3148, %v3145
        %v3155 = vpack.c.b16 %v3149, %v3146
        %v3164 = vunpack.c.l.b16 %v3062
        %v3165 = vunpack.c.h.b16 %v3062
        %v3166 = vunpack.c.l.b16 %v3063
        %v3167 = vunpack.c.l.b16 %v3064
        %v3168 = vunpack.c.h.b16 %v3064
        %v3169 = vunpack.c.l.b16 %v3065
        %v3170 = vunpack.c.l.b16 %v3066
        %v3171 = vunpack.c.h.b16 %v3066
        %v3172 = vunpack.c.l.b16 %v3067
        %v3173 = vunpack.c.l.b16 %v3068
        %v3174 = vunpack.c.h.b16 %v3068
        %v3175 = vunpack.c.l.b16 %v3069
        %v3176 = vpack.c.b16 %v3167, %v3164
        %v3177 = vpack.c.b16 %v3168, %v3165
        %v3178 = vpack.c.b16 %v3169, %v3166
        %v3179 = vpack.c.b16 %v3173, %v3170
        %v3180 = vpack.c.b16 %v3174, %v3171
        %v3181 = vpack.c.b16 %v3175, %v3172
        %3182 = vrot.lane.b32.xlu0 %v3176, 127
        %v3183 = vpop.permute.xlu0 %3182
        %3184 = vrot.lane.b32.xlu0 %v3177, 127
        %v3185 = vpop.permute.xlu0 %3184
        %3186 = vrot.lane.b32.xlu0 %v3178, 127
        %v3187 = vpop.permute.xlu0 %3186
        %3188 = vrot.lane.b32.xlu0 %v3179, 127
        %v3189 = vpop.permute.xlu0 %3188
        %3190 = vrot.lane.b32.xlu0 %v3180, 127
        %v3191 = vpop.permute.xlu0 %3190
        %3192 = vrot.lane.b32.xlu0 %v3181, 127
        %v3193 = vpop.permute.xlu0 %3192
        %v3194 = vsel %vm563, %v3183, %v3185
        %v3195 = vsel %vm563, %v3185, %v3187
        %v3196 = vsel %vm563, %v3189, %v3191
        %v3197 = vsel %vm563, %v3191, %v3193
        %v3206 = vunpack.c.l.b16 %v3078
        %v3207 = vunpack.c.h.b16 %v3078
        %v3208 = vunpack.c.l.b16 %v3079
        %v3209 = vunpack.c.l.b16 %v3080
        %v3210 = vunpack.c.h.b16 %v3080
        %v3211 = vunpack.c.l.b16 %v3081
        %v3212 = vunpack.c.l.b16 %v3082
        %v3213 = vunpack.c.h.b16 %v3082
        %v3214 = vunpack.c.l.b16 %v3083
        %v3215 = vunpack.c.l.b16 %v3084
        %v3216 = vunpack.c.h.b16 %v3084
        %v3217 = vunpack.c.l.b16 %v3085
        %v3218 = vpack.c.b16 %v3209, %v3206
        %v3219 = vpack.c.b16 %v3210, %v3207
        %v3220 = vpack.c.b16 %v3211, %v3208
        %v3221 = vpack.c.b16 %v3215, %v3212
        %v3222 = vpack.c.b16 %v3216, %v3213
        %v3223 = vpack.c.b16 %v3217, %v3214
        %3224 = vrot.lane.b32.xlu0 %v3218, 126
        %v3225 = vpop.permute.xlu0 %3224
        %3226 = vrot.lane.b32.xlu0 %v3219, 126
        %v3227 = vpop.permute.xlu0 %3226
        %3228 = vrot.lane.b32.xlu0 %v3220, 126
        %v3229 = vpop.permute.xlu0 %3228
        %3230 = vrot.lane.b32.xlu0 %v3221, 126
        %v3231 = vpop.permute.xlu0 %3230
        %3232 = vrot.lane.b32.xlu0 %v3222, 126
        %v3233 = vpop.permute.xlu0 %3232
        %3234 = vrot.lane.b32.xlu0 %v3223, 126
        %v3235 = vpop.permute.xlu0 %3234
        %v3236 = vsel %vm786, %v3225, %v3227
        %v3237 = vsel %vm786, %v3227, %v3229
        %v3238 = vsel %vm786, %v3231, %v3233
        %v3239 = vsel %vm786, %v3233, %v3235
        %v3248 = vunpack.c.l.b16 %v3086
        %v3249 = vunpack.c.h.b16 %v3086
        %v3250 = vunpack.c.l.b16 %v3087
        %v3251 = vunpack.c.l.b16 %v3088
        %v3252 = vunpack.c.h.b16 %v3088
        %v3253 = vunpack.c.l.b16 %v3089
        %v3254 = vunpack.c.l.b16 %v3090
        %v3255 = vunpack.c.h.b16 %v3090
        %v3256 = vunpack.c.l.b16 %v3091
        %v3257 = vunpack.c.l.b16 %v3092
        %v3258 = vunpack.c.h.b16 %v3092
        %v3259 = vunpack.c.l.b16 %v3093
        %v3260 = vpack.c.b16 %v3251, %v3248
        %v3261 = vpack.c.b16 %v3252, %v3249
        %v3262 = vpack.c.b16 %v3253, %v3250
        %v3263 = vpack.c.b16 %v3257, %v3254
        %v3264 = vpack.c.b16 %v3258, %v3255
        %v3265 = vpack.c.b16 %v3259, %v3256
        %3266 = vrot.lane.b32.xlu0 %v3260, 112
        %v3267 = vpop.permute.xlu0 %3266
        %3268 = vrot.lane.b32.xlu0 %v3261, 112
        %v3269 = vpop.permute.xlu0 %3268
        %3270 = vrot.lane.b32.xlu0 %v3262, 112
        %v3271 = vpop.permute.xlu0 %3270
        %3272 = vrot.lane.b32.xlu0 %v3263, 112
        %v3273 = vpop.permute.xlu0 %3272
        %3274 = vrot.lane.b32.xlu0 %v3264, 112
        %v3275 = vpop.permute.xlu0 %3274
        %3276 = vrot.lane.b32.xlu0 %v3265, 112
        %v3277 = vpop.permute.xlu0 %3276
        %v3278 = vsel %vm829, %v3267, %v3269
        %v3279 = vsel %vm829, %v3269, %v3271
        %v3280 = vsel %vm829, %v3273, %v3275
        %v3281 = vsel %vm829, %v3275, %v3277
        %v3286 = vunpack.c.l.b16 %v3094
        %v3287 = vunpack.c.h.b16 %v3094
        %v3288 = vunpack.c.l.b16 %v3095
        %v3289 = vunpack.c.h.b16 %v3095
        %v3290 = vunpack.c.l.b16 %v3096
        %v3291 = vunpack.c.h.b16 %v3096
        %v3292 = vunpack.c.l.b16 %v3097
        %v3293 = vunpack.c.h.b16 %v3097
        %v3294 = vpack.c.b16 %v3288, %v3286
        %v3295 = vpack.c.b16 %v3289, %v3287
        %v3296 = vpack.c.b16 %v3292, %v3290
        %v3297 = vpack.c.b16 %v3293, %v3291
        %3298 = vrot.lane.b32.xlu0 %v3294, 111
        %v3299 = vpop.permute.xlu0 %3298
        %3300 = vrot.lane.b32.xlu0 %v3295, 111
        %v3301 = vpop.permute.xlu0 %3300
        %3302 = vrot.lane.b32.xlu0 %v3296, 111
        %v3303 = vpop.permute.xlu0 %3302
        %3304 = vrot.lane.b32.xlu0 %v3297, 111
        %v3305 = vpop.permute.xlu0 %3304
        %v3306 = vsel %vm503, %v3299, %v3301
        %v3307 = vsel %vm503, %v3303, %v3305
        %v3316 = vunpack.c.l.b16 %v3106
        %v3317 = vunpack.c.h.b16 %v3106
        %v3318 = vunpack.c.l.b16 %v3107
        %v3319 = vunpack.c.l.b16 %v3108
        %v3320 = vunpack.c.h.b16 %v3108
        %v3321 = vunpack.c.l.b16 %v3109
        %v3322 = vunpack.c.l.b16 %v3110
        %v3323 = vunpack.c.h.b16 %v3110
        %v3324 = vunpack.c.l.b16 %v3111
        %v3325 = vunpack.c.l.b16 %v3112
        %v3326 = vunpack.c.h.b16 %v3112
        %v3327 = vunpack.c.l.b16 %v3113
        %v3328 = vpack.c.b16 %v3319, %v3316
        %v3329 = vpack.c.b16 %v3320, %v3317
        %v3330 = vpack.c.b16 %v3321, %v3318
        %v3331 = vpack.c.b16 %v3325, %v3322
        %v3332 = vpack.c.b16 %v3326, %v3323
        %v3333 = vpack.c.b16 %v3327, %v3324
        %3334 = vrot.lane.b32.xlu0 %v3328, 110
        %v3335 = vpop.permute.xlu0 %3334
        %3336 = vrot.lane.b32.xlu0 %v3329, 110
        %v3337 = vpop.permute.xlu0 %3336
        %3338 = vrot.lane.b32.xlu0 %v3330, 110
        %v3339 = vpop.permute.xlu0 %3338
        %3340 = vrot.lane.b32.xlu0 %v3331, 110
        %v3341 = vpop.permute.xlu0 %3340
        %3342 = vrot.lane.b32.xlu0 %v3332, 110
        %v3343 = vpop.permute.xlu0 %3342
        %3344 = vrot.lane.b32.xlu0 %v3333, 110
        %v3345 = vpop.permute.xlu0 %3344
        %v3346 = vsel %vm898, %v3335, %v3337
        %v3347 = vsel %vm898, %v3337, %v3339
        %v3348 = vsel %vm898, %v3341, %v3343
        %v3349 = vsel %vm898, %v3343, %v3345
        %v3358 = vunpack.c.l.b16 %v3114
        %v3359 = vunpack.c.h.b16 %v3114
        %v3360 = vunpack.c.l.b16 %v3115
        %v3361 = vunpack.c.l.b16 %v3116
        %v3362 = vunpack.c.h.b16 %v3116
        %v3363 = vunpack.c.l.b16 %v3117
        %v3364 = vunpack.c.l.b16 %v3118
        %v3365 = vunpack.c.h.b16 %v3118
        %v3366 = vunpack.c.l.b16 %v3119
        %v3367 = vunpack.c.l.b16 %v3120
        %v3368 = vunpack.c.h.b16 %v3120
        %v3369 = vunpack.c.l.b16 %v3121
        %v3370 = vpack.c.b16 %v3361, %v3358
        %v3371 = vpack.c.b16 %v3362, %v3359
        %v3372 = vpack.c.b16 %v3363, %v3360
        %v3373 = vpack.c.b16 %v3367, %v3364
        %v3374 = vpack.c.b16 %v3368, %v3365
        %v3375 = vpack.c.b16 %v3369, %v3366
        %3376 = vrot.lane.b32.xlu0 %v3370, 96
        %v3377 = vpop.permute.xlu0 %3376
        %3378 = vrot.lane.b32.xlu0 %v3371, 96
        %v3379 = vpop.permute.xlu0 %3378
        %3380 = vrot.lane.b32.xlu0 %v3372, 96
        %v3381 = vpop.permute.xlu0 %3380
        %3382 = vrot.lane.b32.xlu0 %v3373, 96
        %v3383 = vpop.permute.xlu0 %3382
        %3384 = vrot.lane.b32.xlu0 %v3374, 96
        %v3385 = vpop.permute.xlu0 %3384
        %3386 = vrot.lane.b32.xlu0 %v3375, 96
        %v3387 = vpop.permute.xlu0 %3386
        %v3388 = vsel %vm941, %v3377, %v3379
        %v3389 = vsel %vm941, %v3379, %v3381
        %v3390 = vsel %vm941, %v3383, %v3385
        %v3391 = vsel %vm941, %v3385, %v3387
        %v3400 = vunpack.c.l.b16 %v3098
        %v3401 = vunpack.c.h.b16 %v3098
        %v3402 = vunpack.c.l.b16 %v3099
        %v3403 = vunpack.c.l.b16 %v3100
        %v3404 = vunpack.c.h.b16 %v3100
        %v3405 = vunpack.c.l.b16 %v3101
        %v3406 = vunpack.c.l.b16 %v3102
        %v3407 = vunpack.c.h.b16 %v3102
        %v3408 = vunpack.c.l.b16 %v3103
        %v3409 = vunpack.c.l.b16 %v3104
        %v3410 = vunpack.c.h.b16 %v3104
        %v3411 = vunpack.c.l.b16 %v3105
        %v3412 = vpack.c.b16 %v3403, %v3400
        %v3413 = vpack.c.b16 %v3404, %v3401
        %v3414 = vpack.c.b16 %v3405, %v3402
        %v3415 = vpack.c.b16 %v3409, %v3406
        %v3416 = vpack.c.b16 %v3410, %v3407
        %v3417 = vpack.c.b16 %v3411, %v3408
        %3418 = vrot.lane.b32.xlu0 %v3412, 95
        %v3419 = vpop.permute.xlu0 %3418
        %3420 = vrot.lane.b32.xlu0 %v3413, 95
        %v3421 = vpop.permute.xlu0 %3420
        %3422 = vrot.lane.b32.xlu0 %v3414, 95
        %v3423 = vpop.permute.xlu0 %3422
        %3424 = vrot.lane.b32.xlu0 %v3415, 95
        %v3425 = vpop.permute.xlu0 %3424
        %3426 = vrot.lane.b32.xlu0 %v3416, 95
        %v3427 = vpop.permute.xlu0 %3426
        %3428 = vrot.lane.b32.xlu0 %v3417, 95
        %v3429 = vpop.permute.xlu0 %3428
        %v3430 = vsel %vm984, %v3419, %v3421
        %v3431 = vsel %vm984, %v3421, %v3423
        %v3432 = vsel %vm984, %v3425, %v3427
        %v3433 = vsel %vm984, %v3427, %v3429
        %v3442 = vunpack.c.l.b16 %v3122
        %v3443 = vunpack.c.h.b16 %v3122
        %v3444 = vunpack.c.l.b16 %v3123
        %v3445 = vunpack.c.l.b16 %v3124
        %v3446 = vunpack.c.h.b16 %v3124
        %v3447 = vunpack.c.l.b16 %v3125
        %v3448 = vunpack.c.l.b16 %v3126
        %v3449 = vunpack.c.h.b16 %v3126
        %v3450 = vunpack.c.l.b16 %v3127
        %v3451 = vunpack.c.l.b16 %v3128
        %v3452 = vunpack.c.h.b16 %v3128
        %v3453 = vunpack.c.l.b16 %v3129
        %v3454 = vpack.c.b16 %v3445, %v3442
        %v3455 = vpack.c.b16 %v3446, %v3443
        %v3456 = vpack.c.b16 %v3447, %v3444
        %v3457 = vpack.c.b16 %v3451, %v3448
        %v3458 = vpack.c.b16 %v3452, %v3449
        %v3459 = vpack.c.b16 %v3453, %v3450
        %3460 = vrot.lane.b32.xlu0 %v3454, 94
        %v3461 = vpop.permute.xlu0 %3460
        %3462 = vrot.lane.b32.xlu0 %v3455, 94
        %v3463 = vpop.permute.xlu0 %3462
        %3464 = vrot.lane.b32.xlu0 %v3456, 94
        %v3465 = vpop.permute.xlu0 %3464
        %3466 = vrot.lane.b32.xlu0 %v3457, 94
        %v3467 = vpop.permute.xlu0 %3466
        %3468 = vrot.lane.b32.xlu0 %v3458, 94
        %v3469 = vpop.permute.xlu0 %3468
        %3470 = vrot.lane.b32.xlu0 %v3459, 94
        %v3471 = vpop.permute.xlu0 %3470
        %v3472 = vsel %vm1027, %v3461, %v3463
        %v3473 = vsel %vm1027, %v3463, %v3465
        %v3474 = vsel %vm1027, %v3467, %v3469
        %v3475 = vsel %vm1027, %v3469, %v3471
        %3477 = vset.pattern.permute.xlu0 0
        %3478 = vperm.xlu0 %3477, %v3054
        %v3479 = vpop.permute.xlu0 %3478
        %3482 = vset.pattern.permute.xlu0 0
        %3483 = vperm.xlu0 %3482, %v3055
        %v3484 = vpop.permute.xlu0 %3483
        %3487 = vset.pattern.permute.xlu0 0
        %3488 = vperm.xlu0 %3487, %v3056
        %v3489 = vpop.permute.xlu0 %3488
        %3492 = vset.pattern.permute.xlu0 0
        %3493 = vperm.xlu0 %3492, %v3057
        %v3494 = vpop.permute.xlu0 %3493
        %v3504 = vunpack.c.l.b16 %v3045
        %v3505 = vunpack.c.h.b16 %v3045
        %v3506 = vunpack.c.l.b16 %v3046
        %v3507 = vunpack.c.l.b16 %v3047
        %v3508 = vunpack.c.h.b16 %v3047
        %v3509 = vunpack.c.l.b16 %v3048
        %v3510 = vunpack.c.l.b16 %v3049
        %v3511 = vunpack.c.h.b16 %v3049
        %v3512 = vunpack.c.l.b16 %v3050
        %v3513 = vunpack.c.l.b16 %v3051
        %v3514 = vunpack.c.h.b16 %v3051
        %v3515 = vunpack.c.l.b16 %v3052
        %v3516 = vpack.c.b16 %v3507, %v3504
        %v3517 = vpack.c.b16 %v3508, %v3505
        %v3518 = vpack.c.b16 %v3509, %v3506
        %v3519 = vpack.c.b16 %v3513, %v3510
        %v3520 = vpack.c.b16 %v3514, %v3511
        %v3521 = vpack.c.b16 %v3515, %v3512
        %3526 = vrot.lane.b32.xlu0 %v3150, 17
        %v3527 = vpop.permute.xlu0 %3526
        %3528 = vrot.lane.b32.xlu0 %v3151, 17
        %v3529 = vpop.permute.xlu0 %3528
        %3530 = vrot.lane.b32.xlu0 %v3152, 17
        %v3531 = vpop.permute.xlu0 %3530
        %3532 = vrot.lane.b32.xlu0 %v3153, 17
        %v3533 = vpop.permute.xlu0 %3532
        %3534 = vrot.lane.b32.xlu0 %v3154, 17
        %v3535 = vpop.permute.xlu0 %3534
        %3536 = vrot.lane.b32.xlu0 %v3155, 17
        %v3537 = vpop.permute.xlu0 %3536
        %3538 = vrot.lane.b32.xlu0 %v3194, 17
        %v3539 = vpop.permute.xlu0 %3538
        %3540 = vrot.lane.b32.xlu0 %v3195, 17
        %v3541 = vpop.permute.xlu0 %3540
        %3542 = vrot.lane.b32.xlu0 %v3187, 17
        %v3543 = vpop.permute.xlu0 %3542
        %3544 = vrot.lane.b32.xlu0 %v3196, 17
        %v3545 = vpop.permute.xlu0 %3544
        %3546 = vrot.lane.b32.xlu0 %v3197, 17
        %v3547 = vpop.permute.xlu0 %3546
        %3548 = vrot.lane.b32.xlu0 %v3193, 17
        %v3549 = vpop.permute.xlu0 %3548
        %3550 = vrot.lane.b32.xlu0 %v3236, 17
        %v3551 = vpop.permute.xlu0 %3550
        %3552 = vrot.lane.b32.xlu0 %v3237, 17
        %v3553 = vpop.permute.xlu0 %3552
        %3554 = vrot.lane.b32.xlu0 %v3229, 17
        %v3555 = vpop.permute.xlu0 %3554
        %3556 = vrot.lane.b32.xlu0 %v3238, 17
        %v3557 = vpop.permute.xlu0 %3556
        %3558 = vrot.lane.b32.xlu0 %v3239, 17
        %v3559 = vpop.permute.xlu0 %3558
        %3560 = vrot.lane.b32.xlu0 %v3235, 17
        %v3561 = vpop.permute.xlu0 %3560
        %3562 = vrot.lane.b32.xlu0 %v3278, 17
        %v3563 = vpop.permute.xlu0 %3562
        %3564 = vrot.lane.b32.xlu0 %v3279, 17
        %v3565 = vpop.permute.xlu0 %3564
        %3566 = vrot.lane.b32.xlu0 %v3271, 17
        %v3567 = vpop.permute.xlu0 %3566
        %3568 = vrot.lane.b32.xlu0 %v3280, 17
        %v3569 = vpop.permute.xlu0 %3568
        %3570 = vrot.lane.b32.xlu0 %v3281, 17
        %v3571 = vpop.permute.xlu0 %3570
        %3572 = vrot.lane.b32.xlu0 %v3277, 17
        %v3573 = vpop.permute.xlu0 %3572
        %3574 = vrot.lane.b32.xlu0 %v3299, 17
        %v3575 = vpop.permute.xlu0 %3574
        %3576 = vrot.lane.b32.xlu0 %v3306, 17
        %v3577 = vpop.permute.xlu0 %3576
        %3578 = vrot.lane.b32.xlu0 %v3301, 17
        %v3579 = vpop.permute.xlu0 %3578
        %3580 = vrot.lane.b32.xlu0 %v3303, 17
        %v3581 = vpop.permute.xlu0 %3580
        %3582 = vrot.lane.b32.xlu0 %v3307, 17
        %v3583 = vpop.permute.xlu0 %3582
        %3584 = vrot.lane.b32.xlu0 %v3305, 17
        %v3585 = vpop.permute.xlu0 %3584
        %3586 = vrot.lane.b32.xlu0 %v3335, 17
        %v3587 = vpop.permute.xlu0 %3586
        %3588 = vrot.lane.b32.xlu0 %v3346, 17
        %v3589 = vpop.permute.xlu0 %3588
        %3590 = vrot.lane.b32.xlu0 %v3347, 17
        %v3591 = vpop.permute.xlu0 %3590
        %3592 = vrot.lane.b32.xlu0 %v3341, 17
        %v3593 = vpop.permute.xlu0 %3592
        %3594 = vrot.lane.b32.xlu0 %v3348, 17
        %v3595 = vpop.permute.xlu0 %3594
        %3596 = vrot.lane.b32.xlu0 %v3349, 17
        %v3597 = vpop.permute.xlu0 %3596
        %3598 = vrot.lane.b32.xlu0 %v3377, 17
        %v3599 = vpop.permute.xlu0 %3598
        %3600 = vrot.lane.b32.xlu0 %v3388, 17
        %v3601 = vpop.permute.xlu0 %3600
        %3602 = vrot.lane.b32.xlu0 %v3389, 17
        %v3603 = vpop.permute.xlu0 %3602
        %3604 = vrot.lane.b32.xlu0 %v3383, 17
        %v3605 = vpop.permute.xlu0 %3604
        %3606 = vrot.lane.b32.xlu0 %v3390, 17
        %v3607 = vpop.permute.xlu0 %3606
        %3608 = vrot.lane.b32.xlu0 %v3391, 17
        %v3609 = vpop.permute.xlu0 %3608
        %3610 = vrot.lane.b32.xlu0 %v3419, 17
        %v3611 = vpop.permute.xlu0 %3610
        %3612 = vrot.lane.b32.xlu0 %v3430, 17
        %v3613 = vpop.permute.xlu0 %3612
        %3614 = vrot.lane.b32.xlu0 %v3431, 17
        %v3615 = vpop.permute.xlu0 %3614
        %3616 = vrot.lane.b32.xlu0 %v3425, 17
        %v3617 = vpop.permute.xlu0 %3616
        %3618 = vrot.lane.b32.xlu0 %v3432, 17
        %v3619 = vpop.permute.xlu0 %3618
        %3620 = vrot.lane.b32.xlu0 %v3433, 17
        %v3621 = vpop.permute.xlu0 %3620
        %3622 = vrot.lane.b32.xlu0 %v3461, 17
        %v3623 = vpop.permute.xlu0 %3622
        %3624 = vrot.lane.b32.xlu0 %v3472, 17
        %v3625 = vpop.permute.xlu0 %3624
        %3626 = vrot.lane.b32.xlu0 %v3473, 17
        %v3627 = vpop.permute.xlu0 %3626
        %3628 = vrot.lane.b32.xlu0 %v3467, 17
        %v3629 = vpop.permute.xlu0 %3628
        %3630 = vrot.lane.b32.xlu0 %v3474, 17
        %v3631 = vpop.permute.xlu0 %3630
        %3632 = vrot.lane.b32.xlu0 %v3475, 17
        %v3633 = vpop.permute.xlu0 %3632
        %v3634 = vsel %vm656, %v3527, %v3529
        %v3635 = vsel %vm656, %v3529, %v3531
        %v3636 = vsel %vm656, %v3533, %v3535
        %v3637 = vsel %vm656, %v3535, %v3537
        %v3638 = vsel %vm656, %v3539, %v3541
        %v3639 = vsel %vm656, %v3541, %v3543
        %v3640 = vsel %vm656, %v3545, %v3547
        %v3641 = vsel %vm656, %v3547, %v3549
        %v3642 = vsel %vm656, %v3551, %v3553
        %v3643 = vsel %vm656, %v3553, %v3555
        %v3644 = vsel %vm656, %v3557, %v3559
        %v3645 = vsel %vm656, %v3559, %v3561
        %v3646 = vsel %vm656, %v3563, %v3565
        %v3647 = vsel %vm656, %v3565, %v3567
        %v3648 = vsel %vm656, %v3569, %v3571
        %v3649 = vsel %vm656, %v3571, %v3573
        %v3650 = vsel %vm656, %v3575, %v3577
        %v3651 = vsel %vm656, %v3577, %v3579
        %v3652 = vsel %vm656, %v3581, %v3583
        %v3653 = vsel %vm656, %v3583, %v3585
        %v3654 = vsel %vm656, %v3587, %v3589
        %v3655 = vsel %vm656, %v3589, %v3591
        %v3656 = vsel %vm656, %v3593, %v3595
        %v3657 = vsel %vm656, %v3595, %v3597
        %v3658 = vsel %vm656, %v3599, %v3601
        %v3659 = vsel %vm656, %v3601, %v3603
        %v3660 = vsel %vm656, %v3605, %v3607
        %v3661 = vsel %vm656, %v3607, %v3609
        %v3662 = vsel %vm656, %v3611, %v3613
        %v3663 = vsel %vm656, %v3613, %v3615
        %v3664 = vsel %vm656, %v3617, %v3619
        %v3665 = vsel %vm656, %v3619, %v3621
        %v3666 = vsel %vm656, %v3623, %v3625
        %v3667 = vsel %vm656, %v3625, %v3627
        %v3668 = vsel %vm656, %v3629, %v3631
        %v3669 = vsel %vm656, %v3631, %v3633
        %v3707 = vsel %vm1312, %v3518, 0
        %v3710 = vsel %vm1312, %v3521, 0
        %3712 = vmatpush.bf16.msra.mxu0 %v3648
        %3713 = vmatpush.bf16.msra.mxu0 %v3646
        %3714 = vmatpush.bf16.msra.mxu0 %v3644
        %3715 = vmatpush.bf16.msra.mxu0 %v3642
        %3716 = vmatpush.bf16.msra.mxu0 %v3640
        %3717 = vmatpush.bf16.msra.mxu0 %v3638
        %3718 = vmatpush.bf16.msra.mxu0 %v3636
        %3719 = vmatpush.bf16.msra.mxu0 %v3634
        %3720 = vmatmul.bf16.gmra.mxu0 %v3516
        %v3721 = vpop.f32.mrf.mxu0
        %v3722 = vadd.f32 %v3479, %v3721
        %v3723 = vpop.f32.mrf.mxu0
        %v3724 = vadd.f32 %v3484, %v3723
        %3725 = vmatmul.bf16.gmra.mxu0 %v3519
        %v3726 = vpop.f32.mrf.mxu0
        %v3727 = vadd.f32 %v3489, %v3726
        %v3728 = vpop.f32.mrf.mxu0
        %v3729 = vadd.f32 %v3494, %v3728
        %3730 = vdwg.mxu0
        %3731 = vmatpush.bf16.msra.mxu0 %v3664
        %3732 = vmatpush.bf16.msra.mxu0 %v3662
        %3733 = vmatpush.bf16.msra.mxu0 %v3660
        %3734 = vmatpush.bf16.msra.mxu0 %v3658
        %3735 = vmatpush.bf16.msra.mxu0 %v3656
        %3736 = vmatpush.bf16.msra.mxu0 %v3654
        %3737 = vmatpush.bf16.msra.mxu0 %v3652
        %3738 = vmatpush.bf16.msra.mxu0 %v3650
        %3739 = vmatmul.bf16.gmra.mxu0 %v3517
        %v3740 = vpop.f32.mrf.mxu0
        %v3741 = vadd.f32 %v3722, %v3740
        %v3742 = vpop.f32.mrf.mxu0
        %v3743 = vadd.f32 %v3724, %v3742
        %3744 = vmatmul.bf16.gmra.mxu0 %v3520
        %v3745 = vpop.f32.mrf.mxu0
        %v3746 = vadd.f32 %v3727, %v3745
        %v3747 = vpop.f32.mrf.mxu0
        %v3748 = vadd.f32 %v3729, %v3747
        %3749 = vdwg.mxu0
        %3750 = vmatpush.bf16.msra.mxu0 0
        %3751 = vmatpush.bf16.msra.mxu0 0
        %3752 = vmatpush.bf16.msra.mxu0 0
        %3753 = vmatpush.bf16.msra.mxu0 0
        %3754 = vmatpush.bf16.msra.mxu0 0
        %3755 = vmatpush.bf16.msra.mxu0 0
        %3756 = vmatpush.bf16.msra.mxu0 %v3668
        %3757 = vmatpush.bf16.msra.mxu0 %v3666
        %3758 = vmatmul.bf16.gmra.mxu0 %v3707
        %v3759 = vpop.f32.mrf.mxu0
        %v3760 = vadd.f32 %v3741, %v3759
        %v3761 = vpop.f32.mrf.mxu0
        %v3762 = vadd.f32 %v3743, %v3761
        %3763 = vmatmul.bf16.gmra.mxu0 %v3710
        %v3764 = vpop.f32.mrf.mxu0
        %v3765 = vadd.f32 %v3746, %v3764
        %v3766 = vpop.f32.mrf.mxu0
        %v3767 = vadd.f32 %v3748, %v3766
        %3768 = vdwg.mxu0
        %3769 = vmatpush.bf16.msra.mxu0 %v3649
        %3770 = vmatpush.bf16.msra.mxu0 %v3647
        %3771 = vmatpush.bf16.msra.mxu0 %v3645
        %3772 = vmatpush.bf16.msra.mxu0 %v3643
        %3773 = vmatpush.bf16.msra.mxu0 %v3641
        %3774 = vmatpush.bf16.msra.mxu0 %v3639
        %3775 = vmatpush.bf16.msra.mxu0 %v3637
        %3776 = vmatpush.bf16.msra.mxu0 %v3635
        %3777 = vmatmul.bf16.gmra.mxu0 %v3516
        %v3778 = vpop.f32.mrf.mxu0
        %v3779 = vadd.f32 %v3479, %v3778
        %v3780 = vpop.f32.mrf.mxu0
        %v3781 = vadd.f32 %v3484, %v3780
        %3782 = vmatmul.bf16.gmra.mxu0 %v3519
        %v3783 = vpop.f32.mrf.mxu0
        %v3784 = vadd.f32 %v3489, %v3783
        %v3785 = vpop.f32.mrf.mxu0
        %v3786 = vadd.f32 %v3494, %v3785
        %3787 = vdwg.mxu0
        %3788 = vmatpush.bf16.msra.mxu0 %v3665
        %3789 = vmatpush.bf16.msra.mxu0 %v3663
        %3790 = vmatpush.bf16.msra.mxu0 %v3661
        %3791 = vmatpush.bf16.msra.mxu0 %v3659
        %3792 = vmatpush.bf16.msra.mxu0 %v3657
        %3793 = vmatpush.bf16.msra.mxu0 %v3655
        %3794 = vmatpush.bf16.msra.mxu0 %v3653
        %3795 = vmatpush.bf16.msra.mxu0 %v3651
        %3796 = vmatmul.bf16.gmra.mxu0 %v3517
        %v3797 = vpop.f32.mrf.mxu0
        %v3798 = vadd.f32 %v3779, %v3797
        %v3799 = vpop.f32.mrf.mxu0
        %v3800 = vadd.f32 %v3781, %v3799
        %3801 = vmatmul.bf16.gmra.mxu0 %v3520
        %v3802 = vpop.f32.mrf.mxu0
        %v3803 = vadd.f32 %v3784, %v3802
        %v3804 = vpop.f32.mrf.mxu0
        %v3805 = vadd.f32 %v3786, %v3804
        %3806 = vdwg.mxu0
        %3807 = vmatpush.bf16.msra.mxu0 0
        %3808 = vmatpush.bf16.msra.mxu0 0
        %3809 = vmatpush.bf16.msra.mxu0 0
        %3810 = vmatpush.bf16.msra.mxu0 0
        %3811 = vmatpush.bf16.msra.mxu0 0
        %3812 = vmatpush.bf16.msra.mxu0 0
        %3813 = vmatpush.bf16.msra.mxu0 %v3669
        %3814 = vmatpush.bf16.msra.mxu0 %v3667
        %3815 = vmatmul.bf16.gmra.mxu0 %v3707
        %v3816 = vpop.f32.mrf.mxu0
        %v3817 = vadd.f32 %v3798, %v3816
        %v3818 = vpop.f32.mrf.mxu0
        %v3819 = vadd.f32 %v3800, %v3818
        %3820 = vmatmul.bf16.gmra.mxu0 %v3710
        %v3821 = vpop.f32.mrf.mxu0
        %v3822 = vadd.f32 %v3803, %v3821
        %v3823 = vpop.f32.mrf.mxu0
        %v3824 = vadd.f32 %v3805, %v3823
        %3825 = vdwg.mxu0
        %v3826 = vmax.f32 %v3760, 0.0
        %v3827 = vmax.f32 %v3817, 0.0
        %v3828 = vmax.f32 %v3762, 0.0
        %v3829 = vmax.f32 %v3819, 0.0
        %v3830 = vmax.f32 %v3765, 0.0
        %v3831 = vmax.f32 %v3822, 0.0
        %v3832 = vmax.f32 %v3767, 0.0
        %v3833 = vmax.f32 %v3824, 0.0
        %v3834 = vpack.c.bf16 %v3827, %v3826
        %v3835 = vpack.c.bf16 %v3829, %v3828
        %v3836 = vpack.c.bf16 %v3831, %v3830
        %v3837 = vpack.c.bf16 %v3833, %v3832
        %v3838 = vld [vmem:[%s7] sm:$0xff]
        %v3839 = vld [vmem:[%s7 + $0x8] sm:$0xf]
        %v3840 = vld [vmem:[%s7 + $0xc] sm:$0x33]
        %v3841 = vld [vmem:[%s7 + $0x14] sm:$0x3]
        %v3842 = vld [vmem:[%s8] sm:$0xff]
        %v3843 = vld [vmem:[%s8 + $0x8] sm:$0xf]
        %3844 = vst [vmem:[#allocation2 + $0x4] sm:$0xff] %v3834
        %3845 = vst [vmem:[#allocation2 + $0x14] sm:$0xff] %v3835
        %3846 = vst [vmem:[#allocation2 + $0x24] sm:$0xff] %v3836
        %3847 = vst [vmem:[#allocation2 + $0x34] sm:$0xff] %v3837
        %v3848 = vld [vmem:[#allocation2] sm:$0xff]
        %v3849 = vld [vmem:[#allocation2 + $0x8] sm:$0xf]
        %v3850 = vld [vmem:[#allocation2 + $0x10] sm:$0xff]
        %v3851 = vld [vmem:[#allocation2 + $0x18] sm:$0xf]
        %v3852 = vld [vmem:[#allocation2 + $0x20] sm:$0xff]
        %v3853 = vld [vmem:[#allocation2 + $0x28] sm:$0xf]
        %v3854 = vld [vmem:[#allocation2 + $0x30] sm:$0xff]
        %v3855 = vld [vmem:[#allocation2 + $0x38] sm:$0xf]
        %v3856 = vsel %vm511, %v3848, 0
        %v3857 = vsel %vm518, %v3849, 0
        %v3858 = vsel %vm511, %v3850, 0
        %v3859 = vsel %vm518, %v3851, 0
        %v3860 = vsel %vm511, %v3852, 0
        %v3861 = vsel %vm518, %v3853, 0
        %v3862 = vsel %vm511, %v3854, 0
        %v3863 = vsel %vm518, %v3855, 0
        %v3864 = vsel %vm544, %v3848, 0
        %v3865 = vsel %vm551, %v3849, 0
        %v3866 = vsel %vm544, %v3850, 0
        %v3867 = vsel %vm551, %v3851, 0
        %v3868 = vsel %vm544, %v3852, 0
        %v3869 = vsel %vm551, %v3853, 0
        %v3870 = vsel %vm544, %v3854, 0
        %v3871 = vsel %vm551, %v3855, 0
        %v3872 = vsel %vm571, %v3848, 0
        %v3873 = vsel %vm578, %v3849, 0
        %v3874 = vsel %vm571, %v3850, 0
        %v3875 = vsel %vm578, %v3851, 0
        %v3876 = vsel %vm571, %v3852, 0
        %v3877 = vsel %vm578, %v3853, 0
        %v3878 = vsel %vm571, %v3854, 0
        %v3879 = vsel %vm578, %v3855, 0
        %v3880 = vld [vmem:[#allocation2 + $0x4] sm:$0xff]
        %v3881 = vld [vmem:[#allocation2 + $0x14] sm:$0xff]
        %v3882 = vld [vmem:[#allocation2 + $0x24] sm:$0xff]
        %v3883 = vld [vmem:[#allocation2 + $0x34] sm:$0xff]
        %v3884 = vld [vmem:[#allocation2 + $0x4] sm:$0xff]
        %v3885 = vld [vmem:[#allocation2 + $0xc] sm:$0xf]
        %v3886 = vld [vmem:[#allocation2 + $0x14] sm:$0xff]
        %v3887 = vld [vmem:[#allocation2 + $0x1c] sm:$0xf]
        %v3888 = vld [vmem:[#allocation2 + $0x24] sm:$0xff]
        %v3889 = vld [vmem:[#allocation2 + $0x2c] sm:$0xf]
        %v3890 = vld [vmem:[#allocation2 + $0x34] sm:$0xff]
        %v3891 = vld [vmem:[#allocation2 + $0x3c] sm:$0xf]
        %v3892 = vsel %vm610, %v3884, 0
        %v3893 = vsel %vm617, %v3885, 0
        %v3894 = vsel %vm610, %v3886, 0
        %v3895 = vsel %vm617, %v3887, 0
        %v3896 = vsel %vm610, %v3888, 0
        %v3897 = vsel %vm617, %v3889, 0
        %v3898 = vsel %vm610, %v3890, 0
        %v3899 = vsel %vm617, %v3891, 0
        %v3900 = vsel %vm637, %v3884, 0
        %v3901 = vsel %vm644, %v3885, 0
        %v3902 = vsel %vm637, %v3886, 0
        %v3903 = vsel %vm644, %v3887, 0
        %v3904 = vsel %vm637, %v3888, 0
        %v3905 = vsel %vm644, %v3889, 0
        %v3906 = vsel %vm637, %v3890, 0
        %v3907 = vsel %vm644, %v3891, 0
        %v3908 = vsel %vm664, %v3884, 0
        %v3909 = vsel %vm671, %v3885, 0
        %v3910 = vsel %vm664, %v3886, 0
        %v3911 = vsel %vm671, %v3887, 0
        %v3912 = vsel %vm664, %v3888, 0
        %v3913 = vsel %vm671, %v3889, 0
        %v3914 = vsel %vm664, %v3890, 0
        %v3915 = vsel %vm671, %v3891, 0
        %v3924 = vunpack.c.l.b16 %v3856
        %v3925 = vunpack.c.h.b16 %v3856
        %v3926 = vunpack.c.l.b16 %v3857
        %v3927 = vunpack.c.l.b16 %v3858
        %v3928 = vunpack.c.h.b16 %v3858
        %v3929 = vunpack.c.l.b16 %v3859
        %v3930 = vunpack.c.l.b16 %v3860
        %v3931 = vunpack.c.h.b16 %v3860
        %v3932 = vunpack.c.l.b16 %v3861
        %v3933 = vunpack.c.l.b16 %v3862
        %v3934 = vunpack.c.h.b16 %v3862
        %v3935 = vunpack.c.l.b16 %v3863
        %v3936 = vpack.c.b16 %v3927, %v3924
        %v3937 = vpack.c.b16 %v3928, %v3925
        %v3938 = vpack.c.b16 %v3929, %v3926
        %v3939 = vpack.c.b16 %v3933, %v3930
        %v3940 = vpack.c.b16 %v3934, %v3931
        %v3941 = vpack.c.b16 %v3935, %v3932
        %v3950 = vunpack.c.l.b16 %v3848
        %v3951 = vunpack.c.h.b16 %v3848
        %v3952 = vunpack.c.l.b16 %v3849
        %v3953 = vunpack.c.l.b16 %v3850
        %v3954 = vunpack.c.h.b16 %v3850
        %v3955 = vunpack.c.l.b16 %v3851
        %v3956 = vunpack.c.l.b16 %v3852
        %v3957 = vunpack.c.h.b16 %v3852
        %v3958 = vunpack.c.l.b16 %v3853
        %v3959 = vunpack.c.l.b16 %v3854
        %v3960 = vunpack.c.h.b16 %v3854
        %v3961 = vunpack.c.l.b16 %v3855
        %v3962 = vpack.c.b16 %v3953, %v3950
        %v3963 = vpack.c.b16 %v3954, %v3951
        %v3964 = vpack.c.b16 %v3955, %v3952
        %v3965 = vpack.c.b16 %v3959, %v3956
        %v3966 = vpack.c.b16 %v3960, %v3957
        %v3967 = vpack.c.b16 %v3961, %v3958
        %3968 = vrot.lane.b32.xlu0 %v3962, 127
        %v3969 = vpop.permute.xlu0 %3968
        %3970 = vrot.lane.b32.xlu0 %v3963, 127
        %v3971 = vpop.permute.xlu0 %3970
        %3972 = vrot.lane.b32.xlu0 %v3964, 127
        %v3973 = vpop.permute.xlu0 %3972
        %3974 = vrot.lane.b32.xlu0 %v3965, 127
        %v3975 = vpop.permute.xlu0 %3974
        %3976 = vrot.lane.b32.xlu0 %v3966, 127
        %v3977 = vpop.permute.xlu0 %3976
        %3978 = vrot.lane.b32.xlu0 %v3967, 127
        %v3979 = vpop.permute.xlu0 %3978
        %v3980 = vsel %vm563, %v3969, %v3971
        %v3981 = vsel %vm563, %v3971, %v3973
        %v3982 = vsel %vm563, %v3975, %v3977
        %v3983 = vsel %vm563, %v3977, %v3979
        %v3992 = vunpack.c.l.b16 %v3864
        %v3993 = vunpack.c.h.b16 %v3864
        %v3994 = vunpack.c.l.b16 %v3865
        %v3995 = vunpack.c.l.b16 %v3866
        %v3996 = vunpack.c.h.b16 %v3866
        %v3997 = vunpack.c.l.b16 %v3867
        %v3998 = vunpack.c.l.b16 %v3868
        %v3999 = vunpack.c.h.b16 %v3868
        %v4000 = vunpack.c.l.b16 %v3869
        %v4001 = vunpack.c.l.b16 %v3870
        %v4002 = vunpack.c.h.b16 %v3870
        %v4003 = vunpack.c.l.b16 %v3871
        %v4004 = vpack.c.b16 %v3995, %v3992
        %v4005 = vpack.c.b16 %v3996, %v3993
        %v4006 = vpack.c.b16 %v3997, %v3994
        %v4007 = vpack.c.b16 %v4001, %v3998
        %v4008 = vpack.c.b16 %v4002, %v3999
        %v4009 = vpack.c.b16 %v4003, %v4000
        %4010 = vrot.lane.b32.xlu0 %v4004, 126
        %v4011 = vpop.permute.xlu0 %4010
        %4012 = vrot.lane.b32.xlu0 %v4005, 126
        %v4013 = vpop.permute.xlu0 %4012
        %4014 = vrot.lane.b32.xlu0 %v4006, 126
        %v4015 = vpop.permute.xlu0 %4014
        %4016 = vrot.lane.b32.xlu0 %v4007, 126
        %v4017 = vpop.permute.xlu0 %4016
        %4018 = vrot.lane.b32.xlu0 %v4008, 126
        %v4019 = vpop.permute.xlu0 %4018
        %4020 = vrot.lane.b32.xlu0 %v4009, 126
        %v4021 = vpop.permute.xlu0 %4020
        %v4022 = vsel %vm786, %v4011, %v4013
        %v4023 = vsel %vm786, %v4013, %v4015
        %v4024 = vsel %vm786, %v4017, %v4019
        %v4025 = vsel %vm786, %v4019, %v4021
        %v4034 = vunpack.c.l.b16 %v3872
        %v4035 = vunpack.c.h.b16 %v3872
        %v4036 = vunpack.c.l.b16 %v3873
        %v4037 = vunpack.c.l.b16 %v3874
        %v4038 = vunpack.c.h.b16 %v3874
        %v4039 = vunpack.c.l.b16 %v3875
        %v4040 = vunpack.c.l.b16 %v3876
        %v4041 = vunpack.c.h.b16 %v3876
        %v4042 = vunpack.c.l.b16 %v3877
        %v4043 = vunpack.c.l.b16 %v3878
        %v4044 = vunpack.c.h.b16 %v3878
        %v4045 = vunpack.c.l.b16 %v3879
        %v4046 = vpack.c.b16 %v4037, %v4034
        %v4047 = vpack.c.b16 %v4038, %v4035
        %v4048 = vpack.c.b16 %v4039, %v4036
        %v4049 = vpack.c.b16 %v4043, %v4040
        %v4050 = vpack.c.b16 %v4044, %v4041
        %v4051 = vpack.c.b16 %v4045, %v4042
        %4052 = vrot.lane.b32.xlu0 %v4046, 112
        %v4053 = vpop.permute.xlu0 %4052
        %4054 = vrot.lane.b32.xlu0 %v4047, 112
        %v4055 = vpop.permute.xlu0 %4054
        %4056 = vrot.lane.b32.xlu0 %v4048, 112
        %v4057 = vpop.permute.xlu0 %4056
        %4058 = vrot.lane.b32.xlu0 %v4049, 112
        %v4059 = vpop.permute.xlu0 %4058
        %4060 = vrot.lane.b32.xlu0 %v4050, 112
        %v4061 = vpop.permute.xlu0 %4060
        %4062 = vrot.lane.b32.xlu0 %v4051, 112
        %v4063 = vpop.permute.xlu0 %4062
        %v4064 = vsel %vm829, %v4053, %v4055
        %v4065 = vsel %vm829, %v4055, %v4057
        %v4066 = vsel %vm829, %v4059, %v4061
        %v4067 = vsel %vm829, %v4061, %v4063
        %v4072 = vunpack.c.l.b16 %v3880
        %v4073 = vunpack.c.h.b16 %v3880
        %v4074 = vunpack.c.l.b16 %v3881
        %v4075 = vunpack.c.h.b16 %v3881
        %v4076 = vunpack.c.l.b16 %v3882
        %v4077 = vunpack.c.h.b16 %v3882
        %v4078 = vunpack.c.l.b16 %v3883
        %v4079 = vunpack.c.h.b16 %v3883
        %v4080 = vpack.c.b16 %v4074, %v4072
        %v4081 = vpack.c.b16 %v4075, %v4073
        %v4082 = vpack.c.b16 %v4078, %v4076
        %v4083 = vpack.c.b16 %v4079, %v4077
        %4084 = vrot.lane.b32.xlu0 %v4080, 111
        %v4085 = vpop.permute.xlu0 %4084
        %4086 = vrot.lane.b32.xlu0 %v4081, 111
        %v4087 = vpop.permute.xlu0 %4086
        %4088 = vrot.lane.b32.xlu0 %v4082, 111
        %v4089 = vpop.permute.xlu0 %4088
        %4090 = vrot.lane.b32.xlu0 %v4083, 111
        %v4091 = vpop.permute.xlu0 %4090
        %v4092 = vsel %vm503, %v4085, %v4087
        %v4093 = vsel %vm503, %v4089, %v4091
        %v4102 = vunpack.c.l.b16 %v3892
        %v4103 = vunpack.c.h.b16 %v3892
        %v4104 = vunpack.c.l.b16 %v3893
        %v4105 = vunpack.c.l.b16 %v3894
        %v4106 = vunpack.c.h.b16 %v3894
        %v4107 = vunpack.c.l.b16 %v3895
        %v4108 = vunpack.c.l.b16 %v3896
        %v4109 = vunpack.c.h.b16 %v3896
        %v4110 = vunpack.c.l.b16 %v3897
        %v4111 = vunpack.c.l.b16 %v3898
        %v4112 = vunpack.c.h.b16 %v3898
        %v4113 = vunpack.c.l.b16 %v3899
        %v4114 = vpack.c.b16 %v4105, %v4102
        %v4115 = vpack.c.b16 %v4106, %v4103
        %v4116 = vpack.c.b16 %v4107, %v4104
        %v4117 = vpack.c.b16 %v4111, %v4108
        %v4118 = vpack.c.b16 %v4112, %v4109
        %v4119 = vpack.c.b16 %v4113, %v4110
        %4120 = vrot.lane.b32.xlu0 %v4114, 110
        %v4121 = vpop.permute.xlu0 %4120
        %4122 = vrot.lane.b32.xlu0 %v4115, 110
        %v4123 = vpop.permute.xlu0 %4122
        %4124 = vrot.lane.b32.xlu0 %v4116, 110
        %v4125 = vpop.permute.xlu0 %4124
        %4126 = vrot.lane.b32.xlu0 %v4117, 110
        %v4127 = vpop.permute.xlu0 %4126
        %4128 = vrot.lane.b32.xlu0 %v4118, 110
        %v4129 = vpop.permute.xlu0 %4128
        %4130 = vrot.lane.b32.xlu0 %v4119, 110
        %v4131 = vpop.permute.xlu0 %4130
        %v4132 = vsel %vm898, %v4121, %v4123
        %v4133 = vsel %vm898, %v4123, %v4125
        %v4134 = vsel %vm898, %v4127, %v4129
        %v4135 = vsel %vm898, %v4129, %v4131
        %v4144 = vunpack.c.l.b16 %v3900
        %v4145 = vunpack.c.h.b16 %v3900
        %v4146 = vunpack.c.l.b16 %v3901
        %v4147 = vunpack.c.l.b16 %v3902
        %v4148 = vunpack.c.h.b16 %v3902
        %v4149 = vunpack.c.l.b16 %v3903
        %v4150 = vunpack.c.l.b16 %v3904
        %v4151 = vunpack.c.h.b16 %v3904
        %v4152 = vunpack.c.l.b16 %v3905
        %v4153 = vunpack.c.l.b16 %v3906
        %v4154 = vunpack.c.h.b16 %v3906
        %v4155 = vunpack.c.l.b16 %v3907
        %v4156 = vpack.c.b16 %v4147, %v4144
        %v4157 = vpack.c.b16 %v4148, %v4145
        %v4158 = vpack.c.b16 %v4149, %v4146
        %v4159 = vpack.c.b16 %v4153, %v4150
        %v4160 = vpack.c.b16 %v4154, %v4151
        %v4161 = vpack.c.b16 %v4155, %v4152
        %4162 = vrot.lane.b32.xlu0 %v4156, 96
        %v4163 = vpop.permute.xlu0 %4162
        %4164 = vrot.lane.b32.xlu0 %v4157, 96
        %v4165 = vpop.permute.xlu0 %4164
        %4166 = vrot.lane.b32.xlu0 %v4158, 96
        %v4167 = vpop.permute.xlu0 %4166
        %4168 = vrot.lane.b32.xlu0 %v4159, 96
        %v4169 = vpop.permute.xlu0 %4168
        %4170 = vrot.lane.b32.xlu0 %v4160, 96
        %v4171 = vpop.permute.xlu0 %4170
        %4172 = vrot.lane.b32.xlu0 %v4161, 96
        %v4173 = vpop.permute.xlu0 %4172
        %v4174 = vsel %vm941, %v4163, %v4165
        %v4175 = vsel %vm941, %v4165, %v4167
        %v4176 = vsel %vm941, %v4169, %v4171
        %v4177 = vsel %vm941, %v4171, %v4173
        %v4186 = vunpack.c.l.b16 %v3884
        %v4187 = vunpack.c.h.b16 %v3884
        %v4188 = vunpack.c.l.b16 %v3885
        %v4189 = vunpack.c.l.b16 %v3886
        %v4190 = vunpack.c.h.b16 %v3886
        %v4191 = vunpack.c.l.b16 %v3887
        %v4192 = vunpack.c.l.b16 %v3888
        %v4193 = vunpack.c.h.b16 %v3888
        %v4194 = vunpack.c.l.b16 %v3889
        %v4195 = vunpack.c.l.b16 %v3890
        %v4196 = vunpack.c.h.b16 %v3890
        %v4197 = vunpack.c.l.b16 %v3891
        %v4198 = vpack.c.b16 %v4189, %v4186
        %v4199 = vpack.c.b16 %v4190, %v4187
        %v4200 = vpack.c.b16 %v4191, %v4188
        %v4201 = vpack.c.b16 %v4195, %v4192
        %v4202 = vpack.c.b16 %v4196, %v4193
        %v4203 = vpack.c.b16 %v4197, %v4194
        %4204 = vrot.lane.b32.xlu0 %v4198, 95
        %v4205 = vpop.permute.xlu0 %4204
        %4206 = vrot.lane.b32.xlu0 %v4199, 95
        %v4207 = vpop.permute.xlu0 %4206
        %4208 = vrot.lane.b32.xlu0 %v4200, 95
        %v4209 = vpop.permute.xlu0 %4208
        %4210 = vrot.lane.b32.xlu0 %v4201, 95
        %v4211 = vpop.permute.xlu0 %4210
        %4212 = vrot.lane.b32.xlu0 %v4202, 95
        %v4213 = vpop.permute.xlu0 %4212
        %4214 = vrot.lane.b32.xlu0 %v4203, 95
        %v4215 = vpop.permute.xlu0 %4214
        %v4216 = vsel %vm984, %v4205, %v4207
        %v4217 = vsel %vm984, %v4207, %v4209
        %v4218 = vsel %vm984, %v4211, %v4213
        %v4219 = vsel %vm984, %v4213, %v4215
        %v4228 = vunpack.c.l.b16 %v3908
        %v4229 = vunpack.c.h.b16 %v3908
        %v4230 = vunpack.c.l.b16 %v3909
        %v4231 = vunpack.c.l.b16 %v3910
        %v4232 = vunpack.c.h.b16 %v3910
        %v4233 = vunpack.c.l.b16 %v3911
        %v4234 = vunpack.c.l.b16 %v3912
        %v4235 = vunpack.c.h.b16 %v3912
        %v4236 = vunpack.c.l.b16 %v3913
        %v4237 = vunpack.c.l.b16 %v3914
        %v4238 = vunpack.c.h.b16 %v3914
        %v4239 = vunpack.c.l.b16 %v3915
        %v4240 = vpack.c.b16 %v4231, %v4228
        %v4241 = vpack.c.b16 %v4232, %v4229
        %v4242 = vpack.c.b16 %v4233, %v4230
        %v4243 = vpack.c.b16 %v4237, %v4234
        %v4244 = vpack.c.b16 %v4238, %v4235
        %v4245 = vpack.c.b16 %v4239, %v4236
        %4246 = vrot.lane.b32.xlu0 %v4240, 94
        %v4247 = vpop.permute.xlu0 %4246
        %4248 = vrot.lane.b32.xlu0 %v4241, 94
        %v4249 = vpop.permute.xlu0 %4248
        %4250 = vrot.lane.b32.xlu0 %v4242, 94
        %v4251 = vpop.permute.xlu0 %4250
        %4252 = vrot.lane.b32.xlu0 %v4243, 94
        %v4253 = vpop.permute.xlu0 %4252
        %4254 = vrot.lane.b32.xlu0 %v4244, 94
        %v4255 = vpop.permute.xlu0 %4254
        %4256 = vrot.lane.b32.xlu0 %v4245, 94
        %v4257 = vpop.permute.xlu0 %4256
        %v4258 = vsel %vm1027, %v4247, %v4249
        %v4259 = vsel %vm1027, %v4249, %v4251
        %v4260 = vsel %vm1027, %v4253, %v4255
        %v4261 = vsel %vm1027, %v4255, %v4257
        %4263 = vset.pattern.permute.xlu0 0
        %4264 = vperm.xlu0 %4263, %v3842
        %v4265 = vpop.permute.xlu0 %4264
        %4268 = vset.pattern.permute.xlu0 0
        %4269 = vperm.xlu0 %4268, %v3843
        %v4270 = vpop.permute.xlu0 %4269
        %v4276 = vunpack.c.l.b16 %v3838
        %v4277 = vunpack.c.h.b16 %v3838
        %v4278 = vunpack.c.l.b16 %v3839
        %v4279 = vunpack.c.l.b16 %v3840
        %v4280 = vunpack.c.h.b16 %v3840
        %v4281 = vunpack.c.l.b16 %v3841
        %v4282 = vpack.c.b16 %v4279, %v4276
        %v4283 = vpack.c.b16 %v4280, %v4277
        %v4284 = vpack.c.b16 %v4281, %v4278
        %4287 = vrot.lane.b32.xlu0 %v3936, 17
        %v4288 = vpop.permute.xlu0 %4287
        %4289 = vrot.lane.b32.xlu0 %v3937, 17
        %v4290 = vpop.permute.xlu0 %4289
        %4291 = vrot.lane.b32.xlu0 %v3938, 17
        %v4292 = vpop.permute.xlu0 %4291
        %4293 = vrot.lane.b32.xlu0 %v3939, 17
        %v4294 = vpop.permute.xlu0 %4293
        %4295 = vrot.lane.b32.xlu0 %v3940, 17
        %v4296 = vpop.permute.xlu0 %4295
        %4297 = vrot.lane.b32.xlu0 %v3941, 17
        %v4298 = vpop.permute.xlu0 %4297
        %4299 = vrot.lane.b32.xlu0 %v3980, 17
        %v4300 = vpop.permute.xlu0 %4299
        %4301 = vrot.lane.b32.xlu0 %v3981, 17
        %v4302 = vpop.permute.xlu0 %4301
        %4303 = vrot.lane.b32.xlu0 %v3973, 17
        %v4304 = vpop.permute.xlu0 %4303
        %4305 = vrot.lane.b32.xlu0 %v3982, 17
        %v4306 = vpop.permute.xlu0 %4305
        %4307 = vrot.lane.b32.xlu0 %v3983, 17
        %v4308 = vpop.permute.xlu0 %4307
        %4309 = vrot.lane.b32.xlu0 %v3979, 17
        %v4310 = vpop.permute.xlu0 %4309
        %4311 = vrot.lane.b32.xlu0 %v4022, 17
        %v4312 = vpop.permute.xlu0 %4311
        %4313 = vrot.lane.b32.xlu0 %v4023, 17
        %v4314 = vpop.permute.xlu0 %4313
        %4315 = vrot.lane.b32.xlu0 %v4015, 17
        %v4316 = vpop.permute.xlu0 %4315
        %4317 = vrot.lane.b32.xlu0 %v4024, 17
        %v4318 = vpop.permute.xlu0 %4317
        %4319 = vrot.lane.b32.xlu0 %v4025, 17
        %v4320 = vpop.permute.xlu0 %4319
        %4321 = vrot.lane.b32.xlu0 %v4021, 17
        %v4322 = vpop.permute.xlu0 %4321
        %4323 = vrot.lane.b32.xlu0 %v4064, 17
        %v4324 = vpop.permute.xlu0 %4323
        %4325 = vrot.lane.b32.xlu0 %v4065, 17
        %v4326 = vpop.permute.xlu0 %4325
        %4327 = vrot.lane.b32.xlu0 %v4057, 17
        %v4328 = vpop.permute.xlu0 %4327
        %4329 = vrot.lane.b32.xlu0 %v4066, 17
        %v4330 = vpop.permute.xlu0 %4329
        %4331 = vrot.lane.b32.xlu0 %v4067, 17
        %v4332 = vpop.permute.xlu0 %4331
        %4333 = vrot.lane.b32.xlu0 %v4063, 17
        %v4334 = vpop.permute.xlu0 %4333
        %4335 = vrot.lane.b32.xlu0 %v4085, 17
        %v4336 = vpop.permute.xlu0 %4335
        %4337 = vrot.lane.b32.xlu0 %v4092, 17
        %v4338 = vpop.permute.xlu0 %4337
        %4339 = vrot.lane.b32.xlu0 %v4087, 17
        %v4340 = vpop.permute.xlu0 %4339
        %4341 = vrot.lane.b32.xlu0 %v4089, 17
        %v4342 = vpop.permute.xlu0 %4341
        %4343 = vrot.lane.b32.xlu0 %v4093, 17
        %v4344 = vpop.permute.xlu0 %4343
        %4345 = vrot.lane.b32.xlu0 %v4091, 17
        %v4346 = vpop.permute.xlu0 %4345
        %4347 = vrot.lane.b32.xlu0 %v4121, 17
        %v4348 = vpop.permute.xlu0 %4347
        %4349 = vrot.lane.b32.xlu0 %v4132, 17
        %v4350 = vpop.permute.xlu0 %4349
        %4351 = vrot.lane.b32.xlu0 %v4133, 17
        %v4352 = vpop.permute.xlu0 %4351
        %4353 = vrot.lane.b32.xlu0 %v4127, 17
        %v4354 = vpop.permute.xlu0 %4353
        %4355 = vrot.lane.b32.xlu0 %v4134, 17
        %v4356 = vpop.permute.xlu0 %4355
        %4357 = vrot.lane.b32.xlu0 %v4135, 17
        %v4358 = vpop.permute.xlu0 %4357
        %4359 = vrot.lane.b32.xlu0 %v4163, 17
        %v4360 = vpop.permute.xlu0 %4359
        %4361 = vrot.lane.b32.xlu0 %v4174, 17
        %v4362 = vpop.permute.xlu0 %4361
        %4363 = vrot.lane.b32.xlu0 %v4175, 17
        %v4364 = vpop.permute.xlu0 %4363
        %4365 = vrot.lane.b32.xlu0 %v4169, 17
        %v4366 = vpop.permute.xlu0 %4365
        %4367 = vrot.lane.b32.xlu0 %v4176, 17
        %v4368 = vpop.permute.xlu0 %4367
        %4369 = vrot.lane.b32.xlu0 %v4177, 17
        %v4370 = vpop.permute.xlu0 %4369
        %4371 = vrot.lane.b32.xlu0 %v4205, 17
        %v4372 = vpop.permute.xlu0 %4371
        %4373 = vrot.lane.b32.xlu0 %v4216, 17
        %v4374 = vpop.permute.xlu0 %4373
        %4375 = vrot.lane.b32.xlu0 %v4217, 17
        %v4376 = vpop.permute.xlu0 %4375
        %4377 = vrot.lane.b32.xlu0 %v4211, 17
        %v4378 = vpop.permute.xlu0 %4377
        %4379 = vrot.lane.b32.xlu0 %v4218, 17
        %v4380 = vpop.permute.xlu0 %4379
        %4381 = vrot.lane.b32.xlu0 %v4219, 17
        %v4382 = vpop.permute.xlu0 %4381
        %4383 = vrot.lane.b32.xlu0 %v4247, 17
        %v4384 = vpop.permute.xlu0 %4383
        %4385 = vrot.lane.b32.xlu0 %v4258, 17
        %v4386 = vpop.permute.xlu0 %4385
        %4387 = vrot.lane.b32.xlu0 %v4259, 17
        %v4388 = vpop.permute.xlu0 %4387
        %4389 = vrot.lane.b32.xlu0 %v4253, 17
        %v4390 = vpop.permute.xlu0 %4389
        %4391 = vrot.lane.b32.xlu0 %v4260, 17
        %v4392 = vpop.permute.xlu0 %4391
        %4393 = vrot.lane.b32.xlu0 %v4261, 17
        %v4394 = vpop.permute.xlu0 %4393
        %v4395 = vsel %vm656, %v4288, %v4290
        %v4396 = vsel %vm656, %v4290, %v4292
        %v4397 = vsel %vm656, %v4294, %v4296
        %v4398 = vsel %vm656, %v4296, %v4298
        %v4399 = vsel %vm656, %v4300, %v4302
        %v4400 = vsel %vm656, %v4302, %v4304
        %v4401 = vsel %vm656, %v4306, %v4308
        %v4402 = vsel %vm656, %v4308, %v4310
        %v4403 = vsel %vm656, %v4312, %v4314
        %v4404 = vsel %vm656, %v4314, %v4316
        %v4405 = vsel %vm656, %v4318, %v4320
        %v4406 = vsel %vm656, %v4320, %v4322
        %v4407 = vsel %vm656, %v4324, %v4326
        %v4408 = vsel %vm656, %v4326, %v4328
        %v4409 = vsel %vm656, %v4330, %v4332
        %v4410 = vsel %vm656, %v4332, %v4334
        %v4411 = vsel %vm656, %v4336, %v4338
        %v4412 = vsel %vm656, %v4338, %v4340
        %v4413 = vsel %vm656, %v4342, %v4344
        %v4414 = vsel %vm656, %v4344, %v4346
        %v4415 = vsel %vm656, %v4348, %v4350
        %v4416 = vsel %vm656, %v4350, %v4352
        %v4417 = vsel %vm656, %v4354, %v4356
        %v4418 = vsel %vm656, %v4356, %v4358
        %v4419 = vsel %vm656, %v4360, %v4362
        %v4420 = vsel %vm656, %v4362, %v4364
        %v4421 = vsel %vm656, %v4366, %v4368
        %v4422 = vsel %vm656, %v4368, %v4370
        %v4423 = vsel %vm656, %v4372, %v4374
        %v4424 = vsel %vm656, %v4374, %v4376
        %v4425 = vsel %vm656, %v4378, %v4380
        %v4426 = vsel %vm656, %v4380, %v4382
        %v4427 = vsel %vm656, %v4384, %v4386
        %v4428 = vsel %vm656, %v4386, %v4388
        %v4429 = vsel %vm656, %v4390, %v4392
        %v4430 = vsel %vm656, %v4392, %v4394
        %v4468 = vsel %vm1312, %v4284, 0
        %4470 = vmatpush.bf16.msra.mxu0 %v4409
        %4471 = vmatpush.bf16.msra.mxu0 %v4407
        %4472 = vmatpush.bf16.msra.mxu0 %v4405
        %4473 = vmatpush.bf16.msra.mxu0 %v4403
        %4474 = vmatpush.bf16.msra.mxu0 %v4401
        %4475 = vmatpush.bf16.msra.mxu0 %v4399
        %4476 = vmatpush.bf16.msra.mxu0 %v4397
        %4477 = vmatpush.bf16.msra.mxu0 %v4395
        %4478 = vmatmul.bf16.gmra.mxu0 %v4282
        %v4479 = vpop.f32.mrf.mxu0
        %v4480 = vadd.f32 %v4265, %v4479
        %v4481 = vpop.f32.mrf.mxu0
        %v4482 = vadd.f32 %v4270, %v4481
        %4483 = vdwg.mxu0
        %4484 = vmatpush.bf16.msra.mxu0 %v4425
        %4485 = vmatpush.bf16.msra.mxu0 %v4423
        %4486 = vmatpush.bf16.msra.mxu0 %v4421
        %4487 = vmatpush.bf16.msra.mxu0 %v4419
        %4488 = vmatpush.bf16.msra.mxu0 %v4417
        %4489 = vmatpush.bf16.msra.mxu0 %v4415
        %4490 = vmatpush.bf16.msra.mxu0 %v4413
        %4491 = vmatpush.bf16.msra.mxu0 %v4411
        %4492 = vmatmul.bf16.gmra.mxu0 %v4283
        %v4493 = vpop.f32.mrf.mxu0
        %v4494 = vadd.f32 %v4480, %v4493
        %v4495 = vpop.f32.mrf.mxu0
        %v4496 = vadd.f32 %v4482, %v4495
        %4497 = vdwg.mxu0
        %4498 = vmatpush.bf16.msra.mxu0 0
        %4499 = vmatpush.bf16.msra.mxu0 0
        %4500 = vmatpush.bf16.msra.mxu0 0
        %4501 = vmatpush.bf16.msra.mxu0 0
        %4502 = vmatpush.bf16.msra.mxu0 0
        %4503 = vmatpush.bf16.msra.mxu0 0
        %4504 = vmatpush.bf16.msra.mxu0 %v4429
        %4505 = vmatpush.bf16.msra.mxu0 %v4427
        %4506 = vmatmul.bf16.gmra.mxu0 %v4468
        %v4507 = vpop.f32.mrf.mxu0
        %v4508 = vadd.f32 %v4494, %v4507
        %v4509 = vpop.f32.mrf.mxu0
        %v4510 = vadd.f32 %v4496, %v4509
        %4511 = vdwg.mxu0
        %4512 = vmatpush.bf16.msra.mxu0 %v4410
        %4513 = vmatpush.bf16.msra.mxu0 %v4408
        %4514 = vmatpush.bf16.msra.mxu0 %v4406
        %4515 = vmatpush.bf16.msra.mxu0 %v4404
        %4516 = vmatpush.bf16.msra.mxu0 %v4402
        %4517 = vmatpush.bf16.msra.mxu0 %v4400
        %4518 = vmatpush.bf16.msra.mxu0 %v4398
        %4519 = vmatpush.bf16.msra.mxu0 %v4396
        %4520 = vmatmul.bf16.gmra.mxu0 %v4282
        %v4521 = vpop.f32.mrf.mxu0
        %v4522 = vadd.f32 %v4265, %v4521
        %v4523 = vpop.f32.mrf.mxu0
        %v4524 = vadd.f32 %v4270, %v4523
        %4525 = vdwg.mxu0
        %4526 = vmatpush.bf16.msra.mxu0 %v4426
        %4527 = vmatpush.bf16.msra.mxu0 %v4424
        %4528 = vmatpush.bf16.msra.mxu0 %v4422
        %4529 = vmatpush.bf16.msra.mxu0 %v4420
        %4530 = vmatpush.bf16.msra.mxu0 %v4418
        %4531 = vmatpush.bf16.msra.mxu0 %v4416
        %4532 = vmatpush.bf16.msra.mxu0 %v4414
        %4533 = vmatpush.bf16.msra.mxu0 %v4412
        %4534 = vmatmul.bf16.gmra.mxu0 %v4283
        %v4535 = vpop.f32.mrf.mxu0
        %v4536 = vadd.f32 %v4522, %v4535
        %v4537 = vpop.f32.mrf.mxu0
        %v4538 = vadd.f32 %v4524, %v4537
        %4539 = vdwg.mxu0
        %4540 = vmatpush.bf16.msra.mxu0 0
        %4541 = vmatpush.bf16.msra.mxu0 0
        %4542 = vmatpush.bf16.msra.mxu0 0
        %4543 = vmatpush.bf16.msra.mxu0 0
        %4544 = vmatpush.bf16.msra.mxu0 0
        %4545 = vmatpush.bf16.msra.mxu0 0
        %4546 = vmatpush.bf16.msra.mxu0 %v4430
        %4547 = vmatpush.bf16.msra.mxu0 %v4428
        %4548 = vmatmul.bf16.gmra.mxu0 %v4468
        %v4549 = vpop.f32.mrf.mxu0
        %v4550 = vadd.f32 %v4536, %v4549
        %v4551 = vpop.f32.mrf.mxu0
        %v4552 = vadd.f32 %v4538, %v4551
        %4553 = vdwg.mxu0
        %v4554 = vpack.c.bf16 %v4550, %v4508
        %v4555 = vpack.c.bf16 %v4552, %v4510
        %4556 = vst [vmem:[%s411] sm:$0xff] %v4554
        %4557 = vst [vmem:[%s411 + $0x8] sm:$0x33] %v4555
        %p4558 = scmp.lt.s32.totalorder %s26, 1
        %s4559 = scalar_select %p4558, %s26, 1
        %s4560 = smul.addr %s4559, 4
        %s4561 = smul.addr %s4560, 4
        %s4562 = scalar_lea.vmem %s9, %s4561
        %p4563 = scmp.lt.s32.totalorder %s26, 1
        %s4564 = scalar_select %p4563, %s26, 1
        %s4565 = smul.addr %s4564, 4
        %s4566 = smul.addr %s4565, 4
        %s4567 = scalar_lea.vmem %s10, %s4566
        // Predicated region
        $region65: #{tpu_custom_call.1} parent=55 // pred_check
          %p4568 = pneg %p238
        $region66: #{tpu_custom_call.1} parent=55 // pred_check_branch
          %4570 = sbr.rel (%p4568) target = $region68
        $region67: #{tpu_custom_call.1} parent=55 // pred_region
          _
        $region68: #{tpu_custom_call.1} parent=55 // pred_fallthru
          _
        // Predicated region
        $region69: #{tpu_custom_call.1} parent=55 // pred_check
          %p4571 = pneg %p264
        $region70: #{tpu_custom_call.1} parent=55 // pred_check_branch
          %4573 = sbr.rel (%p4571) target = $region72
        $region71: #{tpu_custom_call.1} parent=55 // pred_region
          _
        $region72: #{tpu_custom_call.1} parent=55 // pred_fallthru
          _
      $region56: #{tpu_custom_call.1} parent=5 // pred_fallthru
        _
      %p4574 = scmp.le.s32.totalorder 2, %s21
      // Predicated region
      $region73: #{tpu_custom_call.1} parent=5 // pred_check
        %p4575 = pneg %p4574
      $region74: #{tpu_custom_call.1} parent=5 // pred_check_branch
        %4577 = sbr.rel (%p4575) target = $region76
      $region75: #{tpu_custom_call.1} parent=5 // pred_region
        %s4578 = ssub.s32 %s21, 2
        // Predicated region
        $region77: #{tpu_custom_call.1} parent=75 // pred_check
          %p4579 = pneg %p244
        $region78: #{tpu_custom_call.1} parent=75 // pred_check_branch
          %4581 = sbr.rel (%p4579) target = $region80
        $region79: #{tpu_custom_call.1} parent=75 // pred_region
          %p4582 = scmp.lt.s32.totalorder %s27, 1
          %s4583 = scalar_select %p4582, %s27, 1
          %s4584 = smul.addr %s4583, 4
          %s4585 = smul.addr %s4584, 4
          %s4586 = scalar_lea.vmem %s9, %s4585
        $region80: #{tpu_custom_call.1} parent=75 // pred_fallthru
          _
        // Predicated region
        $region81: #{tpu_custom_call.1} parent=75 // pred_check
          %p4587 = pneg %p270
        $region82: #{tpu_custom_call.1} parent=75 // pred_check_branch
          %4589 = sbr.rel (%p4587) target = $region84
        $region83: #{tpu_custom_call.1} parent=75 // pred_region
          %p4590 = scmp.lt.s32.totalorder %s27, 1
          %s4591 = scalar_select %p4590, %s27, 1
          %s4592 = smul.addr %s4591, 4
          %s4593 = smul.addr %s4592, 4
          %s4594 = scalar_lea.vmem %s10, %s4593
        $region84: #{tpu_custom_call.1} parent=75 // pred_fallthru
          _
      $region76: #{tpu_custom_call.1} parent=5 // pred_fallthru
        _
    $region6: #{tpu_custom_call.1} parent=1 // loop_footer
      %s25 = sadd.s32 1, %s21
    $region7: #{tpu_custom_call.1} parent=1 // loop_footer_branch
      %20 = sbr.rel target = $region3
    $region8: #{tpu_custom_call.1} parent=1 // loop_exit
      _
    %4595 = vsyncpa [#allocation4], 1
    %s4596 = scalar_lea.sflag [#allocation4], 1
    %4597 = vsyncpa %s4596, 1
    %4598 = vsyncpa [#allocation6], 1

</llo_original>
